<compile_context>
chip_gen: v5e
topology: v5e:2x2
jax: 0.10.0
libtpu: 0.0.40
codegen_flags: <defaults>
</compile_context>

<pallas_src>
import jax
import jax.numpy as jnp
from jax.experimental import pallas as pl
from jax.experimental.pallas import tpu as pltpu

IN_SIZE = 341        # hardcoded in ResDNN.__init__ (FCNet(in_size=341, ...))
IN_PAD  = 384        # 341 zero-padded up to a multiple of 128 (inside kernel)
HIDDEN  = 256        # hidden_size default
CLS_HID = 512        # classifier hidden (hardcoded)
OUT     = 4          # classifier output (hardcoded)
OUT_PAD = 128        # lane-dense padded classifier output
NUM_LAYERS = 3
BATCH   = 8          # small demo batch; wrapper pads to a multiple of TB
TB      = 256        # batch tile (see header; keep Bp//TB >= 2 on v7x for big B)


def resdnn_kernel(x_ref, w0_ref, b0_ref, wl_ref, bl_ref,
                  wc1_ref, bc1_ref, wc2_ref, bc2_ref, out_ref, xpad_ref):
    f32 = jnp.float32
    bf16 = jnp.bfloat16

    # Zero the stem-input scratch once (it persists across grid steps); only
    # the padding lanes [IN_SIZE:IN_PAD) actually need to stay zero — later
    # steps only ever write the first IN_SIZE lanes.
    @pl.when(pl.program_id(0) == 0)
    def _():
        xpad_ref[...] = jnp.zeros_like(xpad_ref)

    # In-kernel cast (f32 -> bf16 on the VPU) + feature pad: write the
    # (TB, 341) input tile into the first 341 lanes of the (TB, 384) scratch.
    # Padding lanes pair with zeroed w0 rows -> identical math.
    xpad_ref[:, :IN_SIZE] = x_ref[...].astype(bf16)

    # stem: FCNet(341 -> HIDDEN, relu); bf16 matmul, f32 accumulate,
    # f32 bias+relu, bf16 activation for the residual chain.
    h0 = jnp.maximum(
        jnp.dot(xpad_ref[...], w0_ref[...], preferred_element_type=f32)
        + b0_ref[...], 0.0).astype(bf16)

    # residual stack: x1_i = relu((h0 + prev) @ W_i + b_i); final x = sum of
    # all container entries (h0 plus every layer output). Chain kept in bf16.
    prev = h0
    acc = h0
    for i in range(NUM_LAYERS):       # static unroll (small, serial chain)
        z = jnp.dot(h0 + prev, wl_ref[i], preferred_element_type=f32) + bl_ref[i]
        cur = jnp.maximum(z, 0.0).astype(bf16)
        acc = acc + cur
        prev = cur

    # classifier: FCNet(HIDDEN -> 512, relu) -> FCNet(512 -> 4, no activation);
    # final weight zero-padded to 128 output lanes for a lane-dense f32 store.
    c1 = jnp.maximum(
        jnp.dot(acc, wc1_ref[...], preferred_element_type=f32)
        + bc1_ref[...], 0.0).astype(bf16)
    out_ref[...] = (jnp.dot(c1, wc2_ref[...], preferred_element_type=f32)
                    + bc2_ref[...])


def resdnn_forward(x, kparams, tb=TB):
    """x: (B, IN_SIZE) float32 -> (B, OUT) float32."""
    w0, b0, wl, bl, wc1, bc1, wc2, bc2 = kparams
    B = x.shape[0]
    Bp = ((B + tb - 1) // tb) * tb

    xp = x
    if Bp != B:
        xp = jnp.pad(x, ((0, Bp - B), (0, 0)))   # batch pad only, stays f32

    rep2 = lambda i: (0, 0)
    rep3 = lambda i: (0, 0, 0)
    out = pl.pallas_call(
        resdnn_kernel,
        out_shape=jax.ShapeDtypeStruct((Bp, OUT_PAD), jnp.float32),
        grid_spec=pltpu.PrefetchScalarGridSpec(
            num_scalar_prefetch=0,
            grid=(Bp // tb,),
            in_specs=[
                pl.BlockSpec((tb, IN_SIZE), lambda i: (i, 0)),       # x tile (f32, 341 == full last dim)
                pl.BlockSpec((IN_PAD, HIDDEN), rep2),                # stem weight (bf16, rows 341..383 zero)
                pl.BlockSpec((1, HIDDEN), rep2),                     # stem bias (f32)
                pl.BlockSpec((NUM_LAYERS, HIDDEN, HIDDEN), rep3),    # residual weights (bf16)
                pl.BlockSpec((NUM_LAYERS, 1, HIDDEN), rep3),         # residual biases (f32)
                pl.BlockSpec((HIDDEN, CLS_HID), rep2),               # classifier W1 (bf16)
                pl.BlockSpec((1, CLS_HID), rep2),                    # classifier b1 (f32)
                pl.BlockSpec((CLS_HID, OUT_PAD), rep2),              # classifier W2 (bf16, lane-padded)
                pl.BlockSpec((1, OUT_PAD), rep2),                    # classifier b2 (f32, lane-padded)
            ],
            out_specs=pl.BlockSpec((tb, OUT_PAD), lambda i: (i, 0)),
            scratch_shapes=[pltpu.VMEM((tb, IN_PAD), jnp.bfloat16)], # in-kernel padded x tile
        ),
        compiler_params=pltpu.CompilerParams(
            dimension_semantics=("parallel",)),
    )(xp, w0, b0, wl, bl, wc1, bc1, wc2, bc2)
    return out[:B, :OUT]


# ----------------------------------------------------------------------------
# Parameters & references
# ----------------------------------------------------------------------------

def make_params(key):
    """PyTorch-shaped f32 parameters."""
    ks = jax.random.split(key, 8)
    s = 0.05
    w0  = s * jax.random.normal(ks[0], (IN_SIZE, HIDDEN), jnp.float32)
    b0  = s * jax.random.normal(ks[1], (HIDDEN,), jnp.float32)
    wl  = s * jax.random.normal(ks[2], (NUM_LAYERS, HIDDEN, HIDDEN), jnp.float32)
    bl  = s * jax.random.normal(ks[3], (NUM_LAYERS, HIDDEN), jnp.float32)
    wc1 = s * jax.random.normal(ks[4], (HIDDEN, CLS_HID), jnp.float32)
    bc1 = s * jax.random.normal(ks[5], (CLS_HID,), jnp.float32)
    wc2 = s * jax.random.normal(ks[6], (CLS_HID, OUT), jnp.float32)
    bc2 = s * jax.random.normal(ks[7], (OUT,), jnp.float32)
    return (w0, b0, wl, bl, wc1, bc1, wc2, bc2)


def pack_params(raw):
    """Cast / pad params into the kernel layout: bf16 weights, f32 biases,
    stem weight row-padded to IN_PAD, classifier output lane-padded to OUT_PAD."""
    w0, b0, wl, bl, wc1, bc1, wc2, bc2 = raw
    bf16, f32 = jnp.bfloat16, jnp.float32
    w0k = jnp.zeros((IN_PAD, HIDDEN), bf16).at[:IN_SIZE].set(w0.astype(bf16))
    b0k = b0[None, :].astype(f32)
    wlk = wl.astype(bf16)
    blk = bl[:, None, :].astype(f32)
    wc1k = wc1.astype(bf16)
    bc1k = bc1[None, :].astype(f32)
    wc2k = jnp.zeros((CLS_HID, OUT_PAD), bf16).at[:, :OUT].set(wc2.astype(bf16))
    bc2k = jnp.zeros((1, OUT_PAD), f32).at[0, :OUT].set(bc2)
    return (w0k, b0k, wlk, blk, wc1k, bc1k, wc2k, bc2k)


def resdnn_ref_f32(x, raw):
    """Pure-f32 JAX reference mirroring the PyTorch forward."""
    w0, b0, wl, bl, wc1, bc1, wc2, bc2 = raw
    h0 = jax.nn.relu(x @ w0 + b0)
    container = [h0]
    for i in range(NUM_LAYERS):
        x1 = jax.nn.relu((h0 + container[-1]) @ wl[i] + bl[i])
        container.append(x1)
    s = sum(container)
    c1 = jax.nn.relu(s @ wc1 + bc1)
    return c1 @ wc2 + bc2


def resdnn_ref_mixed(x, raw):
    """JAX reference mirroring the kernel's mixed precision:
    bf16 matmul operands, f32 MXU accumulation + bias + relu,
    bf16 residual-chain activations and sums."""
    w0, b0, wl, bl, wc1, bc1, wc2, bc2 = raw
    bf16, f32 = jnp.bfloat16, jnp.float32
    mm = lambda a, w: jnp.dot(a.astype(bf16), w.astype(bf16),
                              preferred_element_type=f32)
    h0 = jax.nn.relu(mm(x, w0) + b0).astype(bf16)
    prev, acc = h0, h0
    for i in range(NUM_LAYERS):
        cur = jax.nn.relu(mm(h0 + prev, wl[i]) + bl[i]).astype(bf16)
        acc = acc + cur
        prev = cur
    c1 = jax.nn.relu(mm(acc, wc1) + bc1).astype(bf16)
    return mm(c1, wc2) + bc2


if __name__ == "__main__":
    key = jax.random.PRNGKey(0)
    pkey, xkey = jax.random.split(key)
    raw_params = make_params(pkey)
    kparams = pack_params(raw_params)
    x = jax.random.normal(xkey, (BATCH, IN_SIZE), jnp.float32)

    out = jax.block_until_ready(resdnn_forward(x, kparams))
    ref_mixed = jax.block_until_ready(resdnn_ref_mixed(x, raw_params))
    ref_f32 = jax.block_until_ready(resdnn_ref_f32(x, raw_params))

    assert out.shape == (BATCH, OUT), out.shape
    # Tight-ish check against a reference with identical mixed precision
    # (tolerance leaves room for MXU accumulation-order / bf16-rounding noise).
    assert jnp.allclose(out, ref_mixed, rtol=2e-2, atol=2e-2), \
        f"max err vs mixed ref {jnp.max(jnp.abs(out - ref_mixed))}"
    # Loose sanity check against full-f32 PyTorch-equivalent math
    # (bf16 weights/activations are an intentional accuracy tradeoff).
    assert jnp.allclose(out, ref_f32, rtol=2e-1, atol=2e-1), \
        f"max err vs f32 ref {jnp.max(jnp.abs(out - ref_f32))}"
    print("KERNEL_OK")
</pallas_src>

<mosaic_0001>
module attributes {stable_mosaic.version = 11 : i64} {
  func.func @resdnn_kernel(%arg0: i32, %arg1: memref<256x341xf32, #tpu.memory_space<vmem>>, %arg2: memref<384x256xbf16, #tpu.memory_space<vmem>>, %arg3: memref<1x256xf32, #tpu.memory_space<vmem>>, %arg4: memref<3x256x256xbf16, #tpu.memory_space<vmem>>, %arg5: memref<3x1x256xf32, #tpu.memory_space<vmem>>, %arg6: memref<256x512xbf16, #tpu.memory_space<vmem>>, %arg7: memref<1x512xf32, #tpu.memory_space<vmem>>, %arg8: memref<512x128xbf16, #tpu.memory_space<vmem>>, %arg9: memref<1x128xf32, #tpu.memory_space<vmem>>, %arg10: memref<256x128xf32, #tpu.memory_space<vmem>>, %arg11: memref<256x384xbf16, #tpu.memory_space<vmem>>) attributes {dimension_semantics = [#tpu.dimension_semantics<parallel>], iteration_bounds = array<i64: 1>, scalar_prefetch = 0 : i64, scratch_operands = 1 : i64, tpu.core_type = #tpu.core_type<tc>, window_params = [{transform_indices = @transform_0, window_bounds = array<i64: 256, 341>}, {pipeline_mode = #tpu.pipeline_mode<synchronous>, transform_indices = @transform_1, window_bounds = array<i64: 384, 256>}, {pipeline_mode = #tpu.pipeline_mode<synchronous>, transform_indices = @transform_2, window_bounds = array<i64: 1, 256>}, {pipeline_mode = #tpu.pipeline_mode<synchronous>, transform_indices = @transform_3, window_bounds = array<i64: 3, 256, 256>}, {pipeline_mode = #tpu.pipeline_mode<synchronous>, transform_indices = @transform_4, window_bounds = array<i64: 3, 1, 256>}, {pipeline_mode = #tpu.pipeline_mode<synchronous>, transform_indices = @transform_5, window_bounds = array<i64: 256, 512>}, {pipeline_mode = #tpu.pipeline_mode<synchronous>, transform_indices = @transform_6, window_bounds = array<i64: 1, 512>}, {pipeline_mode = #tpu.pipeline_mode<synchronous>, transform_indices = @transform_7, window_bounds = array<i64: 512, 128>}, {pipeline_mode = #tpu.pipeline_mode<synchronous>, transform_indices = @transform_8, window_bounds = array<i64: 1, 128>}, {transform_indices = @transform_9, window_bounds = array<i64: 256, 128>}]} {
    %c0_i32 = arith.constant 0 : i32
    %0 = arith.cmpi eq, %arg0, %c0_i32 : i32
    %1 = arith.extui %0 : i1 to i32
    %c0_i32_0 = arith.constant 0 : i32
    %2 = arith.cmpi ne, %1, %c0_i32_0 : i32
    scf.if %2 {
      %cst_46 = arith.constant 0.000000e+00 : bf16
      %65 = vector.broadcast %cst_46 : bf16 to vector<256x384xbf16>
      %c0_47 = arith.constant 0 : index
      %c0_48 = arith.constant 0 : index
      %66 = vector.load %arg11[%c0_47, %c0_48] : memref<256x384xbf16, #tpu.memory_space<vmem>>, vector<256x384xbf16>
      tpu.vector_store %arg11[%c0_47, %c0_48], %65 {strides = array<i32>} : memref<256x384xbf16, #tpu.memory_space<vmem>>, vector<256x384xbf16>,
    } else {
    }
    %c0 = arith.constant 0 : index
    %c0_1 = arith.constant 0 : index
    %3 = vector.load %arg1[%c0, %c0_1] : memref<256x341xf32, #tpu.memory_space<vmem>>, vector<256x341xf32>
    %4 = arith.truncf %3 : vector<256x341xf32> to vector<256x341xbf16>
    %c0_2 = arith.constant 0 : index
    %c0_3 = arith.constant 0 : index
    %5 = vector.load %arg11[%c0_2, %c0_3] : memref<256x384xbf16, #tpu.memory_space<vmem>>, vector<256x341xbf16>
    tpu.vector_store %arg11[%c0_2, %c0_3], %4 {strides = array<i32>} : memref<256x384xbf16, #tpu.memory_space<vmem>>, vector<256x341xbf16>,
    %c0_4 = arith.constant 0 : index
    %c0_5 = arith.constant 0 : index
    %6 = vector.load %arg11[%c0_4, %c0_5] : memref<256x384xbf16, #tpu.memory_space<vmem>>, vector<256x384xbf16>
    %c0_6 = arith.constant 0 : index
    %c0_7 = arith.constant 0 : index
    %7 = vector.load %arg2[%c0_6, %c0_7] : memref<384x256xbf16, #tpu.memory_space<vmem>>, vector<384x256xbf16>
    %cst = arith.constant dense<0.000000e+00> : vector<256x256xf32>
    %8 = tpu.matmul %6, %7, %cst {dimension_numbers = #tpu.dot_dimension_numbers<[1], [0], [0], [1], [0, 0, 1, 1], [], []>} : vector<256x384xbf16>, vector<384x256xbf16>, vector<256x256xf32> -> vector<256x256xf32>
    %c0_8 = arith.constant 0 : index
    %c0_9 = arith.constant 0 : index
    %9 = vector.load %arg3[%c0_8, %c0_9] : memref<1x256xf32, #tpu.memory_space<vmem>>, vector<1x256xf32>
    %10 = vector.broadcast %9 : vector<1x256xf32> to vector<256x256xf32>
    %11 = arith.addf %8, %10 : vector<256x256xf32>
    %cst_10 = arith.constant 0.000000e+00 : f32
    %12 = vector.broadcast %cst_10 : f32 to vector<256x256xf32>
    %13 = arith.maximumf %11, %12 : vector<256x256xf32>
    %14 = arith.truncf %13 : vector<256x256xf32> to vector<256x256xbf16>
    %15 = arith.addf %14, %14 : vector<256x256xbf16>
    %c0_11 = arith.constant 0 : index
    %c0_12 = arith.constant 0 : index
    %c0_13 = arith.constant 0 : index
    %16 = vector.load %arg4[%c0_11, %c0_12, %c0_13] : memref<3x256x256xbf16, #tpu.memory_space<vmem>>, vector<1x256x256xbf16>
    %17 = vector.shape_cast %16 : vector<1x256x256xbf16> to vector<256x256xbf16>
    %cst_14 = arith.constant dense<0.000000e+00> : vector<256x256xf32>
    %18 = tpu.matmul %15, %17, %cst_14 {dimension_numbers = #tpu.dot_dimension_numbers<[1], [0], [0], [1], [0, 0, 1, 1], [], []>} : vector<256x256xbf16>, vector<256x256xbf16>, vector<256x256xf32> -> vector<256x256xf32>
    %c0_15 = arith.constant 0 : index
    %c0_16 = arith.constant 0 : index
    %c0_17 = arith.constant 0 : index
    %19 = vector.load %arg5[%c0_15, %c0_16, %c0_17] : memref<3x1x256xf32, #tpu.memory_space<vmem>>, vector<1x1x256xf32>
    %20 = vector.shape_cast %19 : vector<1x1x256xf32> to vector<1x256xf32>
    %21 = vector.broadcast %20 : vector<1x256xf32> to vector<256x256xf32>
    %22 = arith.addf %18, %21 : vector<256x256xf32>
    %cst_18 = arith.constant 0.000000e+00 : f32
    %23 = vector.broadcast %cst_18 : f32 to vector<256x256xf32>
    %24 = arith.maximumf %22, %23 : vector<256x256xf32>
    %25 = arith.truncf %24 : vector<256x256xf32> to vector<256x256xbf16>
    %26 = arith.addf %14, %25 : vector<256x256xbf16>
    %27 = arith.addf %14, %25 : vector<256x256xbf16>
    %c1 = arith.constant 1 : index
    %c0_19 = arith.constant 0 : index
    %c0_20 = arith.constant 0 : index
    %28 = vector.load %arg4[%c1, %c0_19, %c0_20] : memref<3x256x256xbf16, #tpu.memory_space<vmem>>, vector<1x256x256xbf16>
    %29 = vector.shape_cast %28 : vector<1x256x256xbf16> to vector<256x256xbf16>
    %cst_21 = arith.constant dense<0.000000e+00> : vector<256x256xf32>
    %30 = tpu.matmul %27, %29, %cst_21 {dimension_numbers = #tpu.dot_dimension_numbers<[1], [0], [0], [1], [0, 0, 1, 1], [], []>} : vector<256x256xbf16>, vector<256x256xbf16>, vector<256x256xf32> -> vector<256x256xf32>
    %c1_22 = arith.constant 1 : index
    %c0_23 = arith.constant 0 : index
    %c0_24 = arith.constant 0 : index
    %31 = vector.load %arg5[%c1_22, %c0_23, %c0_24] : memref<3x1x256xf32, #tpu.memory_space<vmem>>, vector<1x1x256xf32>
    %32 = vector.shape_cast %31 : vector<1x1x256xf32> to vector<1x256xf32>
    %33 = vector.broadcast %32 : vector<1x256xf32> to vector<256x256xf32>
    %34 = arith.addf %30, %33 : vector<256x256xf32>
    %cst_25 = arith.constant 0.000000e+00 : f32
    %35 = vector.broadcast %cst_25 : f32 to vector<256x256xf32>
    %36 = arith.maximumf %34, %35 : vector<256x256xf32>
    %37 = arith.truncf %36 : vector<256x256xf32> to vector<256x256xbf16>
    %38 = arith.addf %26, %37 : vector<256x256xbf16>
    %39 = arith.addf %14, %37 : vector<256x256xbf16>
    %c2 = arith.constant 2 : index
    %c0_26 = arith.constant 0 : index
    %c0_27 = arith.constant 0 : index
    %40 = vector.load %arg4[%c2, %c0_26, %c0_27] : memref<3x256x256xbf16, #tpu.memory_space<vmem>>, vector<1x256x256xbf16>
    %41 = vector.shape_cast %40 : vector<1x256x256xbf16> to vector<256x256xbf16>
    %cst_28 = arith.constant dense<0.000000e+00> : vector<256x256xf32>
    %42 = tpu.matmul %39, %41, %cst_28 {dimension_numbers = #tpu.dot_dimension_numbers<[1], [0], [0], [1], [0, 0, 1, 1], [], []>} : vector<256x256xbf16>, vector<256x256xbf16>, vector<256x256xf32> -> vector<256x256xf32>
    %c2_29 = arith.constant 2 : index
    %c0_30 = arith.constant 0 : index
    %c0_31 = arith.constant 0 : index
    %43 = vector.load %arg5[%c2_29, %c0_30, %c0_31] : memref<3x1x256xf32, #tpu.memory_space<vmem>>, vector<1x1x256xf32>
    %44 = vector.shape_cast %43 : vector<1x1x256xf32> to vector<1x256xf32>
    %45 = vector.broadcast %44 : vector<1x256xf32> to vector<256x256xf32>
    %46 = arith.addf %42, %45 : vector<256x256xf32>
    %cst_32 = arith.constant 0.000000e+00 : f32
    %47 = vector.broadcast %cst_32 : f32 to vector<256x256xf32>
    %48 = arith.maximumf %46, %47 : vector<256x256xf32>
    %49 = arith.truncf %48 : vector<256x256xf32> to vector<256x256xbf16>
    %50 = arith.addf %38, %49 : vector<256x256xbf16>
    %c0_33 = arith.constant 0 : index
    %c0_34 = arith.constant 0 : index
    %51 = vector.load %arg6[%c0_33, %c0_34] : memref<256x512xbf16, #tpu.memory_space<vmem>>, vector<256x512xbf16>
    %cst_35 = arith.constant dense<0.000000e+00> : vector<256x512xf32>
    %52 = tpu.matmul %50, %51, %cst_35 {dimension_numbers = #tpu.dot_dimension_numbers<[1], [0], [0], [1], [0, 0, 1, 1], [], []>} : vector<256x256xbf16>, vector<256x512xbf16>, vector<256x512xf32> -> vector<256x512xf32>
    %c0_36 = arith.constant 0 : index
    %c0_37 = arith.constant 0 : index
    %53 = vector.load %arg7[%c0_36, %c0_37] : memref<1x512xf32, #tpu.memory_space<vmem>>, vector<1x512xf32>
    %54 = vector.broadcast %53 : vector<1x512xf32> to vector<256x512xf32>
    %55 = arith.addf %52, %54 : vector<256x512xf32>
    %cst_38 = arith.constant 0.000000e+00 : f32
    %56 = vector.broadcast %cst_38 : f32 to vector<256x512xf32>
    %57 = arith.maximumf %55, %56 : vector<256x512xf32>
    %58 = arith.truncf %57 : vector<256x512xf32> to vector<256x512xbf16>
    %c0_39 = arith.constant 0 : index
    %c0_40 = arith.constant 0 : index
    %59 = vector.load %arg8[%c0_39, %c0_40] : memref<512x128xbf16, #tpu.memory_space<vmem>>, vector<512x128xbf16>
    %cst_41 = arith.constant dense<0.000000e+00> : vector<256x128xf32>
    %60 = tpu.matmul %58, %59, %cst_41 {dimension_numbers = #tpu.dot_dimension_numbers<[1], [0], [0], [1], [0, 0, 1, 1], [], []>} : vector<256x512xbf16>, vector<512x128xbf16>, vector<256x128xf32> -> vector<256x128xf32>
    %c0_42 = arith.constant 0 : index
    %c0_43 = arith.constant 0 : index
    %61 = vector.load %arg9[%c0_42, %c0_43] : memref<1x128xf32, #tpu.memory_space<vmem>>, vector<1x128xf32>
    %62 = vector.broadcast %61 : vector<1x128xf32> to vector<256x128xf32>
    %63 = arith.addf %60, %62 : vector<256x128xf32>
    %c0_44 = arith.constant 0 : index
    %c0_45 = arith.constant 0 : index
    %64 = vector.load %arg10[%c0_44, %c0_45] : memref<256x128xf32, #tpu.memory_space<vmem>>, vector<256x128xf32>
    tpu.vector_store %arg10[%c0_44, %c0_45], %63 {strides = array<i32>} : memref<256x128xf32, #tpu.memory_space<vmem>>, vector<256x128xf32>,
    return
  }
  func.func @transform_0(%arg0: i32) -> (i32, i32) {
    %c0_i32 = arith.constant 0 : i32
    %c0_i32_0 = arith.constant 0 : i32
    return %arg0, %c0_i32 : i32, i32
  }
  func.func @transform_1(%arg0: i32) -> (i32, i32) {
    %c0_i32 = arith.constant 0 : i32
    %c0_i32_0 = arith.constant 0 : i32
    %c0_i32_1 = arith.constant 0 : i32
    return %c0_i32, %c0_i32_0 : i32, i32
  }
  func.func @transform_2(%arg0: i32) -> (i32, i32) {
    %c0_i32 = arith.constant 0 : i32
    %c0_i32_0 = arith.constant 0 : i32
    %c0_i32_1 = arith.constant 0 : i32
    return %c0_i32, %c0_i32_0 : i32, i32
  }
  func.func @transform_3(%arg0: i32) -> (i32, i32, i32) {
    %c0_i32 = arith.constant 0 : i32
    %c0_i32_0 = arith.constant 0 : i32
    %c0_i32_1 = arith.constant 0 : i32
    %c0_i32_2 = arith.constant 0 : i32
    return %c0_i32, %c0_i32_0, %c0_i32_1 : i32, i32, i32
  }
  func.func @transform_4(%arg0: i32) -> (i32, i32, i32) {
    %c0_i32 = arith.constant 0 : i32
    %c0_i32_0 = arith.constant 0 : i32
    %c0_i32_1 = arith.constant 0 : i32
    %c0_i32_2 = arith.constant 0 : i32
    return %c0_i32, %c0_i32_0, %c0_i32_1 : i32, i32, i32
  }
  func.func @transform_5(%arg0: i32) -> (i32, i32) {
    %c0_i32 = arith.constant 0 : i32
    %c0_i32_0 = arith.constant 0 : i32
    %c0_i32_1 = arith.constant 0 : i32
    return %c0_i32, %c0_i32_0 : i32, i32
  }
  func.func @transform_6(%arg0: i32) -> (i32, i32) {
    %c0_i32 = arith.constant 0 : i32
    %c0_i32_0 = arith.constant 0 : i32
    %c0_i32_1 = arith.constant 0 : i32
    return %c0_i32, %c0_i32_0 : i32, i32
  }
  func.func @transform_7(%arg0: i32) -> (i32, i32) {
    %c0_i32 = arith.constant 0 : i32
    %c0_i32_0 = arith.constant 0 : i32
    %c0_i32_1 = arith.constant 0 : i32
    return %c0_i32, %c0_i32_0 : i32, i32
  }
  func.func @transform_8(%arg0: i32) -> (i32, i32) {
    %c0_i32 = arith.constant 0 : i32
    %c0_i32_0 = arith.constant 0 : i32
    %c0_i32_1 = arith.constant 0 : i32
    return %c0_i32, %c0_i32_0 : i32, i32
  }
  func.func @transform_9(%arg0: i32) -> (i32, i32) {
    %c0_i32 = arith.constant 0 : i32
    %c0_i32_0 = arith.constant 0 : i32
    return %arg0, %c0_i32 : i32, i32
  }
}

</mosaic_0001>

<llo_original>
// kernel: tpu_custom_call.1
$region0: #{tpu_custom_call.1}
  #allocation0 [shape = 'u32[]', space=smem, size = 0x4, offset = 0x4, fixed_abs, tag = 'smem constant byte address 0x4 - core index']
  #allocation1 [shape = 'u32[72,128]{1,0:T(1,128)}', space=vmem, size = 0x9000, scoped, tag = 'internal scratch']
  #allocation2 [shape = 'bf16[256,384]{1,0:T(8,128)(2,1)}', space=vmem, size = 0x30000, scoped, tag = 'scratch operand']
  %s0 = inlined_call_operand.vmem [shape: f32[256,341], index: 0, kind: input, shape index: {}]
  %s1 = inlined_call_operand.hbm [shape: bf16[384,256], index: 1, kind: input, shape index: {}]
  %s2 = inlined_call_operand.vmem [shape: f32[1,256], index: 2, kind: input, shape index: {}]
  %s3 = inlined_call_operand.vmem [shape: bf16[3,256,256], index: 3, kind: input, shape index: {}]
  %s4 = inlined_call_operand.vmem [shape: f32[3,1,256], index: 4, kind: input, shape index: {}]
  %s5 = inlined_call_operand.vmem [shape: bf16[256,512], index: 5, kind: input, shape index: {}]
  %s6 = inlined_call_operand.vmem [shape: f32[1,512], index: 6, kind: input, shape index: {}]
  %s7 = inlined_call_operand.hbm [shape: bf16[512,128], index: 7, kind: input, shape index: {}]
  %s8 = inlined_call_operand.vmem [shape: f32[1,128], index: 8, kind: input, shape index: {}]
  %s9 = inlined_call_operand.hbm [shape: f32[256,128], index: 9, kind: output, shape index: {}]
  %s10 = sld [smem:[#allocation0]]
  $region58: #{tpu_custom_call.1} parent=0
    _
  %s12 = ssub.s32 1, %s10
  %s13 = scalar_select 0, %s12, %s10
  $region1: #{tpu_custom_call.1} parent=0
    #allocation3 [shape = 'u8[196608]{0}', space=vmem, size = 0x30000, scoped, tag = 'input window, operand 1, single buffered']
    #allocation4 [shape = 's32[1]{0}', space=sflag, size = 0x4, scoped, tag = 'scoped memory for tpu_custom_call.1']
    #allocation5 [shape = 's32[1]{0}', space=sflag, size = 0x4, scoped, tag = 'scoped memory for tpu_custom_call.1']
    #allocation6 [shape = 'u8[131072]{0}', space=vmem, size = 0x20000, scoped, tag = 'input window, operand 7, single buffered']
    #allocation7 [shape = 's32[1]{0}', space=sflag, size = 0x4, scoped, tag = 'scoped memory for tpu_custom_call.1']
    #allocation8 [shape = 'u8[131072]{0}', space=vmem, size = 0x20000, scoped, tag = 'output window, operand 0, single buffered']
    %14 = vsyncpa [#allocation4], 0
    %15 = vsyncpa [#allocation7], 0
    %16 = vsyncpa [#allocation5], 0
    // Predicated region
    $region2: #{tpu_custom_call.1} parent=1 // pred_check
      _
    $region3: #{tpu_custom_call.1} parent=1 // pred_check_branch
      %18 = sbr.rel (0) target = $region5
    $region4: #{tpu_custom_call.1} parent=1 // pred_region
      _
    $region5: #{tpu_custom_call.1} parent=1 // pred_fallthru
      _
    // Predicated region
    $region6: #{tpu_custom_call.1} parent=1 // pred_check
      _
    $region7: #{tpu_custom_call.1} parent=1 // pred_check_branch
      %20 = sbr.rel (0) target = $region9
    $region8: #{tpu_custom_call.1} parent=1 // pred_region
      %22 = vsyncadd [#allocation4], 0
      %s23 = sshll.u32 %s1, 4
      %s24 = int_to_ptr.hbm [resolvable:$true] %s23
      %s25 = sshll.u32 [#allocation3], 4
      %s26 = int_to_ptr.vmem [resolvable:$true] %s25
      %31 = dma.hbm_to_vmem [thread:$0]  %s24, 6144, %s26, [#allocation4], 128, 128, 8
    $region9: #{tpu_custom_call.1} parent=1 // pred_fallthru
      _
    // Predicated region
    $region10: #{tpu_custom_call.1} parent=1 // pred_check
      _
    $region11: #{tpu_custom_call.1} parent=1 // pred_check_branch
      %33 = sbr.rel (0) target = $region13
    $region12: #{tpu_custom_call.1} parent=1 // pred_region
      _
    $region13: #{tpu_custom_call.1} parent=1 // pred_fallthru
      _
    // Predicated region
    $region14: #{tpu_custom_call.1} parent=1 // pred_check
      _
    $region15: #{tpu_custom_call.1} parent=1 // pred_check_branch
      %35 = sbr.rel (0) target = $region17
    $region16: #{tpu_custom_call.1} parent=1 // pred_region
      _
    $region17: #{tpu_custom_call.1} parent=1 // pred_fallthru
      _
    // Predicated region
    $region18: #{tpu_custom_call.1} parent=1 // pred_check
      _
    $region19: #{tpu_custom_call.1} parent=1 // pred_check_branch
      %37 = sbr.rel (0) target = $region21
    $region20: #{tpu_custom_call.1} parent=1 // pred_region
      _
    $region21: #{tpu_custom_call.1} parent=1 // pred_fallthru
      _
    // Predicated region
    $region22: #{tpu_custom_call.1} parent=1 // pred_check
      _
    $region23: #{tpu_custom_call.1} parent=1 // pred_check_branch
      %39 = sbr.rel (0) target = $region25
    $region24: #{tpu_custom_call.1} parent=1 // pred_region
      _
    $region25: #{tpu_custom_call.1} parent=1 // pred_fallthru
      _
    // Predicated region
    $region26: #{tpu_custom_call.1} parent=1 // pred_check
      _
    $region27: #{tpu_custom_call.1} parent=1 // pred_check_branch
      %41 = sbr.rel (0) target = $region29
    $region28: #{tpu_custom_call.1} parent=1 // pred_region
      _
    $region29: #{tpu_custom_call.1} parent=1 // pred_fallthru
      _
    // Predicated region
    $region30: #{tpu_custom_call.1} parent=1 // pred_check
      _
    $region31: #{tpu_custom_call.1} parent=1 // pred_check_branch
      %43 = sbr.rel (0) target = $region33
    $region32: #{tpu_custom_call.1} parent=1 // pred_region
      %45 = vsyncadd [#allocation7], 0
      %s46 = sshll.u32 %s7, 4
      %s47 = int_to_ptr.hbm [resolvable:$true] %s46
      %s48 = sshll.u32 [#allocation6], 4
      %s49 = int_to_ptr.vmem [resolvable:$true] %s48
      %54 = dma.hbm_to_vmem [thread:$0]  %s47, 4096, %s49, [#allocation7], 64, 64, 4
    $region33: #{tpu_custom_call.1} parent=1 // pred_fallthru
      _
    // Predicated region
    $region34: #{tpu_custom_call.1} parent=1 // pred_check
      _
    $region35: #{tpu_custom_call.1} parent=1 // pred_check_branch
      %56 = sbr.rel (0) target = $region37
    $region36: #{tpu_custom_call.1} parent=1 // pred_region
      _
    $region37: #{tpu_custom_call.1} parent=1 // pred_fallthru
      _
    // Predicated region
    $region38: #{tpu_custom_call.1} parent=1 // pred_check
      _
    $region39: #{tpu_custom_call.1} parent=1 // pred_check_branch
      %58 = sbr.rel (0) target = $region41
    $region40: #{tpu_custom_call.1} parent=1 // pred_region
      %60 = dma.done [#allocation4], 6144
    $region41: #{tpu_custom_call.1} parent=1 // pred_fallthru
      _
    // Predicated region
    $region42: #{tpu_custom_call.1} parent=1 // pred_check
      _
    $region43: #{tpu_custom_call.1} parent=1 // pred_check_branch
      %62 = sbr.rel (0) target = $region45
    $region44: #{tpu_custom_call.1} parent=1 // pred_region
      %64 = dma.done [#allocation7], 4096
    $region45: #{tpu_custom_call.1} parent=1 // pred_fallthru
      _
    %p66 = scmp.eq.s32.totalorder 0, 0
    // Predicated region
    $region46: #{tpu_custom_call.1} parent=1 // pred_check
      %p67 = pneg %p66
    $region47: #{tpu_custom_call.1} parent=1 // pred_check_branch
      %69 = sbr.rel (%p67) target = $region49
    $region48: #{tpu_custom_call.1} parent=1 // pred_region
      %70 = vst [vmem:[#allocation2] sm:$0xff] 0
      %71 = vst [vmem:[#allocation2 + $0x8] sm:$0xf] 0
      %72 = vst [vmem:[#allocation2 + $0xc] sm:$0xff] 0
      %73 = vst [vmem:[#allocation2 + $0x14] sm:$0xf] 0
      %74 = vst [vmem:[#allocation2 + $0x18] sm:$0xff] 0
      %75 = vst [vmem:[#allocation2 + $0x20] sm:$0xf] 0
      %76 = vst [vmem:[#allocation2 + $0x24] sm:$0xff] 0
      %77 = vst [vmem:[#allocation2 + $0x2c] sm:$0xf] 0
      %78 = vst [vmem:[#allocation2 + $0x30] sm:$0xff] 0
      %79 = vst [vmem:[#allocation2 + $0x38] sm:$0xf] 0
      %80 = vst [vmem:[#allocation2 + $0x3c] sm:$0xff] 0
      %81 = vst [vmem:[#allocation2 + $0x44] sm:$0xf] 0
      %82 = vst [vmem:[#allocation2 + $0x48] sm:$0xff] 0
      %83 = vst [vmem:[#allocation2 + $0x50] sm:$0xf] 0
      %84 = vst [vmem:[#allocation2 + $0x54] sm:$0xff] 0
      %85 = vst [vmem:[#allocation2 + $0x5c] sm:$0xf] 0
      %86 = vst [vmem:[#allocation2 + $0x60] sm:$0xff] 0
      %87 = vst [vmem:[#allocation2 + $0x68] sm:$0xf] 0
      %88 = vst [vmem:[#allocation2 + $0x6c] sm:$0xff] 0
      %89 = vst [vmem:[#allocation2 + $0x74] sm:$0xf] 0
      %90 = vst [vmem:[#allocation2 + $0x78] sm:$0xff] 0
      %91 = vst [vmem:[#allocation2 + $0x80] sm:$0xf] 0
      %92 = vst [vmem:[#allocation2 + $0x84] sm:$0xff] 0
      %93 = vst [vmem:[#allocation2 + $0x8c] sm:$0xf] 0
      %94 = vst [vmem:[#allocation2 + $0x90] sm:$0xff] 0
      %95 = vst [vmem:[#allocation2 + $0x98] sm:$0xf] 0
      %96 = vst [vmem:[#allocation2 + $0x9c] sm:$0xff] 0
      %97 = vst [vmem:[#allocation2 + $0xa4] sm:$0xf] 0
      %98 = vst [vmem:[#allocation2 + $0xa8] sm:$0xff] 0
      %99 = vst [vmem:[#allocation2 + $0xb0] sm:$0xf] 0
      %100 = vst [vmem:[#allocation2 + $0xb4] sm:$0xff] 0
      %101 = vst [vmem:[#allocation2 + $0xbc] sm:$0xf] 0
      %102 = vst [vmem:[#allocation2 + $0xc0] sm:$0xff] 0
      %103 = vst [vmem:[#allocation2 + $0xc8] sm:$0xf] 0
      %104 = vst [vmem:[#allocation2 + $0xcc] sm:$0xff] 0
      %105 = vst [vmem:[#allocation2 + $0xd4] sm:$0xf] 0
      %106 = vst [vmem:[#allocation2 + $0xd8] sm:$0xff] 0
      %107 = vst [vmem:[#allocation2 + $0xe0] sm:$0xf] 0
      %108 = vst [vmem:[#allocation2 + $0xe4] sm:$0xff] 0
      %109 = vst [vmem:[#allocation2 + $0xec] sm:$0xf] 0
      %110 = vst [vmem:[#allocation2 + $0xf0] sm:$0xff] 0
      %111 = vst [vmem:[#allocation2 + $0xf8] sm:$0xf] 0
      %112 = vst [vmem:[#allocation2 + $0xfc] sm:$0xff] 0
      %113 = vst [vmem:[#allocation2 + $0x104] sm:$0xf] 0
      %114 = vst [vmem:[#allocation2 + $0x108] sm:$0xff] 0
      %115 = vst [vmem:[#allocation2 + $0x110] sm:$0xf] 0
      %116 = vst [vmem:[#allocation2 + $0x114] sm:$0xff] 0
      %117 = vst [vmem:[#allocation2 + $0x11c] sm:$0xf] 0
      %118 = vst [vmem:[#allocation2 + $0x120] sm:$0xff] 0
      %119 = vst [vmem:[#allocation2 + $0x128] sm:$0xf] 0
      %120 = vst [vmem:[#allocation2 + $0x12c] sm:$0xff] 0
      %121 = vst [vmem:[#allocation2 + $0x134] sm:$0xf] 0
      %122 = vst [vmem:[#allocation2 + $0x138] sm:$0xff] 0
      %123 = vst [vmem:[#allocation2 + $0x140] sm:$0xf] 0
      %124 = vst [vmem:[#allocation2 + $0x144] sm:$0xff] 0
      %125 = vst [vmem:[#allocation2 + $0x14c] sm:$0xf] 0
      %126 = vst [vmem:[#allocation2 + $0x150] sm:$0xff] 0
      %127 = vst [vmem:[#allocation2 + $0x158] sm:$0xf] 0
      %128 = vst [vmem:[#allocation2 + $0x15c] sm:$0xff] 0
      %129 = vst [vmem:[#allocation2 + $0x164] sm:$0xf] 0
      %130 = vst [vmem:[#allocation2 + $0x168] sm:$0xff] 0
      %131 = vst [vmem:[#allocation2 + $0x170] sm:$0xf] 0
      %132 = vst [vmem:[#allocation2 + $0x174] sm:$0xff] 0
      %133 = vst [vmem:[#allocation2 + $0x17c] sm:$0xf] 0
    $region49: #{tpu_custom_call.1} parent=1 // pred_fallthru
      _
    %v134 = vld [vmem:[%s0] sm:$0xff]
    %v135 = vld [vmem:[%s0 + $0x8] sm:$0xff]
    %v136 = vld [vmem:[%s0 + $0x10] sm:$0xff]
    %v137 = vld [vmem:[%s0 + $0x18] sm:$0xff]
    %v138 = vld [vmem:[%s0 + $0x20] sm:$0xff]
    %v139 = vld [vmem:[%s0 + $0x28] sm:$0xff]
    %v140 = vld [vmem:[%s0 + $0x30] sm:$0xff]
    %v141 = vld [vmem:[%s0 + $0x38] sm:$0xff]
    %v142 = vld [vmem:[%s0 + $0x40] sm:$0xff]
    %v143 = vld [vmem:[%s0 + $0x48] sm:$0xff]
    %v144 = vld [vmem:[%s0 + $0x50] sm:$0xff]
    %v145 = vld [vmem:[%s0 + $0x58] sm:$0xff]
    %v146 = vld [vmem:[%s0 + $0x60] sm:$0xff]
    %v147 = vld [vmem:[%s0 + $0x68] sm:$0xff]
    %v148 = vld [vmem:[%s0 + $0x70] sm:$0xff]
    %v149 = vld [vmem:[%s0 + $0x78] sm:$0xff]
    %v150 = vld [vmem:[%s0 + $0x80] sm:$0xff]
    %v151 = vld [vmem:[%s0 + $0x88] sm:$0xff]
    %v152 = vld [vmem:[%s0 + $0x90] sm:$0xff]
    %v153 = vld [vmem:[%s0 + $0x98] sm:$0xff]
    %v154 = vld [vmem:[%s0 + $0xa0] sm:$0xff]
    %v155 = vld [vmem:[%s0 + $0xa8] sm:$0xff]
    %v156 = vld [vmem:[%s0 + $0xb0] sm:$0xff]
    %v157 = vld [vmem:[%s0 + $0xb8] sm:$0xff]
    %v158 = vld [vmem:[%s0 + $0xc0] sm:$0xff]
    %v159 = vld [vmem:[%s0 + $0xc8] sm:$0xff]
    %v160 = vld [vmem:[%s0 + $0xd0] sm:$0xff]
    %v161 = vld [vmem:[%s0 + $0xd8] sm:$0xff]
    %v162 = vld [vmem:[%s0 + $0xe0] sm:$0xff]
    %v163 = vld [vmem:[%s0 + $0xe8] sm:$0xff]
    %v164 = vld [vmem:[%s0 + $0xf0] sm:$0xff]
    %v165 = vld [vmem:[%s0 + $0xf8] sm:$0xff]
    %v166 = vld [vmem:[%s0 + $0x100] sm:$0xff]
    %v167 = vld [vmem:[%s0 + $0x108] sm:$0xff]
    %v168 = vld [vmem:[%s0 + $0x110] sm:$0xff]
    %v169 = vld [vmem:[%s0 + $0x118] sm:$0xff]
    %v170 = vld [vmem:[%s0 + $0x120] sm:$0xff]
    %v171 = vld [vmem:[%s0 + $0x128] sm:$0xff]
    %v172 = vld [vmem:[%s0 + $0x130] sm:$0xff]
    %v173 = vld [vmem:[%s0 + $0x138] sm:$0xff]
    %v174 = vld [vmem:[%s0 + $0x140] sm:$0xff]
    %v175 = vld [vmem:[%s0 + $0x148] sm:$0xff]
    %v176 = vld [vmem:[%s0 + $0x150] sm:$0xff]
    %v177 = vld [vmem:[%s0 + $0x158] sm:$0xff]
    %v178 = vld [vmem:[%s0 + $0x160] sm:$0xff]
    %v179 = vld [vmem:[%s0 + $0x168] sm:$0xff]
    %v180 = vld [vmem:[%s0 + $0x170] sm:$0xff]
    %v181 = vld [vmem:[%s0 + $0x178] sm:$0xff]
    %v182 = vld [vmem:[%s0 + $0x180] sm:$0xff]
    %v183 = vld [vmem:[%s0 + $0x188] sm:$0xff]
    %v184 = vld [vmem:[%s0 + $0x190] sm:$0xff]
    %v185 = vld [vmem:[%s0 + $0x198] sm:$0xff]
    %v186 = vld [vmem:[%s0 + $0x1a0] sm:$0xff]
    %v187 = vld [vmem:[%s0 + $0x1a8] sm:$0xff]
    %v188 = vld [vmem:[%s0 + $0x1b0] sm:$0xff]
    %v189 = vld [vmem:[%s0 + $0x1b8] sm:$0xff]
    %v190 = vld [vmem:[%s0 + $0x1c0] sm:$0xff]
    %v191 = vld [vmem:[%s0 + $0x1c8] sm:$0xff]
    %v192 = vld [vmem:[%s0 + $0x1d0] sm:$0xff]
    %v193 = vld [vmem:[%s0 + $0x1d8] sm:$0xff]
    %v194 = vld [vmem:[%s0 + $0x1e0] sm:$0xff]
    %v195 = vld [vmem:[%s0 + $0x1e8] sm:$0xff]
    %v196 = vld [vmem:[%s0 + $0x1f0] sm:$0xff]
    %v197 = vld [vmem:[%s0 + $0x1f8] sm:$0xff]
    %v198 = vld [vmem:[%s0 + $0x200] sm:$0xff]
    %v199 = vld [vmem:[%s0 + $0x208] sm:$0xff]
    %v200 = vld [vmem:[%s0 + $0x210] sm:$0xff]
    %v201 = vld [vmem:[%s0 + $0x218] sm:$0xff]
    %v202 = vld [vmem:[%s0 + $0x220] sm:$0xff]
    %v203 = vld [vmem:[%s0 + $0x228] sm:$0xff]
    %v204 = vld [vmem:[%s0 + $0x230] sm:$0xff]
    %v205 = vld [vmem:[%s0 + $0x238] sm:$0xff]
    %v206 = vld [vmem:[%s0 + $0x240] sm:$0xff]
    %v207 = vld [vmem:[%s0 + $0x248] sm:$0xff]
    %v208 = vld [vmem:[%s0 + $0x250] sm:$0xff]
    %v209 = vld [vmem:[%s0 + $0x258] sm:$0xff]
    %v210 = vld [vmem:[%s0 + $0x260] sm:$0xff]
    %v211 = vld [vmem:[%s0 + $0x268] sm:$0xff]
    %v212 = vld [vmem:[%s0 + $0x270] sm:$0xff]
    %v213 = vld [vmem:[%s0 + $0x278] sm:$0xff]
    %v214 = vld [vmem:[%s0 + $0x280] sm:$0xff]
    %v215 = vld [vmem:[%s0 + $0x288] sm:$0xff]
    %v216 = vld [vmem:[%s0 + $0x290] sm:$0xff]
    %v217 = vld [vmem:[%s0 + $0x298] sm:$0xff]
    %v218 = vld [vmem:[%s0 + $0x2a0] sm:$0xff]
    %v219 = vld [vmem:[%s0 + $0x2a8] sm:$0xff]
    %v220 = vld [vmem:[%s0 + $0x2b0] sm:$0xff]
    %v221 = vld [vmem:[%s0 + $0x2b8] sm:$0xff]
    %v222 = vld [vmem:[%s0 + $0x2c0] sm:$0xff]
    %v223 = vld [vmem:[%s0 + $0x2c8] sm:$0xff]
    %v224 = vld [vmem:[%s0 + $0x2d0] sm:$0xff]
    %v225 = vld [vmem:[%s0 + $0x2d8] sm:$0xff]
    %v226 = vld [vmem:[%s0 + $0x2e0] sm:$0xff]
    %v227 = vld [vmem:[%s0 + $0x2e8] sm:$0xff]
    %v228 = vld [vmem:[%s0 + $0x2f0] sm:$0xff]
    %v229 = vld [vmem:[%s0 + $0x2f8] sm:$0xff]
    %v230 = vpack.c.bf16 %v135, %v134
    %v231 = vpack.c.bf16 %v136, %v136
    %v232 = vpack.c.bf16 %v138, %v137
    %v233 = vpack.c.bf16 %v139, %v139
    %v234 = vpack.c.bf16 %v141, %v140
    %v235 = vpack.c.bf16 %v142, %v142
    %v236 = vpack.c.bf16 %v144, %v143
    %v237 = vpack.c.bf16 %v145, %v145
    %v238 = vpack.c.bf16 %v147, %v146
    %v239 = vpack.c.bf16 %v148, %v148
    %v240 = vpack.c.bf16 %v150, %v149
    %v241 = vpack.c.bf16 %v151, %v151
    %v242 = vpack.c.bf16 %v153, %v152
    %v243 = vpack.c.bf16 %v154, %v154
    %v244 = vpack.c.bf16 %v156, %v155
    %v245 = vpack.c.bf16 %v157, %v157
    %v246 = vpack.c.bf16 %v159, %v158
    %v247 = vpack.c.bf16 %v160, %v160
    %v248 = vpack.c.bf16 %v162, %v161
    %v249 = vpack.c.bf16 %v163, %v163
    %v250 = vpack.c.bf16 %v165, %v164
    %v251 = vpack.c.bf16 %v166, %v166
    %v252 = vpack.c.bf16 %v168, %v167
    %v253 = vpack.c.bf16 %v169, %v169
    %v254 = vpack.c.bf16 %v171, %v170
    %v255 = vpack.c.bf16 %v172, %v172
    %v256 = vpack.c.bf16 %v174, %v173
    %v257 = vpack.c.bf16 %v175, %v175
    %v258 = vpack.c.bf16 %v177, %v176
    %v259 = vpack.c.bf16 %v178, %v178
    %v260 = vpack.c.bf16 %v180, %v179
    %v261 = vpack.c.bf16 %v181, %v181
    %v262 = vpack.c.bf16 %v183, %v182
    %v263 = vpack.c.bf16 %v184, %v184
    %v264 = vpack.c.bf16 %v186, %v185
    %v265 = vpack.c.bf16 %v187, %v187
    %v266 = vpack.c.bf16 %v189, %v188
    %v267 = vpack.c.bf16 %v190, %v190
    %v268 = vpack.c.bf16 %v192, %v191
    %v269 = vpack.c.bf16 %v193, %v193
    %v270 = vpack.c.bf16 %v195, %v194
    %v271 = vpack.c.bf16 %v196, %v196
    %v272 = vpack.c.bf16 %v198, %v197
    %v273 = vpack.c.bf16 %v199, %v199
    %v274 = vpack.c.bf16 %v201, %v200
    %v275 = vpack.c.bf16 %v202, %v202
    %v276 = vpack.c.bf16 %v204, %v203
    %v277 = vpack.c.bf16 %v205, %v205
    %v278 = vpack.c.bf16 %v207, %v206
    %v279 = vpack.c.bf16 %v208, %v208
    %v280 = vpack.c.bf16 %v210, %v209
    %v281 = vpack.c.bf16 %v211, %v211
    %v282 = vpack.c.bf16 %v213, %v212
    %v283 = vpack.c.bf16 %v214, %v214
    %v284 = vpack.c.bf16 %v216, %v215
    %v285 = vpack.c.bf16 %v217, %v217
    %v286 = vpack.c.bf16 %v219, %v218
    %v287 = vpack.c.bf16 %v220, %v220
    %v288 = vpack.c.bf16 %v222, %v221
    %v289 = vpack.c.bf16 %v223, %v223
    %v290 = vpack.c.bf16 %v225, %v224
    %v291 = vpack.c.bf16 %v226, %v226
    %v292 = vpack.c.bf16 %v228, %v227
    %v293 = vpack.c.bf16 %v229, %v229
    %294 = vst [vmem:[#allocation2] sm:$0xff] %v230
    %vm295 = vcmask 691200
    %296 = vst.msk [vmem:[#allocation2 + $0x8] sm:$0xf] %vm295, %v231
    %297 = vst [vmem:[#allocation2 + $0xc] sm:$0xff] %v232
    %298 = vst.msk [vmem:[#allocation2 + $0x14] sm:$0xf] %vm295, %v233
    %299 = vst [vmem:[#allocation2 + $0x18] sm:$0xff] %v234
    %300 = vst.msk [vmem:[#allocation2 + $0x20] sm:$0xf] %vm295, %v235
    %301 = vst [vmem:[#allocation2 + $0x24] sm:$0xff] %v236
    %302 = vst.msk [vmem:[#allocation2 + $0x2c] sm:$0xf] %vm295, %v237
    %303 = vst [vmem:[#allocation2 + $0x30] sm:$0xff] %v238
    %304 = vst.msk [vmem:[#allocation2 + $0x38] sm:$0xf] %vm295, %v239
    %305 = vst [vmem:[#allocation2 + $0x3c] sm:$0xff] %v240
    %306 = vst.msk [vmem:[#allocation2 + $0x44] sm:$0xf] %vm295, %v241
    %307 = vst [vmem:[#allocation2 + $0x48] sm:$0xff] %v242
    %308 = vst.msk [vmem:[#allocation2 + $0x50] sm:$0xf] %vm295, %v243
    %309 = vst [vmem:[#allocation2 + $0x54] sm:$0xff] %v244
    %310 = vst.msk [vmem:[#allocation2 + $0x5c] sm:$0xf] %vm295, %v245
    %311 = vst [vmem:[#allocation2 + $0x60] sm:$0xff] %v246
    %312 = vst.msk [vmem:[#allocation2 + $0x68] sm:$0xf] %vm295, %v247
    %313 = vst [vmem:[#allocation2 + $0x6c] sm:$0xff] %v248
    %314 = vst.msk [vmem:[#allocation2 + $0x74] sm:$0xf] %vm295, %v249
    %315 = vst [vmem:[#allocation2 + $0x78] sm:$0xff] %v250
    %316 = vst.msk [vmem:[#allocation2 + $0x80] sm:$0xf] %vm295, %v251
    %317 = vst [vmem:[#allocation2 + $0x84] sm:$0xff] %v252
    %318 = vst.msk [vmem:[#allocation2 + $0x8c] sm:$0xf] %vm295, %v253
    %319 = vst [vmem:[#allocation2 + $0x90] sm:$0xff] %v254
    %320 = vst.msk [vmem:[#allocation2 + $0x98] sm:$0xf] %vm295, %v255
    %321 = vst [vmem:[#allocation2 + $0x9c] sm:$0xff] %v256
    %322 = vst.msk [vmem:[#allocation2 + $0xa4] sm:$0xf] %vm295, %v257
    %323 = vst [vmem:[#allocation2 + $0xa8] sm:$0xff] %v258
    %324 = vst.msk [vmem:[#allocation2 + $0xb0] sm:$0xf] %vm295, %v259
    %325 = vst [vmem:[#allocation2 + $0xb4] sm:$0xff] %v260
    %326 = vst.msk [vmem:[#allocation2 + $0xbc] sm:$0xf] %vm295, %v261
    %327 = vst [vmem:[#allocation2 + $0xc0] sm:$0xff] %v262
    %328 = vst.msk [vmem:[#allocation2 + $0xc8] sm:$0xf] %vm295, %v263
    %329 = vst [vmem:[#allocation2 + $0xcc] sm:$0xff] %v264
    %330 = vst.msk [vmem:[#allocation2 + $0xd4] sm:$0xf] %vm295, %v265
    %331 = vst [vmem:[#allocation2 + $0xd8] sm:$0xff] %v266
    %332 = vst.msk [vmem:[#allocation2 + $0xe0] sm:$0xf] %vm295, %v267
    %333 = vst [vmem:[#allocation2 + $0xe4] sm:$0xff] %v268
    %334 = vst.msk [vmem:[#allocation2 + $0xec] sm:$0xf] %vm295, %v269
    %335 = vst [vmem:[#allocation2 + $0xf0] sm:$0xff] %v270
    %336 = vst.msk [vmem:[#allocation2 + $0xf8] sm:$0xf] %vm295, %v271
    %337 = vst [vmem:[#allocation2 + $0xfc] sm:$0xff] %v272
    %338 = vst.msk [vmem:[#allocation2 + $0x104] sm:$0xf] %vm295, %v273
    %339 = vst [vmem:[#allocation2 + $0x108] sm:$0xff] %v274
    %340 = vst.msk [vmem:[#allocation2 + $0x110] sm:$0xf] %vm295, %v275
    %341 = vst [vmem:[#allocation2 + $0x114] sm:$0xff] %v276
    %342 = vst.msk [vmem:[#allocation2 + $0x11c] sm:$0xf] %vm295, %v277
    %343 = vst [vmem:[#allocation2 + $0x120] sm:$0xff] %v278
    %344 = vst.msk [vmem:[#allocation2 + $0x128] sm:$0xf] %vm295, %v279
    %345 = vst [vmem:[#allocation2 + $0x12c] sm:$0xff] %v280
    %346 = vst.msk [vmem:[#allocation2 + $0x134] sm:$0xf] %vm295, %v281
    %347 = vst [vmem:[#allocation2 + $0x138] sm:$0xff] %v282
    %348 = vst.msk [vmem:[#allocation2 + $0x140] sm:$0xf] %vm295, %v283
    %349 = vst [vmem:[#allocation2 + $0x144] sm:$0xff] %v284
    %350 = vst.msk [vmem:[#allocation2 + $0x14c] sm:$0xf] %vm295, %v285
    %351 = vst [vmem:[#allocation2 + $0x150] sm:$0xff] %v286
    %352 = vst.msk [vmem:[#allocation2 + $0x158] sm:$0xf] %vm295, %v287
    %353 = vst [vmem:[#allocation2 + $0x15c] sm:$0xff] %v288
    %354 = vst.msk [vmem:[#allocation2 + $0x164] sm:$0xf] %vm295, %v289
    %355 = vst [vmem:[#allocation2 + $0x168] sm:$0xff] %v290
    %356 = vst.msk [vmem:[#allocation2 + $0x170] sm:$0xf] %vm295, %v291
    %357 = vst [vmem:[#allocation2 + $0x174] sm:$0xff] %v292
    %358 = vst.msk [vmem:[#allocation2 + $0x17c] sm:$0xf] %vm295, %v293
    %v359 = vld [vmem:[#allocation2] sm:$0xff]
    %v360 = vld [vmem:[#allocation2 + $0x8] sm:$0xf]
    %v361 = vld [vmem:[#allocation2 + $0xc] sm:$0xff]
    %v362 = vld [vmem:[#allocation2 + $0x14] sm:$0xf]
    %v363 = vld [vmem:[#allocation2 + $0x18] sm:$0xff]
    %v364 = vld [vmem:[#allocation2 + $0x20] sm:$0xf]
    %v365 = vld [vmem:[#allocation2 + $0x24] sm:$0xff]
    %v366 = vld [vmem:[#allocation2 + $0x2c] sm:$0xf]
    %v367 = vld [vmem:[#allocation2 + $0x30] sm:$0xff]
    %v368 = vld [vmem:[#allocation2 + $0x38] sm:$0xf]
    %v369 = vld [vmem:[#allocation2 + $0x3c] sm:$0xff]
    %v370 = vld [vmem:[#allocation2 + $0x44] sm:$0xf]
    %v371 = vld [vmem:[#allocation2 + $0x48] sm:$0xff]
    %v372 = vld [vmem:[#allocation2 + $0x50] sm:$0xf]
    %v373 = vld [vmem:[#allocation2 + $0x54] sm:$0xff]
    %v374 = vld [vmem:[#allocation2 + $0x5c] sm:$0xf]
    %v375 = vld [vmem:[#allocation2 + $0x60] sm:$0xff]
    %v376 = vld [vmem:[#allocation2 + $0x68] sm:$0xf]
    %v377 = vld [vmem:[#allocation2 + $0x6c] sm:$0xff]
    %v378 = vld [vmem:[#allocation2 + $0x74] sm:$0xf]
    %v379 = vld [vmem:[#allocation2 + $0x78] sm:$0xff]
    %v380 = vld [vmem:[#allocation2 + $0x80] sm:$0xf]
    %v381 = vld [vmem:[#allocation2 + $0x84] sm:$0xff]
    %v382 = vld [vmem:[#allocation2 + $0x8c] sm:$0xf]
    %v383 = vld [vmem:[#allocation2 + $0x90] sm:$0xff]
    %v384 = vld [vmem:[#allocation2 + $0x98] sm:$0xf]
    %v385 = vld [vmem:[#allocation2 + $0x9c] sm:$0xff]
    %v386 = vld [vmem:[#allocation2 + $0xa4] sm:$0xf]
    %v387 = vld [vmem:[#allocation2 + $0xa8] sm:$0xff]
    %v388 = vld [vmem:[#allocation2 + $0xb0] sm:$0xf]
    %v389 = vld [vmem:[#allocation2 + $0xb4] sm:$0xff]
    %v390 = vld [vmem:[#allocation2 + $0xbc] sm:$0xf]
    %v391 = vld [vmem:[#allocation2 + $0xc0] sm:$0xff]
    %v392 = vld [vmem:[#allocation2 + $0xc8] sm:$0xf]
    %v393 = vld [vmem:[#allocation2 + $0xcc] sm:$0xff]
    %v394 = vld [vmem:[#allocation2 + $0xd4] sm:$0xf]
    %v395 = vld [vmem:[#allocation2 + $0xd8] sm:$0xff]
    %v396 = vld [vmem:[#allocation2 + $0xe0] sm:$0xf]
    %v397 = vld [vmem:[#allocation2 + $0xe4] sm:$0xff]
    %v398 = vld [vmem:[#allocation2 + $0xec] sm:$0xf]
    %v399 = vld [vmem:[#allocation2 + $0xf0] sm:$0xff]
    %v400 = vld [vmem:[#allocation2 + $0xf8] sm:$0xf]
    %v401 = vld [vmem:[#allocation2 + $0xfc] sm:$0xff]
    %v402 = vld [vmem:[#allocation2 + $0x104] sm:$0xf]
    %v403 = vld [vmem:[#allocation2 + $0x108] sm:$0xff]
    %v404 = vld [vmem:[#allocation2 + $0x110] sm:$0xf]
    %v405 = vld [vmem:[#allocation2 + $0x114] sm:$0xff]
    %v406 = vld [vmem:[#allocation2 + $0x11c] sm:$0xf]
    %v407 = vld [vmem:[#allocation2 + $0x120] sm:$0xff]
    %v408 = vld [vmem:[#allocation2 + $0x128] sm:$0xf]
    %v409 = vld [vmem:[#allocation2 + $0x12c] sm:$0xff]
    %v410 = vld [vmem:[#allocation2 + $0x134] sm:$0xf]
    %v411 = vld [vmem:[#allocation2 + $0x138] sm:$0xff]
    %v412 = vld [vmem:[#allocation2 + $0x140] sm:$0xf]
    %v413 = vld [vmem:[#allocation2 + $0x144] sm:$0xff]
    %v414 = vld [vmem:[#allocation2 + $0x14c] sm:$0xf]
    %v415 = vld [vmem:[#allocation2 + $0x150] sm:$0xff]
    %v416 = vld [vmem:[#allocation2 + $0x158] sm:$0xf]
    %v417 = vld [vmem:[#allocation2 + $0x15c] sm:$0xff]
    %v418 = vld [vmem:[#allocation2 + $0x164] sm:$0xf]
    %v419 = vld [vmem:[#allocation2 + $0x168] sm:$0xff]
    %v420 = vld [vmem:[#allocation2 + $0x170] sm:$0xf]
    %v421 = vld [vmem:[#allocation2 + $0x174] sm:$0xff]
    %v422 = vld [vmem:[#allocation2 + $0x17c] sm:$0xf]
    %v423 = vld [vmem:[#allocation3] sm:$0xff]
    %v424 = vld [vmem:[#allocation3 + $0x8] sm:$0xff]
    %v425 = vld [vmem:[#allocation3 + $0x10] sm:$0xff]
    %v426 = vld [vmem:[#allocation3 + $0x18] sm:$0xff]
    %v427 = vld [vmem:[#allocation3 + $0x20] sm:$0xff]
    %v428 = vld [vmem:[#allocation3 + $0x28] sm:$0xff]
    %v429 = vld [vmem:[#allocation3 + $0x30] sm:$0xff]
    %v430 = vld [vmem:[#allocation3 + $0x38] sm:$0xff]
    %v431 = vld [vmem:[#allocation3 + $0x40] sm:$0xff]
    %v432 = vld [vmem:[#allocation3 + $0x48] sm:$0xff]
    %v433 = vld [vmem:[#allocation3 + $0x50] sm:$0xff]
    %v434 = vld [vmem:[#allocation3 + $0x58] sm:$0xff]
    %v435 = vld [vmem:[#allocation3 + $0x60] sm:$0xff]
    %v436 = vld [vmem:[#allocation3 + $0x68] sm:$0xff]
    %v437 = vld [vmem:[#allocation3 + $0x70] sm:$0xff]
    %v438 = vld [vmem:[#allocation3 + $0x78] sm:$0xff]
    %v439 = vld [vmem:[#allocation3 + $0x80] sm:$0xff]
    %v440 = vld [vmem:[#allocation3 + $0x88] sm:$0xff]
    %v441 = vld [vmem:[#allocation3 + $0x90] sm:$0xff]
    %v442 = vld [vmem:[#allocation3 + $0x98] sm:$0xff]
    %v443 = vld [vmem:[#allocation3 + $0xa0] sm:$0xff]
    %v444 = vld [vmem:[#allocation3 + $0xa8] sm:$0xff]
    %v445 = vld [vmem:[#allocation3 + $0xb0] sm:$0xff]
    %v446 = vld [vmem:[#allocation3 + $0xb8] sm:$0xff]
    %v447 = vld [vmem:[#allocation3 + $0xc0] sm:$0xff]
    %v448 = vld [vmem:[#allocation3 + $0xc8] sm:$0xff]
    %v449 = vld [vmem:[#allocation3 + $0xd0] sm:$0xff]
    %v450 = vld [vmem:[#allocation3 + $0xd8] sm:$0xff]
    %v451 = vld [vmem:[#allocation3 + $0xe0] sm:$0xff]
    %v452 = vld [vmem:[#allocation3 + $0xe8] sm:$0xff]
    %v453 = vld [vmem:[#allocation3 + $0xf0] sm:$0xff]
    %v454 = vld [vmem:[#allocation3 + $0xf8] sm:$0xff]
    %v455 = vld [vmem:[#allocation3 + $0x100] sm:$0xff]
    %v456 = vld [vmem:[#allocation3 + $0x108] sm:$0xff]
    %v457 = vld [vmem:[#allocation3 + $0x110] sm:$0xff]
    %v458 = vld [vmem:[#allocation3 + $0x118] sm:$0xff]
    %v459 = vld [vmem:[#allocation3 + $0x120] sm:$0xff]
    %v460 = vld [vmem:[#allocation3 + $0x128] sm:$0xff]
    %v461 = vld [vmem:[#allocation3 + $0x130] sm:$0xff]
    %v462 = vld [vmem:[#allocation3 + $0x138] sm:$0xff]
    %v463 = vld [vmem:[#allocation3 + $0x140] sm:$0xff]
    %v464 = vld [vmem:[#allocation3 + $0x148] sm:$0xff]
    %v465 = vld [vmem:[#allocation3 + $0x150] sm:$0xff]
    %v466 = vld [vmem:[#allocation3 + $0x158] sm:$0xff]
    %v467 = vld [vmem:[#allocation3 + $0x160] sm:$0xff]
    %v468 = vld [vmem:[#allocation3 + $0x168] sm:$0xff]
    %v469 = vld [vmem:[#allocation3 + $0x170] sm:$0xff]
    %v470 = vld [vmem:[#allocation3 + $0x178] sm:$0xff]
    %v471 = vld [vmem:[%s2] sm:$0x3]
    %v473 = vperm.slane %v471, 0
    %v474 = vperm.slane %v471, 1
    %v541 = vunpack.c.l.b16 %v359
    %v542 = vunpack.c.h.b16 %v359
    %v543 = vunpack.c.l.b16 %v360
    %v544 = vunpack.c.l.b16 %v361
    %v545 = vunpack.c.h.b16 %v361
    %v546 = vunpack.c.l.b16 %v362
    %v547 = vunpack.c.l.b16 %v363
    %v548 = vunpack.c.h.b16 %v363
    %v549 = vunpack.c.l.b16 %v364
    %v550 = vunpack.c.l.b16 %v365
    %v551 = vunpack.c.h.b16 %v365
    %v552 = vunpack.c.l.b16 %v366
    %v553 = vunpack.c.l.b16 %v367
    %v554 = vunpack.c.h.b16 %v367
    %v555 = vunpack.c.l.b16 %v368
    %v556 = vunpack.c.l.b16 %v369
    %v557 = vunpack.c.h.b16 %v369
    %v558 = vunpack.c.l.b16 %v370
    %v559 = vunpack.c.l.b16 %v371
    %v560 = vunpack.c.h.b16 %v371
    %v561 = vunpack.c.l.b16 %v372
    %v562 = vunpack.c.l.b16 %v373
    %v563 = vunpack.c.h.b16 %v373
    %v564 = vunpack.c.l.b16 %v374
    %v565 = vunpack.c.l.b16 %v375
    %v566 = vunpack.c.h.b16 %v375
    %v567 = vunpack.c.l.b16 %v376
    %v568 = vunpack.c.l.b16 %v377
    %v569 = vunpack.c.h.b16 %v377
    %v570 = vunpack.c.l.b16 %v378
    %v571 = vunpack.c.l.b16 %v379
    %v572 = vunpack.c.h.b16 %v379
    %v573 = vunpack.c.l.b16 %v380
    %v574 = vunpack.c.l.b16 %v381
    %v575 = vunpack.c.h.b16 %v381
    %v576 = vunpack.c.l.b16 %v382
    %v577 = vunpack.c.l.b16 %v383
    %v578 = vunpack.c.h.b16 %v383
    %v579 = vunpack.c.l.b16 %v384
    %v580 = vunpack.c.l.b16 %v385
    %v581 = vunpack.c.h.b16 %v385
    %v582 = vunpack.c.l.b16 %v386
    %v583 = vunpack.c.l.b16 %v387
    %v584 = vunpack.c.h.b16 %v387
    %v585 = vunpack.c.l.b16 %v388
    %v586 = vunpack.c.l.b16 %v389
    %v587 = vunpack.c.h.b16 %v389
    %v588 = vunpack.c.l.b16 %v390
    %v589 = vunpack.c.l.b16 %v391
    %v590 = vunpack.c.h.b16 %v391
    %v591 = vunpack.c.l.b16 %v392
    %v592 = vunpack.c.l.b16 %v393
    %v593 = vunpack.c.h.b16 %v393
    %v594 = vunpack.c.l.b16 %v394
    %v595 = vunpack.c.l.b16 %v395
    %v596 = vunpack.c.h.b16 %v395
    %v597 = vunpack.c.l.b16 %v396
    %v598 = vunpack.c.l.b16 %v397
    %v599 = vunpack.c.h.b16 %v397
    %v600 = vunpack.c.l.b16 %v398
    %v601 = vunpack.c.l.b16 %v399
    %v602 = vunpack.c.h.b16 %v399
    %v603 = vunpack.c.l.b16 %v400
    %v604 = vunpack.c.l.b16 %v401
    %v605 = vunpack.c.h.b16 %v401
    %v606 = vunpack.c.l.b16 %v402
    %v607 = vunpack.c.l.b16 %v403
    %v608 = vunpack.c.h.b16 %v403
    %v609 = vunpack.c.l.b16 %v404
    %v610 = vunpack.c.l.b16 %v405
    %v611 = vunpack.c.h.b16 %v405
    %v612 = vunpack.c.l.b16 %v406
    %v613 = vunpack.c.l.b16 %v407
    %v614 = vunpack.c.h.b16 %v407
    %v615 = vunpack.c.l.b16 %v408
    %v616 = vunpack.c.l.b16 %v409
    %v617 = vunpack.c.h.b16 %v409
    %v618 = vunpack.c.l.b16 %v410
    %v619 = vunpack.c.l.b16 %v411
    %v620 = vunpack.c.h.b16 %v411
    %v621 = vunpack.c.l.b16 %v412
    %v622 = vunpack.c.l.b16 %v413
    %v623 = vunpack.c.h.b16 %v413
    %v624 = vunpack.c.l.b16 %v414
    %v625 = vunpack.c.l.b16 %v415
    %v626 = vunpack.c.h.b16 %v415
    %v627 = vunpack.c.l.b16 %v416
    %v628 = vunpack.c.l.b16 %v417
    %v629 = vunpack.c.h.b16 %v417
    %v630 = vunpack.c.l.b16 %v418
    %v631 = vunpack.c.l.b16 %v419
    %v632 = vunpack.c.h.b16 %v419
    %v633 = vunpack.c.l.b16 %v420
    %v634 = vunpack.c.l.b16 %v421
    %v635 = vunpack.c.h.b16 %v421
    %v636 = vunpack.c.l.b16 %v422
    %v637 = vpack.c.b16 %v544, %v541
    %v638 = vpack.c.b16 %v545, %v542
    %v639 = vpack.c.b16 %v546, %v543
    %v640 = vpack.c.b16 %v550, %v547
    %v641 = vpack.c.b16 %v551, %v548
    %v642 = vpack.c.b16 %v552, %v549
    %v643 = vpack.c.b16 %v556, %v553
    %v644 = vpack.c.b16 %v557, %v554
    %v645 = vpack.c.b16 %v558, %v555
    %v646 = vpack.c.b16 %v562, %v559
    %v647 = vpack.c.b16 %v563, %v560
    %v648 = vpack.c.b16 %v564, %v561
    %v649 = vpack.c.b16 %v568, %v565
    %v650 = vpack.c.b16 %v569, %v566
    %v651 = vpack.c.b16 %v570, %v567
    %v652 = vpack.c.b16 %v574, %v571
    %v653 = vpack.c.b16 %v575, %v572
    %v654 = vpack.c.b16 %v576, %v573
    %v655 = vpack.c.b16 %v580, %v577
    %v656 = vpack.c.b16 %v581, %v578
    %v657 = vpack.c.b16 %v582, %v579
    %v658 = vpack.c.b16 %v586, %v583
    %v659 = vpack.c.b16 %v587, %v584
    %v660 = vpack.c.b16 %v588, %v585
    %v661 = vpack.c.b16 %v592, %v589
    %v662 = vpack.c.b16 %v593, %v590
    %v663 = vpack.c.b16 %v594, %v591
    %v664 = vpack.c.b16 %v598, %v595
    %v665 = vpack.c.b16 %v599, %v596
    %v666 = vpack.c.b16 %v600, %v597
    %v667 = vpack.c.b16 %v604, %v601
    %v668 = vpack.c.b16 %v605, %v602
    %v669 = vpack.c.b16 %v606, %v603
    %v670 = vpack.c.b16 %v610, %v607
    %v671 = vpack.c.b16 %v611, %v608
    %v672 = vpack.c.b16 %v612, %v609
    %v673 = vpack.c.b16 %v616, %v613
    %v674 = vpack.c.b16 %v617, %v614
    %v675 = vpack.c.b16 %v618, %v615
    %v676 = vpack.c.b16 %v622, %v619
    %v677 = vpack.c.b16 %v623, %v620
    %v678 = vpack.c.b16 %v624, %v621
    %v679 = vpack.c.b16 %v628, %v625
    %v680 = vpack.c.b16 %v629, %v626
    %v681 = vpack.c.b16 %v630, %v627
    %v682 = vpack.c.b16 %v634, %v631
    %v683 = vpack.c.b16 %v635, %v632
    %v684 = vpack.c.b16 %v636, %v633
    %v781 = vunpack.c.l.b16 %v423
    %v782 = vunpack.c.h.b16 %v423
    %v783 = vunpack.c.l.b16 %v424
    %v784 = vunpack.c.h.b16 %v424
    %v785 = vunpack.c.l.b16 %v425
    %v786 = vunpack.c.h.b16 %v425
    %v787 = vunpack.c.l.b16 %v426
    %v788 = vunpack.c.h.b16 %v426
    %v789 = vunpack.c.l.b16 %v427
    %v790 = vunpack.c.h.b16 %v427
    %v791 = vunpack.c.l.b16 %v428
    %v792 = vunpack.c.h.b16 %v428
    %v793 = vunpack.c.l.b16 %v429
    %v794 = vunpack.c.h.b16 %v429
    %v795 = vunpack.c.l.b16 %v430
    %v796 = vunpack.c.h.b16 %v430
    %v797 = vunpack.c.l.b16 %v431
    %v798 = vunpack.c.h.b16 %v431
    %v799 = vunpack.c.l.b16 %v432
    %v800 = vunpack.c.h.b16 %v432
    %v801 = vunpack.c.l.b16 %v433
    %v802 = vunpack.c.h.b16 %v433
    %v803 = vunpack.c.l.b16 %v434
    %v804 = vunpack.c.h.b16 %v434
    %v805 = vunpack.c.l.b16 %v435
    %v806 = vunpack.c.h.b16 %v435
    %v807 = vunpack.c.l.b16 %v436
    %v808 = vunpack.c.h.b16 %v436
    %v809 = vunpack.c.l.b16 %v437
    %v810 = vunpack.c.h.b16 %v437
    %v811 = vunpack.c.l.b16 %v438
    %v812 = vunpack.c.h.b16 %v438
    %v813 = vunpack.c.l.b16 %v439
    %v814 = vunpack.c.h.b16 %v439
    %v815 = vunpack.c.l.b16 %v440
    %v816 = vunpack.c.h.b16 %v440
    %v817 = vunpack.c.l.b16 %v441
    %v818 = vunpack.c.h.b16 %v441
    %v819 = vunpack.c.l.b16 %v442
    %v820 = vunpack.c.h.b16 %v442
    %v821 = vunpack.c.l.b16 %v443
    %v822 = vunpack.c.h.b16 %v443
    %v823 = vunpack.c.l.b16 %v444
    %v824 = vunpack.c.h.b16 %v444
    %v825 = vunpack.c.l.b16 %v445
    %v826 = vunpack.c.h.b16 %v445
    %v827 = vunpack.c.l.b16 %v446
    %v828 = vunpack.c.h.b16 %v446
    %v829 = vunpack.c.l.b16 %v447
    %v830 = vunpack.c.h.b16 %v447
    %v831 = vunpack.c.l.b16 %v448
    %v832 = vunpack.c.h.b16 %v448
    %v833 = vunpack.c.l.b16 %v449
    %v834 = vunpack.c.h.b16 %v449
    %v835 = vunpack.c.l.b16 %v450
    %v836 = vunpack.c.h.b16 %v450
    %v837 = vunpack.c.l.b16 %v451
    %v838 = vunpack.c.h.b16 %v451
    %v839 = vunpack.c.l.b16 %v452
    %v840 = vunpack.c.h.b16 %v452
    %v841 = vunpack.c.l.b16 %v453
    %v842 = vunpack.c.h.b16 %v453
    %v843 = vunpack.c.l.b16 %v454
    %v844 = vunpack.c.h.b16 %v454
    %v845 = vunpack.c.l.b16 %v455
    %v846 = vunpack.c.h.b16 %v455
    %v847 = vunpack.c.l.b16 %v456
    %v848 = vunpack.c.h.b16 %v456
    %v849 = vunpack.c.l.b16 %v457
    %v850 = vunpack.c.h.b16 %v457
    %v851 = vunpack.c.l.b16 %v458
    %v852 = vunpack.c.h.b16 %v458
    %v853 = vunpack.c.l.b16 %v459
    %v854 = vunpack.c.h.b16 %v459
    %v855 = vunpack.c.l.b16 %v460
    %v856 = vunpack.c.h.b16 %v460
    %v857 = vunpack.c.l.b16 %v461
    %v858 = vunpack.c.h.b16 %v461
    %v859 = vunpack.c.l.b16 %v462
    %v860 = vunpack.c.h.b16 %v462
    %v861 = vunpack.c.l.b16 %v463
    %v862 = vunpack.c.h.b16 %v463
    %v863 = vunpack.c.l.b16 %v464
    %v864 = vunpack.c.h.b16 %v464
    %v865 = vunpack.c.l.b16 %v465
    %v866 = vunpack.c.h.b16 %v465
    %v867 = vunpack.c.l.b16 %v466
    %v868 = vunpack.c.h.b16 %v466
    %v869 = vunpack.c.l.b16 %v467
    %v870 = vunpack.c.h.b16 %v467
    %v871 = vunpack.c.l.b16 %v468
    %v872 = vunpack.c.h.b16 %v468
    %v873 = vunpack.c.l.b16 %v469
    %v874 = vunpack.c.h.b16 %v469
    %v875 = vunpack.c.l.b16 %v470
    %v876 = vunpack.c.h.b16 %v470
    %v877 = vpack.c.b16 %v783, %v781
    %v878 = vpack.c.b16 %v784, %v782
    %v879 = vpack.c.b16 %v787, %v785
    %v880 = vpack.c.b16 %v788, %v786
    %v881 = vpack.c.b16 %v791, %v789
    %v882 = vpack.c.b16 %v792, %v790
    %v883 = vpack.c.b16 %v795, %v793
    %v884 = vpack.c.b16 %v796, %v794
    %v885 = vpack.c.b16 %v799, %v797
    %v886 = vpack.c.b16 %v800, %v798
    %v887 = vpack.c.b16 %v803, %v801
    %v888 = vpack.c.b16 %v804, %v802
    %v889 = vpack.c.b16 %v807, %v805
    %v890 = vpack.c.b16 %v808, %v806
    %v891 = vpack.c.b16 %v811, %v809
    %v892 = vpack.c.b16 %v812, %v810
    %v893 = vpack.c.b16 %v815, %v813
    %v894 = vpack.c.b16 %v816, %v814
    %v895 = vpack.c.b16 %v819, %v817
    %v896 = vpack.c.b16 %v820, %v818
    %v897 = vpack.c.b16 %v823, %v821
    %v898 = vpack.c.b16 %v824, %v822
    %v899 = vpack.c.b16 %v827, %v825
    %v900 = vpack.c.b16 %v828, %v826
    %v901 = vpack.c.b16 %v831, %v829
    %v902 = vpack.c.b16 %v832, %v830
    %v903 = vpack.c.b16 %v835, %v833
    %v904 = vpack.c.b16 %v836, %v834
    %v905 = vpack.c.b16 %v839, %v837
    %v906 = vpack.c.b16 %v840, %v838
    %v907 = vpack.c.b16 %v843, %v841
    %v908 = vpack.c.b16 %v844, %v842
    %v909 = vpack.c.b16 %v847, %v845
    %v910 = vpack.c.b16 %v848, %v846
    %v911 = vpack.c.b16 %v851, %v849
    %v912 = vpack.c.b16 %v852, %v850
    %v913 = vpack.c.b16 %v855, %v853
    %v914 = vpack.c.b16 %v856, %v854
    %v915 = vpack.c.b16 %v859, %v857
    %v916 = vpack.c.b16 %v860, %v858
    %v917 = vpack.c.b16 %v863, %v861
    %v918 = vpack.c.b16 %v864, %v862
    %v919 = vpack.c.b16 %v867, %v865
    %v920 = vpack.c.b16 %v868, %v866
    %v921 = vpack.c.b16 %v871, %v869
    %v922 = vpack.c.b16 %v872, %v870
    %v923 = vpack.c.b16 %v875, %v873
    %v924 = vpack.c.b16 %v876, %v874
    %973 = vmatpush.bf16.msra.mxu0 %v891
    %974 = vmatpush.bf16.msra.mxu0 %v889
    %975 = vmatpush.bf16.msra.mxu0 %v887
    %976 = vmatpush.bf16.msra.mxu0 %v885
    %977 = vmatpush.bf16.msra.mxu0 %v883
    %978 = vmatpush.bf16.msra.mxu0 %v881
    %979 = vmatpush.bf16.msra.mxu0 %v879
    %980 = vmatpush.bf16.msra.mxu0 %v877
    %981 = vmatmul.bf16.gmra.mxu0 %v637
    %v982 = vpop.f32.mrf.mxu0
    %v983 = vadd.f32 %v473, %v982
    %v984 = vpop.f32.mrf.mxu0
    %v985 = vadd.f32 %v473, %v984
    %986 = vmatmul.bf16.gmra.mxu0 %v640
    %v987 = vpop.f32.mrf.mxu0
    %v988 = vadd.f32 %v473, %v987
    %v989 = vpop.f32.mrf.mxu0
    %v990 = vadd.f32 %v473, %v989
    %991 = vmatmul.bf16.gmra.mxu0 %v643
    %v992 = vpop.f32.mrf.mxu0
    %v993 = vadd.f32 %v473, %v992
    %v994 = vpop.f32.mrf.mxu0
    %v995 = vadd.f32 %v473, %v994
    %996 = vmatmul.bf16.gmra.mxu0 %v646
    %v997 = vpop.f32.mrf.mxu0
    %v998 = vadd.f32 %v473, %v997
    %v999 = vpop.f32.mrf.mxu0
    %v1000 = vadd.f32 %v473, %v999
    %1001 = vmatmul.bf16.gmra.mxu0 %v649
    %v1002 = vpop.f32.mrf.mxu0
    %v1003 = vadd.f32 %v473, %v1002
    %v1004 = vpop.f32.mrf.mxu0
    %v1005 = vadd.f32 %v473, %v1004
    %1006 = vmatmul.bf16.gmra.mxu0 %v652
    %v1007 = vpop.f32.mrf.mxu0
    %v1008 = vadd.f32 %v473, %v1007
    %v1009 = vpop.f32.mrf.mxu0
    %v1010 = vadd.f32 %v473, %v1009
    %1011 = vmatmul.bf16.gmra.mxu0 %v655
    %v1012 = vpop.f32.mrf.mxu0
    %v1013 = vadd.f32 %v473, %v1012
    %v1014 = vpop.f32.mrf.mxu0
    %v1015 = vadd.f32 %v473, %v1014
    %1016 = vmatmul.bf16.gmra.mxu0 %v658
    %v1017 = vpop.f32.mrf.mxu0
    %v1018 = vadd.f32 %v473, %v1017
    %v1019 = vpop.f32.mrf.mxu0
    %v1020 = vadd.f32 %v473, %v1019
    %1021 = vmatmul.bf16.gmra.mxu0 %v661
    %v1022 = vpop.f32.mrf.mxu0
    %v1023 = vadd.f32 %v473, %v1022
    %v1024 = vpop.f32.mrf.mxu0
    %v1025 = vadd.f32 %v473, %v1024
    %1026 = vmatmul.bf16.gmra.mxu0 %v664
    %v1027 = vpop.f32.mrf.mxu0
    %v1028 = vadd.f32 %v473, %v1027
    %v1029 = vpop.f32.mrf.mxu0
    %v1030 = vadd.f32 %v473, %v1029
    %1031 = vmatmul.bf16.gmra.mxu0 %v667
    %v1032 = vpop.f32.mrf.mxu0
    %v1033 = vadd.f32 %v473, %v1032
    %v1034 = vpop.f32.mrf.mxu0
    %v1035 = vadd.f32 %v473, %v1034
    %1036 = vmatmul.bf16.gmra.mxu0 %v670
    %v1037 = vpop.f32.mrf.mxu0
    %v1038 = vadd.f32 %v473, %v1037
    %v1039 = vpop.f32.mrf.mxu0
    %v1040 = vadd.f32 %v473, %v1039
    %1041 = vmatmul.bf16.gmra.mxu0 %v673
    %v1042 = vpop.f32.mrf.mxu0
    %v1043 = vadd.f32 %v473, %v1042
    %v1044 = vpop.f32.mrf.mxu0
    %v1045 = vadd.f32 %v473, %v1044
    %1046 = vmatmul.bf16.gmra.mxu0 %v676
    %v1047 = vpop.f32.mrf.mxu0
    %v1048 = vadd.f32 %v473, %v1047
    %v1049 = vpop.f32.mrf.mxu0
    %v1050 = vadd.f32 %v473, %v1049
    %1051 = vmatmul.bf16.gmra.mxu0 %v679
    %v1052 = vpop.f32.mrf.mxu0
    %v1053 = vadd.f32 %v473, %v1052
    %v1054 = vpop.f32.mrf.mxu0
    %v1055 = vadd.f32 %v473, %v1054
    %1056 = vmatmul.bf16.gmra.mxu0 %v682
    %v1057 = vpop.f32.mrf.mxu0
    %v1058 = vadd.f32 %v473, %v1057
    %v1059 = vpop.f32.mrf.mxu0
    %v1060 = vadd.f32 %v473, %v1059
    %1061 = vdwg.mxu0
    %1062 = vmatpush.bf16.msra.mxu0 %v907
    %1063 = vmatpush.bf16.msra.mxu0 %v905
    %1064 = vmatpush.bf16.msra.mxu0 %v903
    %1065 = vmatpush.bf16.msra.mxu0 %v901
    %1066 = vmatpush.bf16.msra.mxu0 %v899
    %1067 = vmatpush.bf16.msra.mxu0 %v897
    %1068 = vmatpush.bf16.msra.mxu0 %v895
    %1069 = vmatpush.bf16.msra.mxu0 %v893
    %1070 = vmatmul.bf16.gmra.mxu0 %v638
    %v1071 = vpop.f32.mrf.mxu0
    %v1072 = vadd.f32 %v983, %v1071
    %v1073 = vpop.f32.mrf.mxu0
    %v1074 = vadd.f32 %v985, %v1073
    %1075 = vmatmul.bf16.gmra.mxu0 %v641
    %v1076 = vpop.f32.mrf.mxu0
    %v1077 = vadd.f32 %v988, %v1076
    %v1078 = vpop.f32.mrf.mxu0
    %v1079 = vadd.f32 %v990, %v1078
    %1080 = vmatmul.bf16.gmra.mxu0 %v644
    %v1081 = vpop.f32.mrf.mxu0
    %v1082 = vadd.f32 %v993, %v1081
    %v1083 = vpop.f32.mrf.mxu0
    %v1084 = vadd.f32 %v995, %v1083
    %1085 = vmatmul.bf16.gmra.mxu0 %v647
    %v1086 = vpop.f32.mrf.mxu0
    %v1087 = vadd.f32 %v998, %v1086
    %v1088 = vpop.f32.mrf.mxu0
    %v1089 = vadd.f32 %v1000, %v1088
    %1090 = vmatmul.bf16.gmra.mxu0 %v650
    %v1091 = vpop.f32.mrf.mxu0
    %v1092 = vadd.f32 %v1003, %v1091
    %v1093 = vpop.f32.mrf.mxu0
    %v1094 = vadd.f32 %v1005, %v1093
    %1095 = vmatmul.bf16.gmra.mxu0 %v653
    %v1096 = vpop.f32.mrf.mxu0
    %v1097 = vadd.f32 %v1008, %v1096
    %v1098 = vpop.f32.mrf.mxu0
    %v1099 = vadd.f32 %v1010, %v1098
    %1100 = vmatmul.bf16.gmra.mxu0 %v656
    %v1101 = vpop.f32.mrf.mxu0
    %v1102 = vadd.f32 %v1013, %v1101
    %v1103 = vpop.f32.mrf.mxu0
    %v1104 = vadd.f32 %v1015, %v1103
    %1105 = vmatmul.bf16.gmra.mxu0 %v659
    %v1106 = vpop.f32.mrf.mxu0
    %v1107 = vadd.f32 %v1018, %v1106
    %v1108 = vpop.f32.mrf.mxu0
    %v1109 = vadd.f32 %v1020, %v1108
    %1110 = vmatmul.bf16.gmra.mxu0 %v662
    %v1111 = vpop.f32.mrf.mxu0
    %v1112 = vadd.f32 %v1023, %v1111
    %v1113 = vpop.f32.mrf.mxu0
    %v1114 = vadd.f32 %v1025, %v1113
    %1115 = vmatmul.bf16.gmra.mxu0 %v665
    %v1116 = vpop.f32.mrf.mxu0
    %v1117 = vadd.f32 %v1028, %v1116
    %v1118 = vpop.f32.mrf.mxu0
    %v1119 = vadd.f32 %v1030, %v1118
    %1120 = vmatmul.bf16.gmra.mxu0 %v668
    %v1121 = vpop.f32.mrf.mxu0
    %v1122 = vadd.f32 %v1033, %v1121
    %v1123 = vpop.f32.mrf.mxu0
    %v1124 = vadd.f32 %v1035, %v1123
    %1125 = vmatmul.bf16.gmra.mxu0 %v671
    %v1126 = vpop.f32.mrf.mxu0
    %v1127 = vadd.f32 %v1038, %v1126
    %v1128 = vpop.f32.mrf.mxu0
    %v1129 = vadd.f32 %v1040, %v1128
    %1130 = vmatmul.bf16.gmra.mxu0 %v674
    %v1131 = vpop.f32.mrf.mxu0
    %v1132 = vadd.f32 %v1043, %v1131
    %v1133 = vpop.f32.mrf.mxu0
    %v1134 = vadd.f32 %v1045, %v1133
    %1135 = vmatmul.bf16.gmra.mxu0 %v677
    %v1136 = vpop.f32.mrf.mxu0
    %v1137 = vadd.f32 %v1048, %v1136
    %v1138 = vpop.f32.mrf.mxu0
    %v1139 = vadd.f32 %v1050, %v1138
    %1140 = vmatmul.bf16.gmra.mxu0 %v680
    %v1141 = vpop.f32.mrf.mxu0
    %v1142 = vadd.f32 %v1053, %v1141
    %v1143 = vpop.f32.mrf.mxu0
    %v1144 = vadd.f32 %v1055, %v1143
    %1145 = vmatmul.bf16.gmra.mxu0 %v683
    %v1146 = vpop.f32.mrf.mxu0
    %v1147 = vadd.f32 %v1058, %v1146
    %v1148 = vpop.f32.mrf.mxu0
    %v1149 = vadd.f32 %v1060, %v1148
    %1150 = vdwg.mxu0
    %1151 = vmatpush.bf16.msra.mxu0 %v923
    %1152 = vmatpush.bf16.msra.mxu0 %v921
    %1153 = vmatpush.bf16.msra.mxu0 %v919
    %1154 = vmatpush.bf16.msra.mxu0 %v917
    %1155 = vmatpush.bf16.msra.mxu0 %v915
    %1156 = vmatpush.bf16.msra.mxu0 %v913
    %1157 = vmatpush.bf16.msra.mxu0 %v911
    %1158 = vmatpush.bf16.msra.mxu0 %v909
    %1159 = vmatmul.bf16.gmra.mxu0 %v639
    %v1160 = vpop.f32.mrf.mxu0
    %v1161 = vadd.f32 %v1072, %v1160
    %v1162 = vpop.f32.mrf.mxu0
    %v1163 = vadd.f32 %v1074, %v1162
    %1164 = vmatmul.bf16.gmra.mxu0 %v642
    %v1165 = vpop.f32.mrf.mxu0
    %v1166 = vadd.f32 %v1077, %v1165
    %v1167 = vpop.f32.mrf.mxu0
    %v1168 = vadd.f32 %v1079, %v1167
    %1169 = vmatmul.bf16.gmra.mxu0 %v645
    %v1170 = vpop.f32.mrf.mxu0
    %v1171 = vadd.f32 %v1082, %v1170
    %v1172 = vpop.f32.mrf.mxu0
    %v1173 = vadd.f32 %v1084, %v1172
    %1174 = vmatmul.bf16.gmra.mxu0 %v648
    %v1175 = vpop.f32.mrf.mxu0
    %v1176 = vadd.f32 %v1087, %v1175
    %v1177 = vpop.f32.mrf.mxu0
    %v1178 = vadd.f32 %v1089, %v1177
    %1179 = vmatmul.bf16.gmra.mxu0 %v651
    %v1180 = vpop.f32.mrf.mxu0
    %v1181 = vadd.f32 %v1092, %v1180
    %v1182 = vpop.f32.mrf.mxu0
    %v1183 = vadd.f32 %v1094, %v1182
    %1184 = vmatmul.bf16.gmra.mxu0 %v654
    %v1185 = vpop.f32.mrf.mxu0
    %v1186 = vadd.f32 %v1097, %v1185
    %v1187 = vpop.f32.mrf.mxu0
    %v1188 = vadd.f32 %v1099, %v1187
    %1189 = vmatmul.bf16.gmra.mxu0 %v657
    %v1190 = vpop.f32.mrf.mxu0
    %v1191 = vadd.f32 %v1102, %v1190
    %v1192 = vpop.f32.mrf.mxu0
    %v1193 = vadd.f32 %v1104, %v1192
    %1194 = vmatmul.bf16.gmra.mxu0 %v660
    %v1195 = vpop.f32.mrf.mxu0
    %v1196 = vadd.f32 %v1107, %v1195
    %v1197 = vpop.f32.mrf.mxu0
    %v1198 = vadd.f32 %v1109, %v1197
    %1199 = vmatmul.bf16.gmra.mxu0 %v663
    %v1200 = vpop.f32.mrf.mxu0
    %v1201 = vadd.f32 %v1112, %v1200
    %v1202 = vpop.f32.mrf.mxu0
    %v1203 = vadd.f32 %v1114, %v1202
    %1204 = vmatmul.bf16.gmra.mxu0 %v666
    %v1205 = vpop.f32.mrf.mxu0
    %v1206 = vadd.f32 %v1117, %v1205
    %v1207 = vpop.f32.mrf.mxu0
    %v1208 = vadd.f32 %v1119, %v1207
    %1209 = vmatmul.bf16.gmra.mxu0 %v669
    %v1210 = vpop.f32.mrf.mxu0
    %v1211 = vadd.f32 %v1122, %v1210
    %v1212 = vpop.f32.mrf.mxu0
    %v1213 = vadd.f32 %v1124, %v1212
    %1214 = vmatmul.bf16.gmra.mxu0 %v672
    %v1215 = vpop.f32.mrf.mxu0
    %v1216 = vadd.f32 %v1127, %v1215
    %v1217 = vpop.f32.mrf.mxu0
    %v1218 = vadd.f32 %v1129, %v1217
    %1219 = vmatmul.bf16.gmra.mxu0 %v675
    %v1220 = vpop.f32.mrf.mxu0
    %v1221 = vadd.f32 %v1132, %v1220
    %v1222 = vpop.f32.mrf.mxu0
    %v1223 = vadd.f32 %v1134, %v1222
    %1224 = vmatmul.bf16.gmra.mxu0 %v678
    %v1225 = vpop.f32.mrf.mxu0
    %v1226 = vadd.f32 %v1137, %v1225
    %v1227 = vpop.f32.mrf.mxu0
    %v1228 = vadd.f32 %v1139, %v1227
    %1229 = vmatmul.bf16.gmra.mxu0 %v681
    %v1230 = vpop.f32.mrf.mxu0
    %v1231 = vadd.f32 %v1142, %v1230
    %v1232 = vpop.f32.mrf.mxu0
    %v1233 = vadd.f32 %v1144, %v1232
    %1234 = vmatmul.bf16.gmra.mxu0 %v684
    %v1235 = vpop.f32.mrf.mxu0
    %v1236 = vadd.f32 %v1147, %v1235
    %v1237 = vpop.f32.mrf.mxu0
    %v1238 = vadd.f32 %v1149, %v1237
    %1239 = vdwg.mxu0
    %1240 = vmatpush.bf16.msra.mxu0 %v892
    %1241 = vmatpush.bf16.msra.mxu0 %v890
    %1242 = vmatpush.bf16.msra.mxu0 %v888
    %1243 = vmatpush.bf16.msra.mxu0 %v886
    %1244 = vmatpush.bf16.msra.mxu0 %v884
    %1245 = vmatpush.bf16.msra.mxu0 %v882
    %1246 = vmatpush.bf16.msra.mxu0 %v880
    %1247 = vmatpush.bf16.msra.mxu0 %v878
    %1248 = vmatmul.bf16.gmra.mxu0 %v637
    %v1249 = vpop.f32.mrf.mxu0
    %v1250 = vadd.f32 %v474, %v1249
    %v1251 = vpop.f32.mrf.mxu0
    %v1252 = vadd.f32 %v474, %v1251
    %1253 = vmatmul.bf16.gmra.mxu0 %v640
    %v1254 = vpop.f32.mrf.mxu0
    %v1255 = vadd.f32 %v474, %v1254
    %v1256 = vpop.f32.mrf.mxu0
    %v1257 = vadd.f32 %v474, %v1256
    %1258 = vmatmul.bf16.gmra.mxu0 %v643
    %v1259 = vpop.f32.mrf.mxu0
    %v1260 = vadd.f32 %v474, %v1259
    %v1261 = vpop.f32.mrf.mxu0
    %v1262 = vadd.f32 %v474, %v1261
    %1263 = vmatmul.bf16.gmra.mxu0 %v646
    %v1264 = vpop.f32.mrf.mxu0
    %v1265 = vadd.f32 %v474, %v1264
    %v1266 = vpop.f32.mrf.mxu0
    %v1267 = vadd.f32 %v474, %v1266
    %1268 = vmatmul.bf16.gmra.mxu0 %v649
    %v1269 = vpop.f32.mrf.mxu0
    %v1270 = vadd.f32 %v474, %v1269
    %v1271 = vpop.f32.mrf.mxu0
    %v1272 = vadd.f32 %v474, %v1271
    %1273 = vmatmul.bf16.gmra.mxu0 %v652
    %v1274 = vpop.f32.mrf.mxu0
    %v1275 = vadd.f32 %v474, %v1274
    %v1276 = vpop.f32.mrf.mxu0
    %v1277 = vadd.f32 %v474, %v1276
    %1278 = vmatmul.bf16.gmra.mxu0 %v655
    %v1279 = vpop.f32.mrf.mxu0
    %v1280 = vadd.f32 %v474, %v1279
    %v1281 = vpop.f32.mrf.mxu0
    %v1282 = vadd.f32 %v474, %v1281
    %1283 = vmatmul.bf16.gmra.mxu0 %v658
    %v1284 = vpop.f32.mrf.mxu0
    %v1285 = vadd.f32 %v474, %v1284
    %v1286 = vpop.f32.mrf.mxu0
    %v1287 = vadd.f32 %v474, %v1286
    %1288 = vmatmul.bf16.gmra.mxu0 %v661
    %v1289 = vpop.f32.mrf.mxu0
    %v1290 = vadd.f32 %v474, %v1289
    %v1291 = vpop.f32.mrf.mxu0
    %v1292 = vadd.f32 %v474, %v1291
    %1293 = vmatmul.bf16.gmra.mxu0 %v664
    %v1294 = vpop.f32.mrf.mxu0
    %v1295 = vadd.f32 %v474, %v1294
    %v1296 = vpop.f32.mrf.mxu0
    %v1297 = vadd.f32 %v474, %v1296
    %1298 = vmatmul.bf16.gmra.mxu0 %v667
    %v1299 = vpop.f32.mrf.mxu0
    %v1300 = vadd.f32 %v474, %v1299
    %v1301 = vpop.f32.mrf.mxu0
    %v1302 = vadd.f32 %v474, %v1301
    %1303 = vmatmul.bf16.gmra.mxu0 %v670
    %v1304 = vpop.f32.mrf.mxu0
    %v1305 = vadd.f32 %v474, %v1304
    %v1306 = vpop.f32.mrf.mxu0
    %v1307 = vadd.f32 %v474, %v1306
    %1308 = vmatmul.bf16.gmra.mxu0 %v673
    %v1309 = vpop.f32.mrf.mxu0
    %v1310 = vadd.f32 %v474, %v1309
    %v1311 = vpop.f32.mrf.mxu0
    %v1312 = vadd.f32 %v474, %v1311
    %1313 = vmatmul.bf16.gmra.mxu0 %v676
    %v1314 = vpop.f32.mrf.mxu0
    %v1315 = vadd.f32 %v474, %v1314
    %v1316 = vpop.f32.mrf.mxu0
    %v1317 = vadd.f32 %v474, %v1316
    %1318 = vmatmul.bf16.gmra.mxu0 %v679
    %v1319 = vpop.f32.mrf.mxu0
    %v1320 = vadd.f32 %v474, %v1319
    %v1321 = vpop.f32.mrf.mxu0
    %v1322 = vadd.f32 %v474, %v1321
    %1323 = vmatmul.bf16.gmra.mxu0 %v682
    %v1324 = vpop.f32.mrf.mxu0
    %v1325 = vadd.f32 %v474, %v1324
    %v1326 = vpop.f32.mrf.mxu0
    %v1327 = vadd.f32 %v474, %v1326
    %1328 = vdwg.mxu0
    %1329 = vmatpush.bf16.msra.mxu0 %v908
    %1330 = vmatpush.bf16.msra.mxu0 %v906
    %1331 = vmatpush.bf16.msra.mxu0 %v904
    %1332 = vmatpush.bf16.msra.mxu0 %v902
    %1333 = vmatpush.bf16.msra.mxu0 %v900
    %1334 = vmatpush.bf16.msra.mxu0 %v898
    %1335 = vmatpush.bf16.msra.mxu0 %v896
    %1336 = vmatpush.bf16.msra.mxu0 %v894
    %1337 = vmatmul.bf16.gmra.mxu0 %v638
    %v1338 = vpop.f32.mrf.mxu0
    %v1339 = vadd.f32 %v1250, %v1338
    %v1340 = vpop.f32.mrf.mxu0
    %v1341 = vadd.f32 %v1252, %v1340
    %1342 = vmatmul.bf16.gmra.mxu0 %v641
    %v1343 = vpop.f32.mrf.mxu0
    %v1344 = vadd.f32 %v1255, %v1343
    %v1345 = vpop.f32.mrf.mxu0
    %v1346 = vadd.f32 %v1257, %v1345
    %1347 = vmatmul.bf16.gmra.mxu0 %v644
    %v1348 = vpop.f32.mrf.mxu0
    %v1349 = vadd.f32 %v1260, %v1348
    %v1350 = vpop.f32.mrf.mxu0
    %v1351 = vadd.f32 %v1262, %v1350
    %1352 = vmatmul.bf16.gmra.mxu0 %v647
    %v1353 = vpop.f32.mrf.mxu0
    %v1354 = vadd.f32 %v1265, %v1353
    %v1355 = vpop.f32.mrf.mxu0
    %v1356 = vadd.f32 %v1267, %v1355
    %1357 = vmatmul.bf16.gmra.mxu0 %v650
    %v1358 = vpop.f32.mrf.mxu0
    %v1359 = vadd.f32 %v1270, %v1358
    %v1360 = vpop.f32.mrf.mxu0
    %v1361 = vadd.f32 %v1272, %v1360
    %1362 = vmatmul.bf16.gmra.mxu0 %v653
    %v1363 = vpop.f32.mrf.mxu0
    %v1364 = vadd.f32 %v1275, %v1363
    %v1365 = vpop.f32.mrf.mxu0
    %v1366 = vadd.f32 %v1277, %v1365
    %1367 = vmatmul.bf16.gmra.mxu0 %v656
    %v1368 = vpop.f32.mrf.mxu0
    %v1369 = vadd.f32 %v1280, %v1368
    %v1370 = vpop.f32.mrf.mxu0
    %v1371 = vadd.f32 %v1282, %v1370
    %1372 = vmatmul.bf16.gmra.mxu0 %v659
    %v1373 = vpop.f32.mrf.mxu0
    %v1374 = vadd.f32 %v1285, %v1373
    %v1375 = vpop.f32.mrf.mxu0
    %v1376 = vadd.f32 %v1287, %v1375
    %1377 = vmatmul.bf16.gmra.mxu0 %v662
    %v1378 = vpop.f32.mrf.mxu0
    %v1379 = vadd.f32 %v1290, %v1378
    %v1380 = vpop.f32.mrf.mxu0
    %v1381 = vadd.f32 %v1292, %v1380
    %1382 = vmatmul.bf16.gmra.mxu0 %v665
    %v1383 = vpop.f32.mrf.mxu0
    %v1384 = vadd.f32 %v1295, %v1383
    %v1385 = vpop.f32.mrf.mxu0
    %v1386 = vadd.f32 %v1297, %v1385
    %1387 = vmatmul.bf16.gmra.mxu0 %v668
    %v1388 = vpop.f32.mrf.mxu0
    %v1389 = vadd.f32 %v1300, %v1388
    %v1390 = vpop.f32.mrf.mxu0
    %v1391 = vadd.f32 %v1302, %v1390
    %1392 = vmatmul.bf16.gmra.mxu0 %v671
    %v1393 = vpop.f32.mrf.mxu0
    %v1394 = vadd.f32 %v1305, %v1393
    %v1395 = vpop.f32.mrf.mxu0
    %v1396 = vadd.f32 %v1307, %v1395
    %1397 = vmatmul.bf16.gmra.mxu0 %v674
    %v1398 = vpop.f32.mrf.mxu0
    %v1399 = vadd.f32 %v1310, %v1398
    %v1400 = vpop.f32.mrf.mxu0
    %v1401 = vadd.f32 %v1312, %v1400
    %1402 = vmatmul.bf16.gmra.mxu0 %v677
    %v1403 = vpop.f32.mrf.mxu0
    %v1404 = vadd.f32 %v1315, %v1403
    %v1405 = vpop.f32.mrf.mxu0
    %v1406 = vadd.f32 %v1317, %v1405
    %1407 = vmatmul.bf16.gmra.mxu0 %v680
    %v1408 = vpop.f32.mrf.mxu0
    %v1409 = vadd.f32 %v1320, %v1408
    %v1410 = vpop.f32.mrf.mxu0
    %v1411 = vadd.f32 %v1322, %v1410
    %1412 = vmatmul.bf16.gmra.mxu0 %v683
    %v1413 = vpop.f32.mrf.mxu0
    %v1414 = vadd.f32 %v1325, %v1413
    %v1415 = vpop.f32.mrf.mxu0
    %v1416 = vadd.f32 %v1327, %v1415
    %1417 = vdwg.mxu0
    %1418 = vmatpush.bf16.msra.mxu0 %v924
    %1419 = vmatpush.bf16.msra.mxu0 %v922
    %1420 = vmatpush.bf16.msra.mxu0 %v920
    %1421 = vmatpush.bf16.msra.mxu0 %v918
    %1422 = vmatpush.bf16.msra.mxu0 %v916
    %1423 = vmatpush.bf16.msra.mxu0 %v914
    %1424 = vmatpush.bf16.msra.mxu0 %v912
    %1425 = vmatpush.bf16.msra.mxu0 %v910
    %1426 = vmatmul.bf16.gmra.mxu0 %v639
    %v1427 = vpop.f32.mrf.mxu0
    %v1428 = vadd.f32 %v1339, %v1427
    %v1429 = vpop.f32.mrf.mxu0
    %v1430 = vadd.f32 %v1341, %v1429
    %1431 = vmatmul.bf16.gmra.mxu0 %v642
    %v1432 = vpop.f32.mrf.mxu0
    %v1433 = vadd.f32 %v1344, %v1432
    %v1434 = vpop.f32.mrf.mxu0
    %v1435 = vadd.f32 %v1346, %v1434
    %1436 = vmatmul.bf16.gmra.mxu0 %v645
    %v1437 = vpop.f32.mrf.mxu0
    %v1438 = vadd.f32 %v1349, %v1437
    %v1439 = vpop.f32.mrf.mxu0
    %v1440 = vadd.f32 %v1351, %v1439
    %1441 = vmatmul.bf16.gmra.mxu0 %v648
    %v1442 = vpop.f32.mrf.mxu0
    %v1443 = vadd.f32 %v1354, %v1442
    %v1444 = vpop.f32.mrf.mxu0
    %v1445 = vadd.f32 %v1356, %v1444
    %1446 = vmatmul.bf16.gmra.mxu0 %v651
    %v1447 = vpop.f32.mrf.mxu0
    %v1448 = vadd.f32 %v1359, %v1447
    %v1449 = vpop.f32.mrf.mxu0
    %v1450 = vadd.f32 %v1361, %v1449
    %1451 = vmatmul.bf16.gmra.mxu0 %v654
    %v1452 = vpop.f32.mrf.mxu0
    %v1453 = vadd.f32 %v1364, %v1452
    %v1454 = vpop.f32.mrf.mxu0
    %v1455 = vadd.f32 %v1366, %v1454
    %1456 = vmatmul.bf16.gmra.mxu0 %v657
    %v1457 = vpop.f32.mrf.mxu0
    %v1458 = vadd.f32 %v1369, %v1457
    %v1459 = vpop.f32.mrf.mxu0
    %v1460 = vadd.f32 %v1371, %v1459
    %1461 = vmatmul.bf16.gmra.mxu0 %v660
    %v1462 = vpop.f32.mrf.mxu0
    %v1463 = vadd.f32 %v1374, %v1462
    %v1464 = vpop.f32.mrf.mxu0
    %v1465 = vadd.f32 %v1376, %v1464
    %1466 = vmatmul.bf16.gmra.mxu0 %v663
    %v1467 = vpop.f32.mrf.mxu0
    %v1468 = vadd.f32 %v1379, %v1467
    %v1469 = vpop.f32.mrf.mxu0
    %v1470 = vadd.f32 %v1381, %v1469
    %1471 = vmatmul.bf16.gmra.mxu0 %v666
    %v1472 = vpop.f32.mrf.mxu0
    %v1473 = vadd.f32 %v1384, %v1472
    %v1474 = vpop.f32.mrf.mxu0
    %v1475 = vadd.f32 %v1386, %v1474
    %1476 = vmatmul.bf16.gmra.mxu0 %v669
    %v1477 = vpop.f32.mrf.mxu0
    %v1478 = vadd.f32 %v1389, %v1477
    %v1479 = vpop.f32.mrf.mxu0
    %v1480 = vadd.f32 %v1391, %v1479
    %1481 = vmatmul.bf16.gmra.mxu0 %v672
    %v1482 = vpop.f32.mrf.mxu0
    %v1483 = vadd.f32 %v1394, %v1482
    %v1484 = vpop.f32.mrf.mxu0
    %v1485 = vadd.f32 %v1396, %v1484
    %1486 = vmatmul.bf16.gmra.mxu0 %v675
    %v1487 = vpop.f32.mrf.mxu0
    %v1488 = vadd.f32 %v1399, %v1487
    %v1489 = vpop.f32.mrf.mxu0
    %v1490 = vadd.f32 %v1401, %v1489
    %1491 = vmatmul.bf16.gmra.mxu0 %v678
    %v1492 = vpop.f32.mrf.mxu0
    %v1493 = vadd.f32 %v1404, %v1492
    %v1494 = vpop.f32.mrf.mxu0
    %v1495 = vadd.f32 %v1406, %v1494
    %1496 = vmatmul.bf16.gmra.mxu0 %v681
    %v1497 = vpop.f32.mrf.mxu0
    %v1498 = vadd.f32 %v1409, %v1497
    %v1499 = vpop.f32.mrf.mxu0
    %v1500 = vadd.f32 %v1411, %v1499
    %1501 = vmatmul.bf16.gmra.mxu0 %v684
    %v1502 = vpop.f32.mrf.mxu0
    %v1503 = vadd.f32 %v1414, %v1502
    %v1504 = vpop.f32.mrf.mxu0
    %v1505 = vadd.f32 %v1416, %v1504
    %1506 = vdwg.mxu0
    %v1507 = vmax.f32 %v1161, 0.0
    %v1508 = vmax.f32 %v1428, 0.0
    %v1509 = vmax.f32 %v1163, 0.0
    %v1510 = vmax.f32 %v1430, 0.0
    %v1511 = vmax.f32 %v1166, 0.0
    %v1512 = vmax.f32 %v1433, 0.0
    %v1513 = vmax.f32 %v1168, 0.0
    %v1514 = vmax.f32 %v1435, 0.0
    %v1515 = vmax.f32 %v1171, 0.0
    %v1516 = vmax.f32 %v1438, 0.0
    %v1517 = vmax.f32 %v1173, 0.0
    %v1518 = vmax.f32 %v1440, 0.0
    %v1519 = vmax.f32 %v1176, 0.0
    %v1520 = vmax.f32 %v1443, 0.0
    %v1521 = vmax.f32 %v1178, 0.0
    %v1522 = vmax.f32 %v1445, 0.0
    %v1523 = vmax.f32 %v1181, 0.0
    %v1524 = vmax.f32 %v1448, 0.0
    %v1525 = vmax.f32 %v1183, 0.0
    %v1526 = vmax.f32 %v1450, 0.0
    %v1527 = vmax.f32 %v1186, 0.0
    %v1528 = vmax.f32 %v1453, 0.0
    %v1529 = vmax.f32 %v1188, 0.0
    %v1530 = vmax.f32 %v1455, 0.0
    %v1531 = vmax.f32 %v1191, 0.0
    %v1532 = vmax.f32 %v1458, 0.0
    %v1533 = vmax.f32 %v1193, 0.0
    %v1534 = vmax.f32 %v1460, 0.0
    %v1535 = vmax.f32 %v1196, 0.0
    %v1536 = vmax.f32 %v1463, 0.0
    %v1537 = vmax.f32 %v1198, 0.0
    %v1538 = vmax.f32 %v1465, 0.0
    %v1539 = vmax.f32 %v1201, 0.0
    %v1540 = vmax.f32 %v1468, 0.0
    %v1541 = vmax.f32 %v1203, 0.0
    %v1542 = vmax.f32 %v1470, 0.0
    %v1543 = vmax.f32 %v1206, 0.0
    %v1544 = vmax.f32 %v1473, 0.0
    %v1545 = vmax.f32 %v1208, 0.0
    %v1546 = vmax.f32 %v1475, 0.0
    %v1547 = vmax.f32 %v1211, 0.0
    %v1548 = vmax.f32 %v1478, 0.0
    %v1549 = vmax.f32 %v1213, 0.0
    %v1550 = vmax.f32 %v1480, 0.0
    %v1551 = vmax.f32 %v1216, 0.0
    %v1552 = vmax.f32 %v1483, 0.0
    %v1553 = vmax.f32 %v1218, 0.0
    %v1554 = vmax.f32 %v1485, 0.0
    %v1555 = vmax.f32 %v1221, 0.0
    %v1556 = vmax.f32 %v1488, 0.0
    %v1557 = vmax.f32 %v1223, 0.0
    %v1558 = vmax.f32 %v1490, 0.0
    %v1559 = vmax.f32 %v1226, 0.0
    %v1560 = vmax.f32 %v1493, 0.0
    %v1561 = vmax.f32 %v1228, 0.0
    %v1562 = vmax.f32 %v1495, 0.0
    %v1563 = vmax.f32 %v1231, 0.0
    %v1564 = vmax.f32 %v1498, 0.0
    %v1565 = vmax.f32 %v1233, 0.0
    %v1566 = vmax.f32 %v1500, 0.0
    %v1567 = vmax.f32 %v1236, 0.0
    %v1568 = vmax.f32 %v1503, 0.0
    %v1569 = vmax.f32 %v1238, 0.0
    %v1570 = vmax.f32 %v1505, 0.0
    %v1571 = vpack.c.bf16 %v1508, %v1507
    %v1572 = vpack.c.bf16 %v1510, %v1509
    %v1573 = vpack.c.bf16 %v1512, %v1511
    %v1574 = vpack.c.bf16 %v1514, %v1513
    %v1575 = vpack.c.bf16 %v1516, %v1515
    %v1576 = vpack.c.bf16 %v1518, %v1517
    %v1577 = vpack.c.bf16 %v1520, %v1519
    %v1578 = vpack.c.bf16 %v1522, %v1521
    %v1579 = vpack.c.bf16 %v1524, %v1523
    %v1580 = vpack.c.bf16 %v1526, %v1525
    %v1581 = vpack.c.bf16 %v1528, %v1527
    %v1582 = vpack.c.bf16 %v1530, %v1529
    %v1583 = vpack.c.bf16 %v1532, %v1531
    %v1584 = vpack.c.bf16 %v1534, %v1533
    %v1585 = vpack.c.bf16 %v1536, %v1535
    %v1586 = vpack.c.bf16 %v1538, %v1537
    %v1587 = vpack.c.bf16 %v1540, %v1539
    %v1588 = vpack.c.bf16 %v1542, %v1541
    %v1589 = vpack.c.bf16 %v1544, %v1543
    %v1590 = vpack.c.bf16 %v1546, %v1545
    %v1591 = vpack.c.bf16 %v1548, %v1547
    %v1592 = vpack.c.bf16 %v1550, %v1549
    %v1593 = vpack.c.bf16 %v1552, %v1551
    %v1594 = vpack.c.bf16 %v1554, %v1553
    %v1595 = vpack.c.bf16 %v1556, %v1555
    %v1596 = vpack.c.bf16 %v1558, %v1557
    %v1597 = vpack.c.bf16 %v1560, %v1559
    %v1598 = vpack.c.bf16 %v1562, %v1561
    %v1599 = vpack.c.bf16 %v1564, %v1563
    %v1600 = vpack.c.bf16 %v1566, %v1565
    %v1601 = vpack.c.bf16 %v1568, %v1567
    %v1602 = vpack.c.bf16 %v1570, %v1569
    %v1603 = vunpack.c.l.bf16 %v1571
    %v1604 = vunpack.c.h.bf16 %v1571
    %v1605 = vunpack.c.l.bf16 %v1572
    %v1606 = vunpack.c.h.bf16 %v1572
    %v1607 = vunpack.c.l.bf16 %v1573
    %v1608 = vunpack.c.h.bf16 %v1573
    %v1609 = vunpack.c.l.bf16 %v1574
    %v1610 = vunpack.c.h.bf16 %v1574
    %v1611 = vunpack.c.l.bf16 %v1575
    %v1612 = vunpack.c.h.bf16 %v1575
    %v1613 = vunpack.c.l.bf16 %v1576
    %v1614 = vunpack.c.h.bf16 %v1576
    %v1615 = vunpack.c.l.bf16 %v1577
    %v1616 = vunpack.c.h.bf16 %v1577
    %v1617 = vunpack.c.l.bf16 %v1578
    %v1618 = vunpack.c.h.bf16 %v1578
    %v1619 = vunpack.c.l.bf16 %v1579
    %v1620 = vunpack.c.h.bf16 %v1579
    %v1621 = vunpack.c.l.bf16 %v1580
    %v1622 = vunpack.c.h.bf16 %v1580
    %v1623 = vunpack.c.l.bf16 %v1581
    %v1624 = vunpack.c.h.bf16 %v1581
    %v1625 = vunpack.c.l.bf16 %v1582
    %v1626 = vunpack.c.h.bf16 %v1582
    %v1627 = vunpack.c.l.bf16 %v1583
    %v1628 = vunpack.c.h.bf16 %v1583
    %v1629 = vunpack.c.l.bf16 %v1584
    %v1630 = vunpack.c.h.bf16 %v1584
    %v1631 = vunpack.c.l.bf16 %v1585
    %v1632 = vunpack.c.h.bf16 %v1585
    %v1633 = vunpack.c.l.bf16 %v1586
    %v1634 = vunpack.c.h.bf16 %v1586
    %v1635 = vunpack.c.l.bf16 %v1587
    %v1636 = vunpack.c.h.bf16 %v1587
    %v1637 = vunpack.c.l.bf16 %v1588
    %v1638 = vunpack.c.h.bf16 %v1588
    %v1639 = vunpack.c.l.bf16 %v1589
    %v1640 = vunpack.c.h.bf16 %v1589
    %v1641 = vunpack.c.l.bf16 %v1590
    %v1642 = vunpack.c.h.bf16 %v1590
    %v1643 = vunpack.c.l.bf16 %v1591
    %v1644 = vunpack.c.h.bf16 %v1591
    %v1645 = vunpack.c.l.bf16 %v1592
    %v1646 = vunpack.c.h.bf16 %v1592
    %v1647 = vunpack.c.l.bf16 %v1593
    %v1648 = vunpack.c.h.bf16 %v1593
    %v1649 = vunpack.c.l.bf16 %v1594
    %v1650 = vunpack.c.h.bf16 %v1594
    %v1651 = vunpack.c.l.bf16 %v1595
    %v1652 = vunpack.c.h.bf16 %v1595
    %v1653 = vunpack.c.l.bf16 %v1596
    %v1654 = vunpack.c.h.bf16 %v1596
    %v1655 = vunpack.c.l.bf16 %v1597
    %v1656 = vunpack.c.h.bf16 %v1597
    %v1657 = vunpack.c.l.bf16 %v1598
    %v1658 = vunpack.c.h.bf16 %v1598
    %v1659 = vunpack.c.l.bf16 %v1599
    %v1660 = vunpack.c.h.bf16 %v1599
    %v1661 = vunpack.c.l.bf16 %v1600
    %v1662 = vunpack.c.h.bf16 %v1600
    %v1663 = vunpack.c.l.bf16 %v1601
    %v1664 = vunpack.c.h.bf16 %v1601
    %v1665 = vunpack.c.l.bf16 %v1602
    %v1666 = vunpack.c.h.bf16 %v1602
    %v1667 = vadd.f32 %v1603, %v1603
    %v1668 = vadd.f32 %v1604, %v1604
    %v1669 = vadd.f32 %v1605, %v1605
    %v1670 = vadd.f32 %v1606, %v1606
    %v1671 = vadd.f32 %v1607, %v1607
    %v1672 = vadd.f32 %v1608, %v1608
    %v1673 = vadd.f32 %v1609, %v1609
    %v1674 = vadd.f32 %v1610, %v1610
    %v1675 = vadd.f32 %v1611, %v1611
    %v1676 = vadd.f32 %v1612, %v1612
    %v1677 = vadd.f32 %v1613, %v1613
    %v1678 = vadd.f32 %v1614, %v1614
    %v1679 = vadd.f32 %v1615, %v1615
    %v1680 = vadd.f32 %v1616, %v1616
    %v1681 = vadd.f32 %v1617, %v1617
    %v1682 = vadd.f32 %v1618, %v1618
    %v1683 = vadd.f32 %v1619, %v1619
    %v1684 = vadd.f32 %v1620, %v1620
    %v1685 = vadd.f32 %v1621, %v1621
    %v1686 = vadd.f32 %v1622, %v1622
    %v1687 = vadd.f32 %v1623, %v1623
    %v1688 = vadd.f32 %v1624, %v1624
    %v1689 = vadd.f32 %v1625, %v1625
    %v1690 = vadd.f32 %v1626, %v1626
    %v1691 = vadd.f32 %v1627, %v1627
    %v1692 = vadd.f32 %v1628, %v1628
    %v1693 = vadd.f32 %v1629, %v1629
    %v1694 = vadd.f32 %v1630, %v1630
    %v1695 = vadd.f32 %v1631, %v1631
    %v1696 = vadd.f32 %v1632, %v1632
    %v1697 = vadd.f32 %v1633, %v1633
    %v1698 = vadd.f32 %v1634, %v1634
    %v1699 = vadd.f32 %v1635, %v1635
    %v1700 = vadd.f32 %v1636, %v1636
    %v1701 = vadd.f32 %v1637, %v1637
    %v1702 = vadd.f32 %v1638, %v1638
    %v1703 = vadd.f32 %v1639, %v1639
    %v1704 = vadd.f32 %v1640, %v1640
    %v1705 = vadd.f32 %v1641, %v1641
    %v1706 = vadd.f32 %v1642, %v1642
    %v1707 = vadd.f32 %v1643, %v1643
    %v1708 = vadd.f32 %v1644, %v1644
    %v1709 = vadd.f32 %v1645, %v1645
    %v1710 = vadd.f32 %v1646, %v1646
    %v1711 = vadd.f32 %v1647, %v1647
    %v1712 = vadd.f32 %v1648, %v1648
    %v1713 = vadd.f32 %v1649, %v1649
    %v1714 = vadd.f32 %v1650, %v1650
    %v1715 = vadd.f32 %v1651, %v1651
    %v1716 = vadd.f32 %v1652, %v1652
    %v1717 = vadd.f32 %v1653, %v1653
    %v1718 = vadd.f32 %v1654, %v1654
    %v1719 = vadd.f32 %v1655, %v1655
    %v1720 = vadd.f32 %v1656, %v1656
    %v1721 = vadd.f32 %v1657, %v1657
    %v1722 = vadd.f32 %v1658, %v1658
    %v1723 = vadd.f32 %v1659, %v1659
    %v1724 = vadd.f32 %v1660, %v1660
    %v1725 = vadd.f32 %v1661, %v1661
    %v1726 = vadd.f32 %v1662, %v1662
    %v1727 = vadd.f32 %v1663, %v1663
    %v1728 = vadd.f32 %v1664, %v1664
    %v1729 = vadd.f32 %v1665, %v1665
    %v1730 = vadd.f32 %v1666, %v1666
    %v1731 = vpack.c.bf16 %v1669, %v1667
    %v1732 = vpack.c.bf16 %v1670, %v1668
    %v1733 = vpack.c.bf16 %v1673, %v1671
    %v1734 = vpack.c.bf16 %v1674, %v1672
    %v1735 = vpack.c.bf16 %v1677, %v1675
    %v1736 = vpack.c.bf16 %v1678, %v1676
    %v1737 = vpack.c.bf16 %v1681, %v1679
    %v1738 = vpack.c.bf16 %v1682, %v1680
    %v1739 = vpack.c.bf16 %v1685, %v1683
    %v1740 = vpack.c.bf16 %v1686, %v1684
    %v1741 = vpack.c.bf16 %v1689, %v1687
    %v1742 = vpack.c.bf16 %v1690, %v1688
    %v1743 = vpack.c.bf16 %v1693, %v1691
    %v1744 = vpack.c.bf16 %v1694, %v1692
    %v1745 = vpack.c.bf16 %v1697, %v1695
    %v1746 = vpack.c.bf16 %v1698, %v1696
    %v1747 = vpack.c.bf16 %v1701, %v1699
    %v1748 = vpack.c.bf16 %v1702, %v1700
    %v1749 = vpack.c.bf16 %v1705, %v1703
    %v1750 = vpack.c.bf16 %v1706, %v1704
    %v1751 = vpack.c.bf16 %v1709, %v1707
    %v1752 = vpack.c.bf16 %v1710, %v1708
    %v1753 = vpack.c.bf16 %v1713, %v1711
    %v1754 = vpack.c.bf16 %v1714, %v1712
    %v1755 = vpack.c.bf16 %v1717, %v1715
    %v1756 = vpack.c.bf16 %v1718, %v1716
    %v1757 = vpack.c.bf16 %v1721, %v1719
    %v1758 = vpack.c.bf16 %v1722, %v1720
    %v1759 = vpack.c.bf16 %v1725, %v1723
    %v1760 = vpack.c.bf16 %v1726, %v1724
    %v1761 = vpack.c.bf16 %v1729, %v1727
    %v1762 = vpack.c.bf16 %v1730, %v1728
    %v1763 = vld [vmem:[%s3] sm:$0xff]
    %v1764 = vld [vmem:[%s3 + $0x8] sm:$0xff]
    %v1765 = vld [vmem:[%s3 + $0x10] sm:$0xff]
    %v1766 = vld [vmem:[%s3 + $0x18] sm:$0xff]
    %v1767 = vld [vmem:[%s3 + $0x20] sm:$0xff]
    %v1768 = vld [vmem:[%s3 + $0x28] sm:$0xff]
    %v1769 = vld [vmem:[%s3 + $0x30] sm:$0xff]
    %v1770 = vld [vmem:[%s3 + $0x38] sm:$0xff]
    %v1771 = vld [vmem:[%s3 + $0x40] sm:$0xff]
    %v1772 = vld [vmem:[%s3 + $0x48] sm:$0xff]
    %v1773 = vld [vmem:[%s3 + $0x50] sm:$0xff]
    %v1774 = vld [vmem:[%s3 + $0x58] sm:$0xff]
    %v1775 = vld [vmem:[%s3 + $0x60] sm:$0xff]
    %v1776 = vld [vmem:[%s3 + $0x68] sm:$0xff]
    %v1777 = vld [vmem:[%s3 + $0x70] sm:$0xff]
    %v1778 = vld [vmem:[%s3 + $0x78] sm:$0xff]
    %v1779 = vld [vmem:[%s3 + $0x80] sm:$0xff]
    %v1780 = vld [vmem:[%s3 + $0x88] sm:$0xff]
    %v1781 = vld [vmem:[%s3 + $0x90] sm:$0xff]
    %v1782 = vld [vmem:[%s3 + $0x98] sm:$0xff]
    %v1783 = vld [vmem:[%s3 + $0xa0] sm:$0xff]
    %v1784 = vld [vmem:[%s3 + $0xa8] sm:$0xff]
    %v1785 = vld [vmem:[%s3 + $0xb0] sm:$0xff]
    %v1786 = vld [vmem:[%s3 + $0xb8] sm:$0xff]
    %v1787 = vld [vmem:[%s3 + $0xc0] sm:$0xff]
    %v1788 = vld [vmem:[%s3 + $0xc8] sm:$0xff]
    %v1789 = vld [vmem:[%s3 + $0xd0] sm:$0xff]
    %v1790 = vld [vmem:[%s3 + $0xd8] sm:$0xff]
    %v1791 = vld [vmem:[%s3 + $0xe0] sm:$0xff]
    %v1792 = vld [vmem:[%s3 + $0xe8] sm:$0xff]
    %v1793 = vld [vmem:[%s3 + $0xf0] sm:$0xff]
    %v1794 = vld [vmem:[%s3 + $0xf8] sm:$0xff]
    %v1795 = vld [vmem:[%s4] sm:$0x3]
    %v1797 = vperm.slane %v1795, 0
    %v1798 = vperm.slane %v1795, 1
    %v1833 = vunpack.c.l.b16 %v1763
    %v1834 = vunpack.c.h.b16 %v1763
    %v1835 = vunpack.c.l.b16 %v1764
    %v1836 = vunpack.c.h.b16 %v1764
    %v1837 = vunpack.c.l.b16 %v1765
    %v1838 = vunpack.c.h.b16 %v1765
    %v1839 = vunpack.c.l.b16 %v1766
    %v1840 = vunpack.c.h.b16 %v1766
    %v1841 = vunpack.c.l.b16 %v1767
    %v1842 = vunpack.c.h.b16 %v1767
    %v1843 = vunpack.c.l.b16 %v1768
    %v1844 = vunpack.c.h.b16 %v1768
    %v1845 = vunpack.c.l.b16 %v1769
    %v1846 = vunpack.c.h.b16 %v1769
    %v1847 = vunpack.c.l.b16 %v1770
    %v1848 = vunpack.c.h.b16 %v1770
    %v1849 = vunpack.c.l.b16 %v1771
    %v1850 = vunpack.c.h.b16 %v1771
    %v1851 = vunpack.c.l.b16 %v1772
    %v1852 = vunpack.c.h.b16 %v1772
    %v1853 = vunpack.c.l.b16 %v1773
    %v1854 = vunpack.c.h.b16 %v1773
    %v1855 = vunpack.c.l.b16 %v1774
    %v1856 = vunpack.c.h.b16 %v1774
    %v1857 = vunpack.c.l.b16 %v1775
    %v1858 = vunpack.c.h.b16 %v1775
    %v1859 = vunpack.c.l.b16 %v1776
    %v1860 = vunpack.c.h.b16 %v1776
    %v1861 = vunpack.c.l.b16 %v1777
    %v1862 = vunpack.c.h.b16 %v1777
    %v1863 = vunpack.c.l.b16 %v1778
    %v1864 = vunpack.c.h.b16 %v1778
    %v1865 = vunpack.c.l.b16 %v1779
    %v1866 = vunpack.c.h.b16 %v1779
    %v1867 = vunpack.c.l.b16 %v1780
    %v1868 = vunpack.c.h.b16 %v1780
    %v1869 = vunpack.c.l.b16 %v1781
    %v1870 = vunpack.c.h.b16 %v1781
    %v1871 = vunpack.c.l.b16 %v1782
    %v1872 = vunpack.c.h.b16 %v1782
    %v1873 = vunpack.c.l.b16 %v1783
    %v1874 = vunpack.c.h.b16 %v1783
    %v1875 = vunpack.c.l.b16 %v1784
    %v1876 = vunpack.c.h.b16 %v1784
    %v1877 = vunpack.c.l.b16 %v1785
    %v1878 = vunpack.c.h.b16 %v1785
    %v1879 = vunpack.c.l.b16 %v1786
    %v1880 = vunpack.c.h.b16 %v1786
    %v1881 = vunpack.c.l.b16 %v1787
    %v1882 = vunpack.c.h.b16 %v1787
    %v1883 = vunpack.c.l.b16 %v1788
    %v1884 = vunpack.c.h.b16 %v1788
    %v1885 = vunpack.c.l.b16 %v1789
    %v1886 = vunpack.c.h.b16 %v1789
    %v1887 = vunpack.c.l.b16 %v1790
    %v1888 = vunpack.c.h.b16 %v1790
    %v1889 = vunpack.c.l.b16 %v1791
    %v1890 = vunpack.c.h.b16 %v1791
    %v1891 = vunpack.c.l.b16 %v1792
    %v1892 = vunpack.c.h.b16 %v1792
    %v1893 = vunpack.c.l.b16 %v1793
    %v1894 = vunpack.c.h.b16 %v1793
    %v1895 = vunpack.c.l.b16 %v1794
    %v1896 = vunpack.c.h.b16 %v1794
    %v1897 = vpack.c.b16 %v1835, %v1833
    %v1898 = vpack.c.b16 %v1836, %v1834
    %v1899 = vpack.c.b16 %v1839, %v1837
    %v1900 = vpack.c.b16 %v1840, %v1838
    %v1901 = vpack.c.b16 %v1843, %v1841
    %v1902 = vpack.c.b16 %v1844, %v1842
    %v1903 = vpack.c.b16 %v1847, %v1845
    %v1904 = vpack.c.b16 %v1848, %v1846
    %v1905 = vpack.c.b16 %v1851, %v1849
    %v1906 = vpack.c.b16 %v1852, %v1850
    %v1907 = vpack.c.b16 %v1855, %v1853
    %v1908 = vpack.c.b16 %v1856, %v1854
    %v1909 = vpack.c.b16 %v1859, %v1857
    %v1910 = vpack.c.b16 %v1860, %v1858
    %v1911 = vpack.c.b16 %v1863, %v1861
    %v1912 = vpack.c.b16 %v1864, %v1862
    %v1913 = vpack.c.b16 %v1867, %v1865
    %v1914 = vpack.c.b16 %v1868, %v1866
    %v1915 = vpack.c.b16 %v1871, %v1869
    %v1916 = vpack.c.b16 %v1872, %v1870
    %v1917 = vpack.c.b16 %v1875, %v1873
    %v1918 = vpack.c.b16 %v1876, %v1874
    %v1919 = vpack.c.b16 %v1879, %v1877
    %v1920 = vpack.c.b16 %v1880, %v1878
    %v1921 = vpack.c.b16 %v1883, %v1881
    %v1922 = vpack.c.b16 %v1884, %v1882
    %v1923 = vpack.c.b16 %v1887, %v1885
    %v1924 = vpack.c.b16 %v1888, %v1886
    %v1925 = vpack.c.b16 %v1891, %v1889
    %v1926 = vpack.c.b16 %v1892, %v1890
    %v1927 = vpack.c.b16 %v1895, %v1893
    %v1928 = vpack.c.b16 %v1896, %v1894
    %1961 = vmatpush.bf16.msra.mxu0 %v1911
    %1962 = vmatpush.bf16.msra.mxu0 %v1909
    %1963 = vmatpush.bf16.msra.mxu0 %v1907
    %1964 = vmatpush.bf16.msra.mxu0 %v1905
    %1965 = vmatpush.bf16.msra.mxu0 %v1903
    %1966 = vmatpush.bf16.msra.mxu0 %v1901
    %1967 = vmatpush.bf16.msra.mxu0 %v1899
    %1968 = vmatpush.bf16.msra.mxu0 %v1897
    %1969 = vmatmul.bf16.gmra.mxu0 %v1731
    %v1970 = vpop.f32.mrf.mxu0
    %v1971 = vadd.f32 %v1797, %v1970
    %v1972 = vpop.f32.mrf.mxu0
    %v1973 = vadd.f32 %v1797, %v1972
    %1974 = vmatmul.bf16.gmra.mxu0 %v1733
    %v1975 = vpop.f32.mrf.mxu0
    %v1976 = vadd.f32 %v1797, %v1975
    %v1977 = vpop.f32.mrf.mxu0
    %v1978 = vadd.f32 %v1797, %v1977
    %1979 = vmatmul.bf16.gmra.mxu0 %v1735
    %v1980 = vpop.f32.mrf.mxu0
    %v1981 = vadd.f32 %v1797, %v1980
    %v1982 = vpop.f32.mrf.mxu0
    %v1983 = vadd.f32 %v1797, %v1982
    %1984 = vmatmul.bf16.gmra.mxu0 %v1737
    %v1985 = vpop.f32.mrf.mxu0
    %v1986 = vadd.f32 %v1797, %v1985
    %v1987 = vpop.f32.mrf.mxu0
    %v1988 = vadd.f32 %v1797, %v1987
    %1989 = vmatmul.bf16.gmra.mxu0 %v1739
    %v1990 = vpop.f32.mrf.mxu0
    %v1991 = vadd.f32 %v1797, %v1990
    %v1992 = vpop.f32.mrf.mxu0
    %v1993 = vadd.f32 %v1797, %v1992
    %1994 = vmatmul.bf16.gmra.mxu0 %v1741
    %v1995 = vpop.f32.mrf.mxu0
    %v1996 = vadd.f32 %v1797, %v1995
    %v1997 = vpop.f32.mrf.mxu0
    %v1998 = vadd.f32 %v1797, %v1997
    %1999 = vmatmul.bf16.gmra.mxu0 %v1743
    %v2000 = vpop.f32.mrf.mxu0
    %v2001 = vadd.f32 %v1797, %v2000
    %v2002 = vpop.f32.mrf.mxu0
    %v2003 = vadd.f32 %v1797, %v2002
    %2004 = vmatmul.bf16.gmra.mxu0 %v1745
    %v2005 = vpop.f32.mrf.mxu0
    %v2006 = vadd.f32 %v1797, %v2005
    %v2007 = vpop.f32.mrf.mxu0
    %v2008 = vadd.f32 %v1797, %v2007
    %2009 = vmatmul.bf16.gmra.mxu0 %v1747
    %v2010 = vpop.f32.mrf.mxu0
    %v2011 = vadd.f32 %v1797, %v2010
    %v2012 = vpop.f32.mrf.mxu0
    %v2013 = vadd.f32 %v1797, %v2012
    %2014 = vmatmul.bf16.gmra.mxu0 %v1749
    %v2015 = vpop.f32.mrf.mxu0
    %v2016 = vadd.f32 %v1797, %v2015
    %v2017 = vpop.f32.mrf.mxu0
    %v2018 = vadd.f32 %v1797, %v2017
    %2019 = vmatmul.bf16.gmra.mxu0 %v1751
    %v2020 = vpop.f32.mrf.mxu0
    %v2021 = vadd.f32 %v1797, %v2020
    %v2022 = vpop.f32.mrf.mxu0
    %v2023 = vadd.f32 %v1797, %v2022
    %2024 = vmatmul.bf16.gmra.mxu0 %v1753
    %v2025 = vpop.f32.mrf.mxu0
    %v2026 = vadd.f32 %v1797, %v2025
    %v2027 = vpop.f32.mrf.mxu0
    %v2028 = vadd.f32 %v1797, %v2027
    %2029 = vmatmul.bf16.gmra.mxu0 %v1755
    %v2030 = vpop.f32.mrf.mxu0
    %v2031 = vadd.f32 %v1797, %v2030
    %v2032 = vpop.f32.mrf.mxu0
    %v2033 = vadd.f32 %v1797, %v2032
    %2034 = vmatmul.bf16.gmra.mxu0 %v1757
    %v2035 = vpop.f32.mrf.mxu0
    %v2036 = vadd.f32 %v1797, %v2035
    %v2037 = vpop.f32.mrf.mxu0
    %v2038 = vadd.f32 %v1797, %v2037
    %2039 = vmatmul.bf16.gmra.mxu0 %v1759
    %v2040 = vpop.f32.mrf.mxu0
    %v2041 = vadd.f32 %v1797, %v2040
    %v2042 = vpop.f32.mrf.mxu0
    %v2043 = vadd.f32 %v1797, %v2042
    %2044 = vmatmul.bf16.gmra.mxu0 %v1761
    %v2045 = vpop.f32.mrf.mxu0
    %v2046 = vadd.f32 %v1797, %v2045
    %v2047 = vpop.f32.mrf.mxu0
    %v2048 = vadd.f32 %v1797, %v2047
    %2049 = vdwg.mxu0
    %2050 = vmatpush.bf16.msra.mxu0 %v1927
    %2051 = vmatpush.bf16.msra.mxu0 %v1925
    %2052 = vmatpush.bf16.msra.mxu0 %v1923
    %2053 = vmatpush.bf16.msra.mxu0 %v1921
    %2054 = vmatpush.bf16.msra.mxu0 %v1919
    %2055 = vmatpush.bf16.msra.mxu0 %v1917
    %2056 = vmatpush.bf16.msra.mxu0 %v1915
    %2057 = vmatpush.bf16.msra.mxu0 %v1913
    %2058 = vmatmul.bf16.gmra.mxu0 %v1732
    %v2059 = vpop.f32.mrf.mxu0
    %v2060 = vadd.f32 %v1971, %v2059
    %v2061 = vpop.f32.mrf.mxu0
    %v2062 = vadd.f32 %v1973, %v2061
    %2063 = vmatmul.bf16.gmra.mxu0 %v1734
    %v2064 = vpop.f32.mrf.mxu0
    %v2065 = vadd.f32 %v1976, %v2064
    %v2066 = vpop.f32.mrf.mxu0
    %v2067 = vadd.f32 %v1978, %v2066
    %2068 = vmatmul.bf16.gmra.mxu0 %v1736
    %v2069 = vpop.f32.mrf.mxu0
    %v2070 = vadd.f32 %v1981, %v2069
    %v2071 = vpop.f32.mrf.mxu0
    %v2072 = vadd.f32 %v1983, %v2071
    %2073 = vmatmul.bf16.gmra.mxu0 %v1738
    %v2074 = vpop.f32.mrf.mxu0
    %v2075 = vadd.f32 %v1986, %v2074
    %v2076 = vpop.f32.mrf.mxu0
    %v2077 = vadd.f32 %v1988, %v2076
    %2078 = vmatmul.bf16.gmra.mxu0 %v1740
    %v2079 = vpop.f32.mrf.mxu0
    %v2080 = vadd.f32 %v1991, %v2079
    %v2081 = vpop.f32.mrf.mxu0
    %v2082 = vadd.f32 %v1993, %v2081
    %2083 = vmatmul.bf16.gmra.mxu0 %v1742
    %v2084 = vpop.f32.mrf.mxu0
    %v2085 = vadd.f32 %v1996, %v2084
    %v2086 = vpop.f32.mrf.mxu0
    %v2087 = vadd.f32 %v1998, %v2086
    %2088 = vmatmul.bf16.gmra.mxu0 %v1744
    %v2089 = vpop.f32.mrf.mxu0
    %v2090 = vadd.f32 %v2001, %v2089
    %v2091 = vpop.f32.mrf.mxu0
    %v2092 = vadd.f32 %v2003, %v2091
    %2093 = vmatmul.bf16.gmra.mxu0 %v1746
    %v2094 = vpop.f32.mrf.mxu0
    %v2095 = vadd.f32 %v2006, %v2094
    %v2096 = vpop.f32.mrf.mxu0
    %v2097 = vadd.f32 %v2008, %v2096
    %2098 = vmatmul.bf16.gmra.mxu0 %v1748
    %v2099 = vpop.f32.mrf.mxu0
    %v2100 = vadd.f32 %v2011, %v2099
    %v2101 = vpop.f32.mrf.mxu0
    %v2102 = vadd.f32 %v2013, %v2101
    %2103 = vmatmul.bf16.gmra.mxu0 %v1750
    %v2104 = vpop.f32.mrf.mxu0
    %v2105 = vadd.f32 %v2016, %v2104
    %v2106 = vpop.f32.mrf.mxu0
    %v2107 = vadd.f32 %v2018, %v2106
    %2108 = vmatmul.bf16.gmra.mxu0 %v1752
    %v2109 = vpop.f32.mrf.mxu0
    %v2110 = vadd.f32 %v2021, %v2109
    %v2111 = vpop.f32.mrf.mxu0
    %v2112 = vadd.f32 %v2023, %v2111
    %2113 = vmatmul.bf16.gmra.mxu0 %v1754
    %v2114 = vpop.f32.mrf.mxu0
    %v2115 = vadd.f32 %v2026, %v2114
    %v2116 = vpop.f32.mrf.mxu0
    %v2117 = vadd.f32 %v2028, %v2116
    %2118 = vmatmul.bf16.gmra.mxu0 %v1756
    %v2119 = vpop.f32.mrf.mxu0
    %v2120 = vadd.f32 %v2031, %v2119
    %v2121 = vpop.f32.mrf.mxu0
    %v2122 = vadd.f32 %v2033, %v2121
    %2123 = vmatmul.bf16.gmra.mxu0 %v1758
    %v2124 = vpop.f32.mrf.mxu0
    %v2125 = vadd.f32 %v2036, %v2124
    %v2126 = vpop.f32.mrf.mxu0
    %v2127 = vadd.f32 %v2038, %v2126
    %2128 = vmatmul.bf16.gmra.mxu0 %v1760
    %v2129 = vpop.f32.mrf.mxu0
    %v2130 = vadd.f32 %v2041, %v2129
    %v2131 = vpop.f32.mrf.mxu0
    %v2132 = vadd.f32 %v2043, %v2131
    %2133 = vmatmul.bf16.gmra.mxu0 %v1762
    %v2134 = vpop.f32.mrf.mxu0
    %v2135 = vadd.f32 %v2046, %v2134
    %v2136 = vpop.f32.mrf.mxu0
    %v2137 = vadd.f32 %v2048, %v2136
    %2138 = vdwg.mxu0
    %2139 = vmatpush.bf16.msra.mxu0 %v1912
    %2140 = vmatpush.bf16.msra.mxu0 %v1910
    %2141 = vmatpush.bf16.msra.mxu0 %v1908
    %2142 = vmatpush.bf16.msra.mxu0 %v1906
    %2143 = vmatpush.bf16.msra.mxu0 %v1904
    %2144 = vmatpush.bf16.msra.mxu0 %v1902
    %2145 = vmatpush.bf16.msra.mxu0 %v1900
    %2146 = vmatpush.bf16.msra.mxu0 %v1898
    %2147 = vmatmul.bf16.gmra.mxu0 %v1731
    %v2148 = vpop.f32.mrf.mxu0
    %v2149 = vadd.f32 %v1798, %v2148
    %v2150 = vpop.f32.mrf.mxu0
    %v2151 = vadd.f32 %v1798, %v2150
    %2152 = vmatmul.bf16.gmra.mxu0 %v1733
    %v2153 = vpop.f32.mrf.mxu0
    %v2154 = vadd.f32 %v1798, %v2153
    %v2155 = vpop.f32.mrf.mxu0
    %v2156 = vadd.f32 %v1798, %v2155
    %2157 = vmatmul.bf16.gmra.mxu0 %v1735
    %v2158 = vpop.f32.mrf.mxu0
    %v2159 = vadd.f32 %v1798, %v2158
    %v2160 = vpop.f32.mrf.mxu0
    %v2161 = vadd.f32 %v1798, %v2160
    %2162 = vmatmul.bf16.gmra.mxu0 %v1737
    %v2163 = vpop.f32.mrf.mxu0
    %v2164 = vadd.f32 %v1798, %v2163
    %v2165 = vpop.f32.mrf.mxu0
    %v2166 = vadd.f32 %v1798, %v2165
    %2167 = vmatmul.bf16.gmra.mxu0 %v1739
    %v2168 = vpop.f32.mrf.mxu0
    %v2169 = vadd.f32 %v1798, %v2168
    %v2170 = vpop.f32.mrf.mxu0
    %v2171 = vadd.f32 %v1798, %v2170
    %2172 = vmatmul.bf16.gmra.mxu0 %v1741
    %v2173 = vpop.f32.mrf.mxu0
    %v2174 = vadd.f32 %v1798, %v2173
    %v2175 = vpop.f32.mrf.mxu0
    %v2176 = vadd.f32 %v1798, %v2175
    %2177 = vmatmul.bf16.gmra.mxu0 %v1743
    %v2178 = vpop.f32.mrf.mxu0
    %v2179 = vadd.f32 %v1798, %v2178
    %v2180 = vpop.f32.mrf.mxu0
    %v2181 = vadd.f32 %v1798, %v2180
    %2182 = vmatmul.bf16.gmra.mxu0 %v1745
    %v2183 = vpop.f32.mrf.mxu0
    %v2184 = vadd.f32 %v1798, %v2183
    %v2185 = vpop.f32.mrf.mxu0
    %v2186 = vadd.f32 %v1798, %v2185
    %2187 = vmatmul.bf16.gmra.mxu0 %v1747
    %v2188 = vpop.f32.mrf.mxu0
    %v2189 = vadd.f32 %v1798, %v2188
    %v2190 = vpop.f32.mrf.mxu0
    %v2191 = vadd.f32 %v1798, %v2190
    %2192 = vmatmul.bf16.gmra.mxu0 %v1749
    %v2193 = vpop.f32.mrf.mxu0
    %v2194 = vadd.f32 %v1798, %v2193
    %v2195 = vpop.f32.mrf.mxu0
    %v2196 = vadd.f32 %v1798, %v2195
    %2197 = vmatmul.bf16.gmra.mxu0 %v1751
    %v2198 = vpop.f32.mrf.mxu0
    %v2199 = vadd.f32 %v1798, %v2198
    %v2200 = vpop.f32.mrf.mxu0
    %v2201 = vadd.f32 %v1798, %v2200
    %2202 = vmatmul.bf16.gmra.mxu0 %v1753
    %v2203 = vpop.f32.mrf.mxu0
    %v2204 = vadd.f32 %v1798, %v2203
    %v2205 = vpop.f32.mrf.mxu0
    %v2206 = vadd.f32 %v1798, %v2205
    %2207 = vmatmul.bf16.gmra.mxu0 %v1755
    %v2208 = vpop.f32.mrf.mxu0
    %v2209 = vadd.f32 %v1798, %v2208
    %v2210 = vpop.f32.mrf.mxu0
    %v2211 = vadd.f32 %v1798, %v2210
    %2212 = vmatmul.bf16.gmra.mxu0 %v1757
    %v2213 = vpop.f32.mrf.mxu0
    %v2214 = vadd.f32 %v1798, %v2213
    %v2215 = vpop.f32.mrf.mxu0
    %v2216 = vadd.f32 %v1798, %v2215
    %2217 = vmatmul.bf16.gmra.mxu0 %v1759
    %v2218 = vpop.f32.mrf.mxu0
    %v2219 = vadd.f32 %v1798, %v2218
    %v2220 = vpop.f32.mrf.mxu0
    %v2221 = vadd.f32 %v1798, %v2220
    %2222 = vmatmul.bf16.gmra.mxu0 %v1761
    %v2223 = vpop.f32.mrf.mxu0
    %v2224 = vadd.f32 %v1798, %v2223
    %v2225 = vpop.f32.mrf.mxu0
    %v2226 = vadd.f32 %v1798, %v2225
    %2227 = vdwg.mxu0
    %2228 = vmatpush.bf16.msra.mxu0 %v1928
    %2229 = vmatpush.bf16.msra.mxu0 %v1926
    %2230 = vmatpush.bf16.msra.mxu0 %v1924
    %2231 = vmatpush.bf16.msra.mxu0 %v1922
    %2232 = vmatpush.bf16.msra.mxu0 %v1920
    %2233 = vmatpush.bf16.msra.mxu0 %v1918
    %2234 = vmatpush.bf16.msra.mxu0 %v1916
    %2235 = vmatpush.bf16.msra.mxu0 %v1914
    %2236 = vmatmul.bf16.gmra.mxu0 %v1732
    %v2237 = vpop.f32.mrf.mxu0
    %v2238 = vadd.f32 %v2149, %v2237
    %v2239 = vpop.f32.mrf.mxu0
    %v2240 = vadd.f32 %v2151, %v2239
    %2241 = vmatmul.bf16.gmra.mxu0 %v1734
    %v2242 = vpop.f32.mrf.mxu0
    %v2243 = vadd.f32 %v2154, %v2242
    %v2244 = vpop.f32.mrf.mxu0
    %v2245 = vadd.f32 %v2156, %v2244
    %2246 = vmatmul.bf16.gmra.mxu0 %v1736
    %v2247 = vpop.f32.mrf.mxu0
    %v2248 = vadd.f32 %v2159, %v2247
    %v2249 = vpop.f32.mrf.mxu0
    %v2250 = vadd.f32 %v2161, %v2249
    %2251 = vmatmul.bf16.gmra.mxu0 %v1738
    %v2252 = vpop.f32.mrf.mxu0
    %v2253 = vadd.f32 %v2164, %v2252
    %v2254 = vpop.f32.mrf.mxu0
    %v2255 = vadd.f32 %v2166, %v2254
    %2256 = vmatmul.bf16.gmra.mxu0 %v1740
    %v2257 = vpop.f32.mrf.mxu0
    %v2258 = vadd.f32 %v2169, %v2257
    %v2259 = vpop.f32.mrf.mxu0
    %v2260 = vadd.f32 %v2171, %v2259
    %2261 = vmatmul.bf16.gmra.mxu0 %v1742
    %v2262 = vpop.f32.mrf.mxu0
    %v2263 = vadd.f32 %v2174, %v2262
    %v2264 = vpop.f32.mrf.mxu0
    %v2265 = vadd.f32 %v2176, %v2264
    %2266 = vmatmul.bf16.gmra.mxu0 %v1744
    %v2267 = vpop.f32.mrf.mxu0
    %v2268 = vadd.f32 %v2179, %v2267
    %v2269 = vpop.f32.mrf.mxu0
    %v2270 = vadd.f32 %v2181, %v2269
    %2271 = vmatmul.bf16.gmra.mxu0 %v1746
    %v2272 = vpop.f32.mrf.mxu0
    %v2273 = vadd.f32 %v2184, %v2272
    %v2274 = vpop.f32.mrf.mxu0
    %v2275 = vadd.f32 %v2186, %v2274
    %2276 = vmatmul.bf16.gmra.mxu0 %v1748
    %v2277 = vpop.f32.mrf.mxu0
    %v2278 = vadd.f32 %v2189, %v2277
    %v2279 = vpop.f32.mrf.mxu0
    %v2280 = vadd.f32 %v2191, %v2279
    %2281 = vmatmul.bf16.gmra.mxu0 %v1750
    %v2282 = vpop.f32.mrf.mxu0
    %v2283 = vadd.f32 %v2194, %v2282
    %v2284 = vpop.f32.mrf.mxu0
    %v2285 = vadd.f32 %v2196, %v2284
    %2286 = vmatmul.bf16.gmra.mxu0 %v1752
    %v2287 = vpop.f32.mrf.mxu0
    %v2288 = vadd.f32 %v2199, %v2287
    %v2289 = vpop.f32.mrf.mxu0
    %v2290 = vadd.f32 %v2201, %v2289
    %2291 = vmatmul.bf16.gmra.mxu0 %v1754
    %v2292 = vpop.f32.mrf.mxu0
    %v2293 = vadd.f32 %v2204, %v2292
    %v2294 = vpop.f32.mrf.mxu0
    %v2295 = vadd.f32 %v2206, %v2294
    %2296 = vmatmul.bf16.gmra.mxu0 %v1756
    %v2297 = vpop.f32.mrf.mxu0
    %v2298 = vadd.f32 %v2209, %v2297
    %v2299 = vpop.f32.mrf.mxu0
    %v2300 = vadd.f32 %v2211, %v2299
    %2301 = vmatmul.bf16.gmra.mxu0 %v1758
    %v2302 = vpop.f32.mrf.mxu0
    %v2303 = vadd.f32 %v2214, %v2302
    %v2304 = vpop.f32.mrf.mxu0
    %v2305 = vadd.f32 %v2216, %v2304
    %2306 = vmatmul.bf16.gmra.mxu0 %v1760
    %v2307 = vpop.f32.mrf.mxu0
    %v2308 = vadd.f32 %v2219, %v2307
    %v2309 = vpop.f32.mrf.mxu0
    %v2310 = vadd.f32 %v2221, %v2309
    %2311 = vmatmul.bf16.gmra.mxu0 %v1762
    %v2312 = vpop.f32.mrf.mxu0
    %v2313 = vadd.f32 %v2224, %v2312
    %v2314 = vpop.f32.mrf.mxu0
    %v2315 = vadd.f32 %v2226, %v2314
    %2316 = vdwg.mxu0
    %v2317 = vmax.f32 %v2060, 0.0
    %v2318 = vmax.f32 %v2238, 0.0
    %v2319 = vmax.f32 %v2062, 0.0
    %v2320 = vmax.f32 %v2240, 0.0
    %v2321 = vmax.f32 %v2065, 0.0
    %v2322 = vmax.f32 %v2243, 0.0
    %v2323 = vmax.f32 %v2067, 0.0
    %v2324 = vmax.f32 %v2245, 0.0
    %v2325 = vmax.f32 %v2070, 0.0
    %v2326 = vmax.f32 %v2248, 0.0
    %v2327 = vmax.f32 %v2072, 0.0
    %v2328 = vmax.f32 %v2250, 0.0
    %v2329 = vmax.f32 %v2075, 0.0
    %v2330 = vmax.f32 %v2253, 0.0
    %v2331 = vmax.f32 %v2077, 0.0
    %v2332 = vmax.f32 %v2255, 0.0
    %v2333 = vmax.f32 %v2080, 0.0
    %v2334 = vmax.f32 %v2258, 0.0
    %v2335 = vmax.f32 %v2082, 0.0
    %v2336 = vmax.f32 %v2260, 0.0
    %v2337 = vmax.f32 %v2085, 0.0
    %v2338 = vmax.f32 %v2263, 0.0
    %v2339 = vmax.f32 %v2087, 0.0
    %v2340 = vmax.f32 %v2265, 0.0
    %v2341 = vmax.f32 %v2090, 0.0
    %v2342 = vmax.f32 %v2268, 0.0
    %v2343 = vmax.f32 %v2092, 0.0
    %v2344 = vmax.f32 %v2270, 0.0
    %v2345 = vmax.f32 %v2095, 0.0
    %v2346 = vmax.f32 %v2273, 0.0
    %v2347 = vmax.f32 %v2097, 0.0
    %v2348 = vmax.f32 %v2275, 0.0
    %v2349 = vmax.f32 %v2100, 0.0
    %v2350 = vmax.f32 %v2278, 0.0
    %v2351 = vmax.f32 %v2102, 0.0
    %v2352 = vmax.f32 %v2280, 0.0
    %v2353 = vmax.f32 %v2105, 0.0
    %v2354 = vmax.f32 %v2283, 0.0
    %v2355 = vmax.f32 %v2107, 0.0
    %v2356 = vmax.f32 %v2285, 0.0
    %v2357 = vmax.f32 %v2110, 0.0
    %v2358 = vmax.f32 %v2288, 0.0
    %v2359 = vmax.f32 %v2112, 0.0
    %v2360 = vmax.f32 %v2290, 0.0
    %v2361 = vmax.f32 %v2115, 0.0
    %v2362 = vmax.f32 %v2293, 0.0
    %v2363 = vmax.f32 %v2117, 0.0
    %v2364 = vmax.f32 %v2295, 0.0
    %v2365 = vmax.f32 %v2120, 0.0
    %v2366 = vmax.f32 %v2298, 0.0
    %v2367 = vmax.f32 %v2122, 0.0
    %v2368 = vmax.f32 %v2300, 0.0
    %v2369 = vmax.f32 %v2125, 0.0
    %v2370 = vmax.f32 %v2303, 0.0
    %v2371 = vmax.f32 %v2127, 0.0
    %v2372 = vmax.f32 %v2305, 0.0
    %v2373 = vmax.f32 %v2130, 0.0
    %v2374 = vmax.f32 %v2308, 0.0
    %v2375 = vmax.f32 %v2132, 0.0
    %v2376 = vmax.f32 %v2310, 0.0
    %v2377 = vmax.f32 %v2135, 0.0
    %v2378 = vmax.f32 %v2313, 0.0
    %v2379 = vmax.f32 %v2137, 0.0
    %v2380 = vmax.f32 %v2315, 0.0
    %v2381 = vpack.c.bf16 %v2318, %v2317
    %v2382 = vpack.c.bf16 %v2320, %v2319
    %v2383 = vpack.c.bf16 %v2322, %v2321
    %v2384 = vpack.c.bf16 %v2324, %v2323
    %v2385 = vpack.c.bf16 %v2326, %v2325
    %v2386 = vpack.c.bf16 %v2328, %v2327
    %v2387 = vpack.c.bf16 %v2330, %v2329
    %v2388 = vpack.c.bf16 %v2332, %v2331
    %v2389 = vpack.c.bf16 %v2334, %v2333
    %v2390 = vpack.c.bf16 %v2336, %v2335
    %v2391 = vpack.c.bf16 %v2338, %v2337
    %v2392 = vpack.c.bf16 %v2340, %v2339
    %v2393 = vpack.c.bf16 %v2342, %v2341
    %v2394 = vpack.c.bf16 %v2344, %v2343
    %v2395 = vpack.c.bf16 %v2346, %v2345
    %v2396 = vpack.c.bf16 %v2348, %v2347
    %v2397 = vpack.c.bf16 %v2350, %v2349
    %v2398 = vpack.c.bf16 %v2352, %v2351
    %v2399 = vpack.c.bf16 %v2354, %v2353
    %v2400 = vpack.c.bf16 %v2356, %v2355
    %v2401 = vpack.c.bf16 %v2358, %v2357
    %v2402 = vpack.c.bf16 %v2360, %v2359
    %v2403 = vpack.c.bf16 %v2362, %v2361
    %v2404 = vpack.c.bf16 %v2364, %v2363
    %v2405 = vpack.c.bf16 %v2366, %v2365
    %v2406 = vpack.c.bf16 %v2368, %v2367
    %v2407 = vpack.c.bf16 %v2370, %v2369
    %v2408 = vpack.c.bf16 %v2372, %v2371
    %v2409 = vpack.c.bf16 %v2374, %v2373
    %v2410 = vpack.c.bf16 %v2376, %v2375
    %v2411 = vpack.c.bf16 %v2378, %v2377
    %v2412 = vpack.c.bf16 %v2380, %v2379
    %v2413 = vunpack.c.l.bf16 %v2381
    %v2414 = vunpack.c.h.bf16 %v2381
    %v2415 = vunpack.c.l.bf16 %v2382
    %v2416 = vunpack.c.h.bf16 %v2382
    %v2417 = vunpack.c.l.bf16 %v2383
    %v2418 = vunpack.c.h.bf16 %v2383
    %v2419 = vunpack.c.l.bf16 %v2384
    %v2420 = vunpack.c.h.bf16 %v2384
    %v2421 = vunpack.c.l.bf16 %v2385
    %v2422 = vunpack.c.h.bf16 %v2385
    %v2423 = vunpack.c.l.bf16 %v2386
    %v2424 = vunpack.c.h.bf16 %v2386
    %v2425 = vunpack.c.l.bf16 %v2387
    %v2426 = vunpack.c.h.bf16 %v2387
    %v2427 = vunpack.c.l.bf16 %v2388
    %v2428 = vunpack.c.h.bf16 %v2388
    %v2429 = vunpack.c.l.bf16 %v2389
    %v2430 = vunpack.c.h.bf16 %v2389
    %v2431 = vunpack.c.l.bf16 %v2390
    %v2432 = vunpack.c.h.bf16 %v2390
    %v2433 = vunpack.c.l.bf16 %v2391
    %v2434 = vunpack.c.h.bf16 %v2391
    %v2435 = vunpack.c.l.bf16 %v2392
    %v2436 = vunpack.c.h.bf16 %v2392
    %v2437 = vunpack.c.l.bf16 %v2393
    %v2438 = vunpack.c.h.bf16 %v2393
    %v2439 = vunpack.c.l.bf16 %v2394
    %v2440 = vunpack.c.h.bf16 %v2394
    %v2441 = vunpack.c.l.bf16 %v2395
    %v2442 = vunpack.c.h.bf16 %v2395
    %v2443 = vunpack.c.l.bf16 %v2396
    %v2444 = vunpack.c.h.bf16 %v2396
    %v2445 = vunpack.c.l.bf16 %v2397
    %v2446 = vunpack.c.h.bf16 %v2397
    %v2447 = vunpack.c.l.bf16 %v2398
    %v2448 = vunpack.c.h.bf16 %v2398
    %v2449 = vunpack.c.l.bf16 %v2399
    %v2450 = vunpack.c.h.bf16 %v2399
    %v2451 = vunpack.c.l.bf16 %v2400
    %v2452 = vunpack.c.h.bf16 %v2400
    %v2453 = vunpack.c.l.bf16 %v2401
    %v2454 = vunpack.c.h.bf16 %v2401
    %v2455 = vunpack.c.l.bf16 %v2402
    %v2456 = vunpack.c.h.bf16 %v2402
    %v2457 = vunpack.c.l.bf16 %v2403
    %v2458 = vunpack.c.h.bf16 %v2403
    %v2459 = vunpack.c.l.bf16 %v2404
    %v2460 = vunpack.c.h.bf16 %v2404
    %v2461 = vunpack.c.l.bf16 %v2405
    %v2462 = vunpack.c.h.bf16 %v2405
    %v2463 = vunpack.c.l.bf16 %v2406
    %v2464 = vunpack.c.h.bf16 %v2406
    %v2465 = vunpack.c.l.bf16 %v2407
    %v2466 = vunpack.c.h.bf16 %v2407
    %v2467 = vunpack.c.l.bf16 %v2408
    %v2468 = vunpack.c.h.bf16 %v2408
    %v2469 = vunpack.c.l.bf16 %v2409
    %v2470 = vunpack.c.h.bf16 %v2409
    %v2471 = vunpack.c.l.bf16 %v2410
    %v2472 = vunpack.c.h.bf16 %v2410
    %v2473 = vunpack.c.l.bf16 %v2411
    %v2474 = vunpack.c.h.bf16 %v2411
    %v2475 = vunpack.c.l.bf16 %v2412
    %v2476 = vunpack.c.h.bf16 %v2412
    %v2477 = vadd.f32 %v1603, %v2413
    %v2478 = vadd.f32 %v1604, %v2414
    %v2479 = vadd.f32 %v1605, %v2415
    %v2480 = vadd.f32 %v1606, %v2416
    %v2481 = vadd.f32 %v1607, %v2417
    %v2482 = vadd.f32 %v1608, %v2418
    %v2483 = vadd.f32 %v1609, %v2419
    %v2484 = vadd.f32 %v1610, %v2420
    %v2485 = vadd.f32 %v1611, %v2421
    %v2486 = vadd.f32 %v1612, %v2422
    %v2487 = vadd.f32 %v1613, %v2423
    %v2488 = vadd.f32 %v1614, %v2424
    %v2489 = vadd.f32 %v1615, %v2425
    %v2490 = vadd.f32 %v1616, %v2426
    %v2491 = vadd.f32 %v1617, %v2427
    %v2492 = vadd.f32 %v1618, %v2428
    %v2493 = vadd.f32 %v1619, %v2429
    %v2494 = vadd.f32 %v1620, %v2430
    %v2495 = vadd.f32 %v1621, %v2431
    %v2496 = vadd.f32 %v1622, %v2432
    %v2497 = vadd.f32 %v1623, %v2433
    %v2498 = vadd.f32 %v1624, %v2434
    %v2499 = vadd.f32 %v1625, %v2435
    %v2500 = vadd.f32 %v1626, %v2436
    %v2501 = vadd.f32 %v1627, %v2437
    %v2502 = vadd.f32 %v1628, %v2438
    %v2503 = vadd.f32 %v1629, %v2439
    %v2504 = vadd.f32 %v1630, %v2440
    %v2505 = vadd.f32 %v1631, %v2441
    %v2506 = vadd.f32 %v1632, %v2442
    %v2507 = vadd.f32 %v1633, %v2443
    %v2508 = vadd.f32 %v1634, %v2444
    %v2509 = vadd.f32 %v1635, %v2445
    %v2510 = vadd.f32 %v1636, %v2446
    %v2511 = vadd.f32 %v1637, %v2447
    %v2512 = vadd.f32 %v1638, %v2448
    %v2513 = vadd.f32 %v1639, %v2449
    %v2514 = vadd.f32 %v1640, %v2450
    %v2515 = vadd.f32 %v1641, %v2451
    %v2516 = vadd.f32 %v1642, %v2452
    %v2517 = vadd.f32 %v1643, %v2453
    %v2518 = vadd.f32 %v1644, %v2454
    %v2519 = vadd.f32 %v1645, %v2455
    %v2520 = vadd.f32 %v1646, %v2456
    %v2521 = vadd.f32 %v1647, %v2457
    %v2522 = vadd.f32 %v1648, %v2458
    %v2523 = vadd.f32 %v1649, %v2459
    %v2524 = vadd.f32 %v1650, %v2460
    %v2525 = vadd.f32 %v1651, %v2461
    %v2526 = vadd.f32 %v1652, %v2462
    %v2527 = vadd.f32 %v1653, %v2463
    %v2528 = vadd.f32 %v1654, %v2464
    %v2529 = vadd.f32 %v1655, %v2465
    %v2530 = vadd.f32 %v1656, %v2466
    %v2531 = vadd.f32 %v1657, %v2467
    %v2532 = vadd.f32 %v1658, %v2468
    %v2533 = vadd.f32 %v1659, %v2469
    %v2534 = vadd.f32 %v1660, %v2470
    %v2535 = vadd.f32 %v1661, %v2471
    %v2536 = vadd.f32 %v1662, %v2472
    %v2537 = vadd.f32 %v1663, %v2473
    %v2538 = vadd.f32 %v1664, %v2474
    %v2539 = vadd.f32 %v1665, %v2475
    %v2540 = vadd.f32 %v1666, %v2476
    %v2541 = vpack.c.bf16 %v2478, %v2477
    %v2542 = vpack.c.bf16 %v2480, %v2479
    %v2543 = vpack.c.bf16 %v2482, %v2481
    %v2544 = vpack.c.bf16 %v2484, %v2483
    %v2545 = vpack.c.bf16 %v2486, %v2485
    %v2546 = vpack.c.bf16 %v2488, %v2487
    %v2547 = vpack.c.bf16 %v2490, %v2489
    %v2548 = vpack.c.bf16 %v2492, %v2491
    %v2549 = vpack.c.bf16 %v2494, %v2493
    %v2550 = vpack.c.bf16 %v2496, %v2495
    %v2551 = vpack.c.bf16 %v2498, %v2497
    %v2552 = vpack.c.bf16 %v2500, %v2499
    %v2553 = vpack.c.bf16 %v2502, %v2501
    %v2554 = vpack.c.bf16 %v2504, %v2503
    %v2555 = vpack.c.bf16 %v2506, %v2505
    %v2556 = vpack.c.bf16 %v2508, %v2507
    %v2557 = vpack.c.bf16 %v2510, %v2509
    %v2558 = vpack.c.bf16 %v2512, %v2511
    %v2559 = vpack.c.bf16 %v2514, %v2513
    %v2560 = vpack.c.bf16 %v2516, %v2515
    %v2561 = vpack.c.bf16 %v2518, %v2517
    %v2562 = vpack.c.bf16 %v2520, %v2519
    %v2563 = vpack.c.bf16 %v2522, %v2521
    %v2564 = vpack.c.bf16 %v2524, %v2523
    %v2565 = vpack.c.bf16 %v2526, %v2525
    %v2566 = vpack.c.bf16 %v2528, %v2527
    %v2567 = vpack.c.bf16 %v2530, %v2529
    %v2568 = vpack.c.bf16 %v2532, %v2531
    %v2569 = vpack.c.bf16 %v2534, %v2533
    %v2570 = vpack.c.bf16 %v2536, %v2535
    %v2571 = vpack.c.bf16 %v2538, %v2537
    %v2572 = vpack.c.bf16 %v2540, %v2539
    %s2573 = scalar_lea.vmem %s3, 256
    %v2574 = vld [vmem:[%s2573] sm:$0xff]
    %v2575 = vld [vmem:[%s2573 + $0x8] sm:$0xff]
    %v2576 = vld [vmem:[%s2573 + $0x10] sm:$0xff]
    %v2577 = vld [vmem:[%s2573 + $0x18] sm:$0xff]
    %v2578 = vld [vmem:[%s2573 + $0x20] sm:$0xff]
    %v2579 = vld [vmem:[%s2573 + $0x28] sm:$0xff]
    %v2580 = vld [vmem:[%s2573 + $0x30] sm:$0xff]
    %v2581 = vld [vmem:[%s2573 + $0x38] sm:$0xff]
    %v2582 = vld [vmem:[%s2573 + $0x40] sm:$0xff]
    %v2583 = vld [vmem:[%s2573 + $0x48] sm:$0xff]
    %v2584 = vld [vmem:[%s2573 + $0x50] sm:$0xff]
    %v2585 = vld [vmem:[%s2573 + $0x58] sm:$0xff]
    %v2586 = vld [vmem:[%s2573 + $0x60] sm:$0xff]
    %v2587 = vld [vmem:[%s2573 + $0x68] sm:$0xff]
    %v2588 = vld [vmem:[%s2573 + $0x70] sm:$0xff]
    %v2589 = vld [vmem:[%s2573 + $0x78] sm:$0xff]
    %v2590 = vld [vmem:[%s2573 + $0x80] sm:$0xff]
    %v2591 = vld [vmem:[%s2573 + $0x88] sm:$0xff]
    %v2592 = vld [vmem:[%s2573 + $0x90] sm:$0xff]
    %v2593 = vld [vmem:[%s2573 + $0x98] sm:$0xff]
    %v2594 = vld [vmem:[%s2573 + $0xa0] sm:$0xff]
    %v2595 = vld [vmem:[%s2573 + $0xa8] sm:$0xff]
    %v2596 = vld [vmem:[%s2573 + $0xb0] sm:$0xff]
    %v2597 = vld [vmem:[%s2573 + $0xb8] sm:$0xff]
    %v2598 = vld [vmem:[%s2573 + $0xc0] sm:$0xff]
    %v2599 = vld [vmem:[%s2573 + $0xc8] sm:$0xff]
    %v2600 = vld [vmem:[%s2573 + $0xd0] sm:$0xff]
    %v2601 = vld [vmem:[%s2573 + $0xd8] sm:$0xff]
    %v2602 = vld [vmem:[%s2573 + $0xe0] sm:$0xff]
    %v2603 = vld [vmem:[%s2573 + $0xe8] sm:$0xff]
    %v2604 = vld [vmem:[%s2573 + $0xf0] sm:$0xff]
    %v2605 = vld [vmem:[%s2573 + $0xf8] sm:$0xff]
    %s2606 = scalar_lea.vmem %s4, 2
    %v2607 = vld [vmem:[%s2606] sm:$0x3]
    %v2609 = vperm.slane %v2607, 0
    %v2610 = vperm.slane %v2607, 1
    %v2645 = vunpack.c.l.b16 %v2541
    %v2646 = vunpack.c.h.b16 %v2541
    %v2647 = vunpack.c.l.b16 %v2542
    %v2648 = vunpack.c.h.b16 %v2542
    %v2649 = vunpack.c.l.b16 %v2543
    %v2650 = vunpack.c.h.b16 %v2543
    %v2651 = vunpack.c.l.b16 %v2544
    %v2652 = vunpack.c.h.b16 %v2544
    %v2653 = vunpack.c.l.b16 %v2545
    %v2654 = vunpack.c.h.b16 %v2545
    %v2655 = vunpack.c.l.b16 %v2546
    %v2656 = vunpack.c.h.b16 %v2546
    %v2657 = vunpack.c.l.b16 %v2547
    %v2658 = vunpack.c.h.b16 %v2547
    %v2659 = vunpack.c.l.b16 %v2548
    %v2660 = vunpack.c.h.b16 %v2548
    %v2661 = vunpack.c.l.b16 %v2549
    %v2662 = vunpack.c.h.b16 %v2549
    %v2663 = vunpack.c.l.b16 %v2550
    %v2664 = vunpack.c.h.b16 %v2550
    %v2665 = vunpack.c.l.b16 %v2551
    %v2666 = vunpack.c.h.b16 %v2551
    %v2667 = vunpack.c.l.b16 %v2552
    %v2668 = vunpack.c.h.b16 %v2552
    %v2669 = vunpack.c.l.b16 %v2553
    %v2670 = vunpack.c.h.b16 %v2553
    %v2671 = vunpack.c.l.b16 %v2554
    %v2672 = vunpack.c.h.b16 %v2554
    %v2673 = vunpack.c.l.b16 %v2555
    %v2674 = vunpack.c.h.b16 %v2555
    %v2675 = vunpack.c.l.b16 %v2556
    %v2676 = vunpack.c.h.b16 %v2556
    %v2677 = vunpack.c.l.b16 %v2557
    %v2678 = vunpack.c.h.b16 %v2557
    %v2679 = vunpack.c.l.b16 %v2558
    %v2680 = vunpack.c.h.b16 %v2558
    %v2681 = vunpack.c.l.b16 %v2559
    %v2682 = vunpack.c.h.b16 %v2559
    %v2683 = vunpack.c.l.b16 %v2560
    %v2684 = vunpack.c.h.b16 %v2560
    %v2685 = vunpack.c.l.b16 %v2561
    %v2686 = vunpack.c.h.b16 %v2561
    %v2687 = vunpack.c.l.b16 %v2562
    %v2688 = vunpack.c.h.b16 %v2562
    %v2689 = vunpack.c.l.b16 %v2563
    %v2690 = vunpack.c.h.b16 %v2563
    %v2691 = vunpack.c.l.b16 %v2564
    %v2692 = vunpack.c.h.b16 %v2564
    %v2693 = vunpack.c.l.b16 %v2565
    %v2694 = vunpack.c.h.b16 %v2565
    %v2695 = vunpack.c.l.b16 %v2566
    %v2696 = vunpack.c.h.b16 %v2566
    %v2697 = vunpack.c.l.b16 %v2567
    %v2698 = vunpack.c.h.b16 %v2567
    %v2699 = vunpack.c.l.b16 %v2568
    %v2700 = vunpack.c.h.b16 %v2568
    %v2701 = vunpack.c.l.b16 %v2569
    %v2702 = vunpack.c.h.b16 %v2569
    %v2703 = vunpack.c.l.b16 %v2570
    %v2704 = vunpack.c.h.b16 %v2570
    %v2705 = vunpack.c.l.b16 %v2571
    %v2706 = vunpack.c.h.b16 %v2571
    %v2707 = vunpack.c.l.b16 %v2572
    %v2708 = vunpack.c.h.b16 %v2572
    %v2709 = vpack.c.b16 %v2647, %v2645
    %v2710 = vpack.c.b16 %v2648, %v2646
    %v2711 = vpack.c.b16 %v2651, %v2649
    %v2712 = vpack.c.b16 %v2652, %v2650
    %v2713 = vpack.c.b16 %v2655, %v2653
    %v2714 = vpack.c.b16 %v2656, %v2654
    %v2715 = vpack.c.b16 %v2659, %v2657
    %v2716 = vpack.c.b16 %v2660, %v2658
    %v2717 = vpack.c.b16 %v2663, %v2661
    %v2718 = vpack.c.b16 %v2664, %v2662
    %v2719 = vpack.c.b16 %v2667, %v2665
    %v2720 = vpack.c.b16 %v2668, %v2666
    %v2721 = vpack.c.b16 %v2671, %v2669
    %v2722 = vpack.c.b16 %v2672, %v2670
    %v2723 = vpack.c.b16 %v2675, %v2673
    %v2724 = vpack.c.b16 %v2676, %v2674
    %v2725 = vpack.c.b16 %v2679, %v2677
    %v2726 = vpack.c.b16 %v2680, %v2678
    %v2727 = vpack.c.b16 %v2683, %v2681
    %v2728 = vpack.c.b16 %v2684, %v2682
    %v2729 = vpack.c.b16 %v2687, %v2685
    %v2730 = vpack.c.b16 %v2688, %v2686
    %v2731 = vpack.c.b16 %v2691, %v2689
    %v2732 = vpack.c.b16 %v2692, %v2690
    %v2733 = vpack.c.b16 %v2695, %v2693
    %v2734 = vpack.c.b16 %v2696, %v2694
    %v2735 = vpack.c.b16 %v2699, %v2697
    %v2736 = vpack.c.b16 %v2700, %v2698
    %v2737 = vpack.c.b16 %v2703, %v2701
    %v2738 = vpack.c.b16 %v2704, %v2702
    %v2739 = vpack.c.b16 %v2707, %v2705
    %v2740 = vpack.c.b16 %v2708, %v2706
    %v2805 = vunpack.c.l.b16 %v2574
    %v2806 = vunpack.c.h.b16 %v2574
    %v2807 = vunpack.c.l.b16 %v2575
    %v2808 = vunpack.c.h.b16 %v2575
    %v2809 = vunpack.c.l.b16 %v2576
    %v2810 = vunpack.c.h.b16 %v2576
    %v2811 = vunpack.c.l.b16 %v2577
    %v2812 = vunpack.c.h.b16 %v2577
    %v2813 = vunpack.c.l.b16 %v2578
    %v2814 = vunpack.c.h.b16 %v2578
    %v2815 = vunpack.c.l.b16 %v2579
    %v2816 = vunpack.c.h.b16 %v2579
    %v2817 = vunpack.c.l.b16 %v2580
    %v2818 = vunpack.c.h.b16 %v2580
    %v2819 = vunpack.c.l.b16 %v2581
    %v2820 = vunpack.c.h.b16 %v2581
    %v2821 = vunpack.c.l.b16 %v2582
    %v2822 = vunpack.c.h.b16 %v2582
    %v2823 = vunpack.c.l.b16 %v2583
    %v2824 = vunpack.c.h.b16 %v2583
    %v2825 = vunpack.c.l.b16 %v2584
    %v2826 = vunpack.c.h.b16 %v2584
    %v2827 = vunpack.c.l.b16 %v2585
    %v2828 = vunpack.c.h.b16 %v2585
    %v2829 = vunpack.c.l.b16 %v2586
    %v2830 = vunpack.c.h.b16 %v2586
    %v2831 = vunpack.c.l.b16 %v2587
    %v2832 = vunpack.c.h.b16 %v2587
    %v2833 = vunpack.c.l.b16 %v2588
    %v2834 = vunpack.c.h.b16 %v2588
    %v2835 = vunpack.c.l.b16 %v2589
    %v2836 = vunpack.c.h.b16 %v2589
    %v2837 = vunpack.c.l.b16 %v2590
    %v2838 = vunpack.c.h.b16 %v2590
    %v2839 = vunpack.c.l.b16 %v2591
    %v2840 = vunpack.c.h.b16 %v2591
    %v2841 = vunpack.c.l.b16 %v2592
    %v2842 = vunpack.c.h.b16 %v2592
    %v2843 = vunpack.c.l.b16 %v2593
    %v2844 = vunpack.c.h.b16 %v2593
    %v2845 = vunpack.c.l.b16 %v2594
    %v2846 = vunpack.c.h.b16 %v2594
    %v2847 = vunpack.c.l.b16 %v2595
    %v2848 = vunpack.c.h.b16 %v2595
    %v2849 = vunpack.c.l.b16 %v2596
    %v2850 = vunpack.c.h.b16 %v2596
    %v2851 = vunpack.c.l.b16 %v2597
    %v2852 = vunpack.c.h.b16 %v2597
    %v2853 = vunpack.c.l.b16 %v2598
    %v2854 = vunpack.c.h.b16 %v2598
    %v2855 = vunpack.c.l.b16 %v2599
    %v2856 = vunpack.c.h.b16 %v2599
    %v2857 = vunpack.c.l.b16 %v2600
    %v2858 = vunpack.c.h.b16 %v2600
    %v2859 = vunpack.c.l.b16 %v2601
    %v2860 = vunpack.c.h.b16 %v2601
    %v2861 = vunpack.c.l.b16 %v2602
    %v2862 = vunpack.c.h.b16 %v2602
    %v2863 = vunpack.c.l.b16 %v2603
    %v2864 = vunpack.c.h.b16 %v2603
    %v2865 = vunpack.c.l.b16 %v2604
    %v2866 = vunpack.c.h.b16 %v2604
    %v2867 = vunpack.c.l.b16 %v2605
    %v2868 = vunpack.c.h.b16 %v2605
    %v2869 = vpack.c.b16 %v2807, %v2805
    %v2870 = vpack.c.b16 %v2808, %v2806
    %v2871 = vpack.c.b16 %v2811, %v2809
    %v2872 = vpack.c.b16 %v2812, %v2810
    %v2873 = vpack.c.b16 %v2815, %v2813
    %v2874 = vpack.c.b16 %v2816, %v2814
    %v2875 = vpack.c.b16 %v2819, %v2817
    %v2876 = vpack.c.b16 %v2820, %v2818
    %v2877 = vpack.c.b16 %v2823, %v2821
    %v2878 = vpack.c.b16 %v2824, %v2822
    %v2879 = vpack.c.b16 %v2827, %v2825
    %v2880 = vpack.c.b16 %v2828, %v2826
    %v2881 = vpack.c.b16 %v2831, %v2829
    %v2882 = vpack.c.b16 %v2832, %v2830
    %v2883 = vpack.c.b16 %v2835, %v2833
    %v2884 = vpack.c.b16 %v2836, %v2834
    %v2885 = vpack.c.b16 %v2839, %v2837
    %v2886 = vpack.c.b16 %v2840, %v2838
    %v2887 = vpack.c.b16 %v2843, %v2841
    %v2888 = vpack.c.b16 %v2844, %v2842
    %v2889 = vpack.c.b16 %v2847, %v2845
    %v2890 = vpack.c.b16 %v2848, %v2846
    %v2891 = vpack.c.b16 %v2851, %v2849
    %v2892 = vpack.c.b16 %v2852, %v2850
    %v2893 = vpack.c.b16 %v2855, %v2853
    %v2894 = vpack.c.b16 %v2856, %v2854
    %v2895 = vpack.c.b16 %v2859, %v2857
    %v2896 = vpack.c.b16 %v2860, %v2858
    %v2897 = vpack.c.b16 %v2863, %v2861
    %v2898 = vpack.c.b16 %v2864, %v2862
    %v2899 = vpack.c.b16 %v2867, %v2865
    %v2900 = vpack.c.b16 %v2868, %v2866
    %2933 = vmatpush.bf16.msra.mxu0 %v2883
    %2934 = vmatpush.bf16.msra.mxu0 %v2881
    %2935 = vmatpush.bf16.msra.mxu0 %v2879
    %2936 = vmatpush.bf16.msra.mxu0 %v2877
    %2937 = vmatpush.bf16.msra.mxu0 %v2875
    %2938 = vmatpush.bf16.msra.mxu0 %v2873
    %2939 = vmatpush.bf16.msra.mxu0 %v2871
    %2940 = vmatpush.bf16.msra.mxu0 %v2869
    %2941 = vmatmul.bf16.gmra.mxu0 %v2709
    %v2942 = vpop.f32.mrf.mxu0
    %v2943 = vadd.f32 %v2609, %v2942
    %v2944 = vpop.f32.mrf.mxu0
    %v2945 = vadd.f32 %v2609, %v2944
    %2946 = vmatmul.bf16.gmra.mxu0 %v2711
    %v2947 = vpop.f32.mrf.mxu0
    %v2948 = vadd.f32 %v2609, %v2947
    %v2949 = vpop.f32.mrf.mxu0
    %v2950 = vadd.f32 %v2609, %v2949
    %2951 = vmatmul.bf16.gmra.mxu0 %v2713
    %v2952 = vpop.f32.mrf.mxu0
    %v2953 = vadd.f32 %v2609, %v2952
    %v2954 = vpop.f32.mrf.mxu0
    %v2955 = vadd.f32 %v2609, %v2954
    %2956 = vmatmul.bf16.gmra.mxu0 %v2715
    %v2957 = vpop.f32.mrf.mxu0
    %v2958 = vadd.f32 %v2609, %v2957
    %v2959 = vpop.f32.mrf.mxu0
    %v2960 = vadd.f32 %v2609, %v2959
    %2961 = vmatmul.bf16.gmra.mxu0 %v2717
    %v2962 = vpop.f32.mrf.mxu0
    %v2963 = vadd.f32 %v2609, %v2962
    %v2964 = vpop.f32.mrf.mxu0
    %v2965 = vadd.f32 %v2609, %v2964
    %2966 = vmatmul.bf16.gmra.mxu0 %v2719
    %v2967 = vpop.f32.mrf.mxu0
    %v2968 = vadd.f32 %v2609, %v2967
    %v2969 = vpop.f32.mrf.mxu0
    %v2970 = vadd.f32 %v2609, %v2969
    %2971 = vmatmul.bf16.gmra.mxu0 %v2721
    %v2972 = vpop.f32.mrf.mxu0
    %v2973 = vadd.f32 %v2609, %v2972
    %v2974 = vpop.f32.mrf.mxu0
    %v2975 = vadd.f32 %v2609, %v2974
    %2976 = vmatmul.bf16.gmra.mxu0 %v2723
    %v2977 = vpop.f32.mrf.mxu0
    %v2978 = vadd.f32 %v2609, %v2977
    %v2979 = vpop.f32.mrf.mxu0
    %v2980 = vadd.f32 %v2609, %v2979
    %2981 = vmatmul.bf16.gmra.mxu0 %v2725
    %v2982 = vpop.f32.mrf.mxu0
    %v2983 = vadd.f32 %v2609, %v2982
    %v2984 = vpop.f32.mrf.mxu0
    %v2985 = vadd.f32 %v2609, %v2984
    %2986 = vmatmul.bf16.gmra.mxu0 %v2727
    %v2987 = vpop.f32.mrf.mxu0
    %v2988 = vadd.f32 %v2609, %v2987
    %v2989 = vpop.f32.mrf.mxu0
    %v2990 = vadd.f32 %v2609, %v2989
    %2991 = vmatmul.bf16.gmra.mxu0 %v2729
    %v2992 = vpop.f32.mrf.mxu0
    %v2993 = vadd.f32 %v2609, %v2992
    %v2994 = vpop.f32.mrf.mxu0
    %v2995 = vadd.f32 %v2609, %v2994
    %2996 = vmatmul.bf16.gmra.mxu0 %v2731
    %v2997 = vpop.f32.mrf.mxu0
    %v2998 = vadd.f32 %v2609, %v2997
    %v2999 = vpop.f32.mrf.mxu0
    %v3000 = vadd.f32 %v2609, %v2999
    %3001 = vmatmul.bf16.gmra.mxu0 %v2733
    %v3002 = vpop.f32.mrf.mxu0
    %v3003 = vadd.f32 %v2609, %v3002
    %v3004 = vpop.f32.mrf.mxu0
    %v3005 = vadd.f32 %v2609, %v3004
    %3006 = vmatmul.bf16.gmra.mxu0 %v2735
    %v3007 = vpop.f32.mrf.mxu0
    %v3008 = vadd.f32 %v2609, %v3007
    %v3009 = vpop.f32.mrf.mxu0
    %v3010 = vadd.f32 %v2609, %v3009
    %3011 = vmatmul.bf16.gmra.mxu0 %v2737
    %v3012 = vpop.f32.mrf.mxu0
    %v3013 = vadd.f32 %v2609, %v3012
    %v3014 = vpop.f32.mrf.mxu0
    %v3015 = vadd.f32 %v2609, %v3014
    %3016 = vmatmul.bf16.gmra.mxu0 %v2739
    %v3017 = vpop.f32.mrf.mxu0
    %v3018 = vadd.f32 %v2609, %v3017
    %v3019 = vpop.f32.mrf.mxu0
    %v3020 = vadd.f32 %v2609, %v3019
    %3021 = vdwg.mxu0
    %3022 = vmatpush.bf16.msra.mxu0 %v2899
    %3023 = vmatpush.bf16.msra.mxu0 %v2897
    %3024 = vmatpush.bf16.msra.mxu0 %v2895
    %3025 = vmatpush.bf16.msra.mxu0 %v2893
    %3026 = vmatpush.bf16.msra.mxu0 %v2891
    %3027 = vmatpush.bf16.msra.mxu0 %v2889
    %3028 = vmatpush.bf16.msra.mxu0 %v2887
    %3029 = vmatpush.bf16.msra.mxu0 %v2885
    %3030 = vmatmul.bf16.gmra.mxu0 %v2710
    %v3031 = vpop.f32.mrf.mxu0
    %v3032 = vadd.f32 %v2943, %v3031
    %v3033 = vpop.f32.mrf.mxu0
    %v3034 = vadd.f32 %v2945, %v3033
    %3035 = vmatmul.bf16.gmra.mxu0 %v2712
    %v3036 = vpop.f32.mrf.mxu0
    %v3037 = vadd.f32 %v2948, %v3036
    %v3038 = vpop.f32.mrf.mxu0
    %v3039 = vadd.f32 %v2950, %v3038
    %3040 = vmatmul.bf16.gmra.mxu0 %v2714
    %v3041 = vpop.f32.mrf.mxu0
    %v3042 = vadd.f32 %v2953, %v3041
    %v3043 = vpop.f32.mrf.mxu0
    %v3044 = vadd.f32 %v2955, %v3043
    %3045 = vmatmul.bf16.gmra.mxu0 %v2716
    %v3046 = vpop.f32.mrf.mxu0
    %v3047 = vadd.f32 %v2958, %v3046
    %v3048 = vpop.f32.mrf.mxu0
    %v3049 = vadd.f32 %v2960, %v3048
    %3050 = vmatmul.bf16.gmra.mxu0 %v2718
    %v3051 = vpop.f32.mrf.mxu0
    %v3052 = vadd.f32 %v2963, %v3051
    %v3053 = vpop.f32.mrf.mxu0
    %v3054 = vadd.f32 %v2965, %v3053
    %3055 = vmatmul.bf16.gmra.mxu0 %v2720
    %v3056 = vpop.f32.mrf.mxu0
    %v3057 = vadd.f32 %v2968, %v3056
    %v3058 = vpop.f32.mrf.mxu0
    %v3059 = vadd.f32 %v2970, %v3058
    %3060 = vmatmul.bf16.gmra.mxu0 %v2722
    %v3061 = vpop.f32.mrf.mxu0
    %v3062 = vadd.f32 %v2973, %v3061
    %v3063 = vpop.f32.mrf.mxu0
    %v3064 = vadd.f32 %v2975, %v3063
    %3065 = vmatmul.bf16.gmra.mxu0 %v2724
    %v3066 = vpop.f32.mrf.mxu0
    %v3067 = vadd.f32 %v2978, %v3066
    %v3068 = vpop.f32.mrf.mxu0
    %v3069 = vadd.f32 %v2980, %v3068
    %3070 = vmatmul.bf16.gmra.mxu0 %v2726
    %v3071 = vpop.f32.mrf.mxu0
    %v3072 = vadd.f32 %v2983, %v3071
    %v3073 = vpop.f32.mrf.mxu0
    %v3074 = vadd.f32 %v2985, %v3073
    %3075 = vmatmul.bf16.gmra.mxu0 %v2728
    %v3076 = vpop.f32.mrf.mxu0
    %v3077 = vadd.f32 %v2988, %v3076
    %v3078 = vpop.f32.mrf.mxu0
    %v3079 = vadd.f32 %v2990, %v3078
    %3080 = vmatmul.bf16.gmra.mxu0 %v2730
    %v3081 = vpop.f32.mrf.mxu0
    %v3082 = vadd.f32 %v2993, %v3081
    %v3083 = vpop.f32.mrf.mxu0
    %v3084 = vadd.f32 %v2995, %v3083
    %3085 = vmatmul.bf16.gmra.mxu0 %v2732
    %v3086 = vpop.f32.mrf.mxu0
    %v3087 = vadd.f32 %v2998, %v3086
    %v3088 = vpop.f32.mrf.mxu0
    %v3089 = vadd.f32 %v3000, %v3088
    %3090 = vmatmul.bf16.gmra.mxu0 %v2734
    %v3091 = vpop.f32.mrf.mxu0
    %v3092 = vadd.f32 %v3003, %v3091
    %v3093 = vpop.f32.mrf.mxu0
    %v3094 = vadd.f32 %v3005, %v3093
    %3095 = vmatmul.bf16.gmra.mxu0 %v2736
    %v3096 = vpop.f32.mrf.mxu0
    %v3097 = vadd.f32 %v3008, %v3096
    %v3098 = vpop.f32.mrf.mxu0
    %v3099 = vadd.f32 %v3010, %v3098
    %3100 = vmatmul.bf16.gmra.mxu0 %v2738
    %v3101 = vpop.f32.mrf.mxu0
    %v3102 = vadd.f32 %v3013, %v3101
    %v3103 = vpop.f32.mrf.mxu0
    %v3104 = vadd.f32 %v3015, %v3103
    %3105 = vmatmul.bf16.gmra.mxu0 %v2740
    %v3106 = vpop.f32.mrf.mxu0
    %v3107 = vadd.f32 %v3018, %v3106
    %v3108 = vpop.f32.mrf.mxu0
    %v3109 = vadd.f32 %v3020, %v3108
    %3110 = vdwg.mxu0
    %3111 = vmatpush.bf16.msra.mxu0 %v2884
    %3112 = vmatpush.bf16.msra.mxu0 %v2882
    %3113 = vmatpush.bf16.msra.mxu0 %v2880
    %3114 = vmatpush.bf16.msra.mxu0 %v2878
    %3115 = vmatpush.bf16.msra.mxu0 %v2876
    %3116 = vmatpush.bf16.msra.mxu0 %v2874
    %3117 = vmatpush.bf16.msra.mxu0 %v2872
    %3118 = vmatpush.bf16.msra.mxu0 %v2870
    %3119 = vmatmul.bf16.gmra.mxu0 %v2709
    %v3120 = vpop.f32.mrf.mxu0
    %v3121 = vadd.f32 %v2610, %v3120
    %v3122 = vpop.f32.mrf.mxu0
    %v3123 = vadd.f32 %v2610, %v3122
    %3124 = vmatmul.bf16.gmra.mxu0 %v2711
    %v3125 = vpop.f32.mrf.mxu0
    %v3126 = vadd.f32 %v2610, %v3125
    %v3127 = vpop.f32.mrf.mxu0
    %v3128 = vadd.f32 %v2610, %v3127
    %3129 = vmatmul.bf16.gmra.mxu0 %v2713
    %v3130 = vpop.f32.mrf.mxu0
    %v3131 = vadd.f32 %v2610, %v3130
    %v3132 = vpop.f32.mrf.mxu0
    %v3133 = vadd.f32 %v2610, %v3132
    %3134 = vmatmul.bf16.gmra.mxu0 %v2715
    %v3135 = vpop.f32.mrf.mxu0
    %v3136 = vadd.f32 %v2610, %v3135
    %v3137 = vpop.f32.mrf.mxu0
    %v3138 = vadd.f32 %v2610, %v3137
    %3139 = vmatmul.bf16.gmra.mxu0 %v2717
    %v3140 = vpop.f32.mrf.mxu0
    %v3141 = vadd.f32 %v2610, %v3140
    %v3142 = vpop.f32.mrf.mxu0
    %v3143 = vadd.f32 %v2610, %v3142
    %3144 = vmatmul.bf16.gmra.mxu0 %v2719
    %v3145 = vpop.f32.mrf.mxu0
    %v3146 = vadd.f32 %v2610, %v3145
    %v3147 = vpop.f32.mrf.mxu0
    %v3148 = vadd.f32 %v2610, %v3147
    %3149 = vmatmul.bf16.gmra.mxu0 %v2721
    %v3150 = vpop.f32.mrf.mxu0
    %v3151 = vadd.f32 %v2610, %v3150
    %v3152 = vpop.f32.mrf.mxu0
    %v3153 = vadd.f32 %v2610, %v3152
    %3154 = vmatmul.bf16.gmra.mxu0 %v2723
    %v3155 = vpop.f32.mrf.mxu0
    %v3156 = vadd.f32 %v2610, %v3155
    %v3157 = vpop.f32.mrf.mxu0
    %v3158 = vadd.f32 %v2610, %v3157
    %3159 = vmatmul.bf16.gmra.mxu0 %v2725
    %v3160 = vpop.f32.mrf.mxu0
    %v3161 = vadd.f32 %v2610, %v3160
    %v3162 = vpop.f32.mrf.mxu0
    %v3163 = vadd.f32 %v2610, %v3162
    %3164 = vmatmul.bf16.gmra.mxu0 %v2727
    %v3165 = vpop.f32.mrf.mxu0
    %v3166 = vadd.f32 %v2610, %v3165
    %v3167 = vpop.f32.mrf.mxu0
    %v3168 = vadd.f32 %v2610, %v3167
    %3169 = vmatmul.bf16.gmra.mxu0 %v2729
    %v3170 = vpop.f32.mrf.mxu0
    %v3171 = vadd.f32 %v2610, %v3170
    %v3172 = vpop.f32.mrf.mxu0
    %v3173 = vadd.f32 %v2610, %v3172
    %3174 = vmatmul.bf16.gmra.mxu0 %v2731
    %v3175 = vpop.f32.mrf.mxu0
    %v3176 = vadd.f32 %v2610, %v3175
    %v3177 = vpop.f32.mrf.mxu0
    %v3178 = vadd.f32 %v2610, %v3177
    %3179 = vmatmul.bf16.gmra.mxu0 %v2733
    %v3180 = vpop.f32.mrf.mxu0
    %v3181 = vadd.f32 %v2610, %v3180
    %v3182 = vpop.f32.mrf.mxu0
    %v3183 = vadd.f32 %v2610, %v3182
    %3184 = vmatmul.bf16.gmra.mxu0 %v2735
    %v3185 = vpop.f32.mrf.mxu0
    %v3186 = vadd.f32 %v2610, %v3185
    %v3187 = vpop.f32.mrf.mxu0
    %v3188 = vadd.f32 %v2610, %v3187
    %3189 = vmatmul.bf16.gmra.mxu0 %v2737
    %v3190 = vpop.f32.mrf.mxu0
    %v3191 = vadd.f32 %v2610, %v3190
    %v3192 = vpop.f32.mrf.mxu0
    %v3193 = vadd.f32 %v2610, %v3192
    %3194 = vmatmul.bf16.gmra.mxu0 %v2739
    %v3195 = vpop.f32.mrf.mxu0
    %v3196 = vadd.f32 %v2610, %v3195
    %v3197 = vpop.f32.mrf.mxu0
    %v3198 = vadd.f32 %v2610, %v3197
    %3199 = vdwg.mxu0
    %3200 = vmatpush.bf16.msra.mxu0 %v2900
    %3201 = vmatpush.bf16.msra.mxu0 %v2898
    %3202 = vmatpush.bf16.msra.mxu0 %v2896
    %3203 = vmatpush.bf16.msra.mxu0 %v2894
    %3204 = vmatpush.bf16.msra.mxu0 %v2892
    %3205 = vmatpush.bf16.msra.mxu0 %v2890
    %3206 = vmatpush.bf16.msra.mxu0 %v2888
    %3207 = vmatpush.bf16.msra.mxu0 %v2886
    %3208 = vmatmul.bf16.gmra.mxu0 %v2710
    %v3209 = vpop.f32.mrf.mxu0
    %v3210 = vadd.f32 %v3121, %v3209
    %v3211 = vpop.f32.mrf.mxu0
    %v3212 = vadd.f32 %v3123, %v3211
    %3213 = vmatmul.bf16.gmra.mxu0 %v2712
    %v3214 = vpop.f32.mrf.mxu0
    %v3215 = vadd.f32 %v3126, %v3214
    %v3216 = vpop.f32.mrf.mxu0
    %v3217 = vadd.f32 %v3128, %v3216
    %3218 = vmatmul.bf16.gmra.mxu0 %v2714
    %v3219 = vpop.f32.mrf.mxu0
    %v3220 = vadd.f32 %v3131, %v3219
    %v3221 = vpop.f32.mrf.mxu0
    %v3222 = vadd.f32 %v3133, %v3221
    %3223 = vmatmul.bf16.gmra.mxu0 %v2716
    %v3224 = vpop.f32.mrf.mxu0
    %v3225 = vadd.f32 %v3136, %v3224
    %v3226 = vpop.f32.mrf.mxu0
    %v3227 = vadd.f32 %v3138, %v3226
    %3228 = vmatmul.bf16.gmra.mxu0 %v2718
    %v3229 = vpop.f32.mrf.mxu0
    %v3230 = vadd.f32 %v3141, %v3229
    %v3231 = vpop.f32.mrf.mxu0
    %v3232 = vadd.f32 %v3143, %v3231
    %3233 = vmatmul.bf16.gmra.mxu0 %v2720
    %v3234 = vpop.f32.mrf.mxu0
    %v3235 = vadd.f32 %v3146, %v3234
    %v3236 = vpop.f32.mrf.mxu0
    %v3237 = vadd.f32 %v3148, %v3236
    %3238 = vmatmul.bf16.gmra.mxu0 %v2722
    %v3239 = vpop.f32.mrf.mxu0
    %v3240 = vadd.f32 %v3151, %v3239
    %v3241 = vpop.f32.mrf.mxu0
    %v3242 = vadd.f32 %v3153, %v3241
    %3243 = vmatmul.bf16.gmra.mxu0 %v2724
    %v3244 = vpop.f32.mrf.mxu0
    %v3245 = vadd.f32 %v3156, %v3244
    %v3246 = vpop.f32.mrf.mxu0
    %v3247 = vadd.f32 %v3158, %v3246
    %3248 = vmatmul.bf16.gmra.mxu0 %v2726
    %v3249 = vpop.f32.mrf.mxu0
    %v3250 = vadd.f32 %v3161, %v3249
    %v3251 = vpop.f32.mrf.mxu0
    %v3252 = vadd.f32 %v3163, %v3251
    %3253 = vmatmul.bf16.gmra.mxu0 %v2728
    %v3254 = vpop.f32.mrf.mxu0
    %v3255 = vadd.f32 %v3166, %v3254
    %v3256 = vpop.f32.mrf.mxu0
    %v3257 = vadd.f32 %v3168, %v3256
    %3258 = vmatmul.bf16.gmra.mxu0 %v2730
    %v3259 = vpop.f32.mrf.mxu0
    %v3260 = vadd.f32 %v3171, %v3259
    %v3261 = vpop.f32.mrf.mxu0
    %v3262 = vadd.f32 %v3173, %v3261
    %3263 = vmatmul.bf16.gmra.mxu0 %v2732
    %v3264 = vpop.f32.mrf.mxu0
    %v3265 = vadd.f32 %v3176, %v3264
    %v3266 = vpop.f32.mrf.mxu0
    %v3267 = vadd.f32 %v3178, %v3266
    %3268 = vmatmul.bf16.gmra.mxu0 %v2734
    %v3269 = vpop.f32.mrf.mxu0
    %v3270 = vadd.f32 %v3181, %v3269
    %v3271 = vpop.f32.mrf.mxu0
    %v3272 = vadd.f32 %v3183, %v3271
    %3273 = vmatmul.bf16.gmra.mxu0 %v2736
    %v3274 = vpop.f32.mrf.mxu0
    %v3275 = vadd.f32 %v3186, %v3274
    %v3276 = vpop.f32.mrf.mxu0
    %v3277 = vadd.f32 %v3188, %v3276
    %3278 = vmatmul.bf16.gmra.mxu0 %v2738
    %v3279 = vpop.f32.mrf.mxu0
    %v3280 = vadd.f32 %v3191, %v3279
    %v3281 = vpop.f32.mrf.mxu0
    %v3282 = vadd.f32 %v3193, %v3281
    %3283 = vmatmul.bf16.gmra.mxu0 %v2740
    %v3284 = vpop.f32.mrf.mxu0
    %v3285 = vadd.f32 %v3196, %v3284
    %v3286 = vpop.f32.mrf.mxu0
    %v3287 = vadd.f32 %v3198, %v3286
    %3288 = vdwg.mxu0
    %v3289 = vmax.f32 %v3032, 0.0
    %v3290 = vmax.f32 %v3210, 0.0
    %v3291 = vmax.f32 %v3034, 0.0
    %v3292 = vmax.f32 %v3212, 0.0
    %v3293 = vmax.f32 %v3037, 0.0
    %v3294 = vmax.f32 %v3215, 0.0
    %v3295 = vmax.f32 %v3039, 0.0
    %v3296 = vmax.f32 %v3217, 0.0
    %v3297 = vmax.f32 %v3042, 0.0
    %v3298 = vmax.f32 %v3220, 0.0
    %v3299 = vmax.f32 %v3044, 0.0
    %v3300 = vmax.f32 %v3222, 0.0
    %v3301 = vmax.f32 %v3047, 0.0
    %v3302 = vmax.f32 %v3225, 0.0
    %v3303 = vmax.f32 %v3049, 0.0
    %v3304 = vmax.f32 %v3227, 0.0
    %v3305 = vmax.f32 %v3052, 0.0
    %v3306 = vmax.f32 %v3230, 0.0
    %v3307 = vmax.f32 %v3054, 0.0
    %v3308 = vmax.f32 %v3232, 0.0
    %v3309 = vmax.f32 %v3057, 0.0
    %v3310 = vmax.f32 %v3235, 0.0
    %v3311 = vmax.f32 %v3059, 0.0
    %v3312 = vmax.f32 %v3237, 0.0
    %v3313 = vmax.f32 %v3062, 0.0
    %v3314 = vmax.f32 %v3240, 0.0
    %v3315 = vmax.f32 %v3064, 0.0
    %v3316 = vmax.f32 %v3242, 0.0
    %v3317 = vmax.f32 %v3067, 0.0
    %v3318 = vmax.f32 %v3245, 0.0
    %v3319 = vmax.f32 %v3069, 0.0
    %v3320 = vmax.f32 %v3247, 0.0
    %v3321 = vmax.f32 %v3072, 0.0
    %v3322 = vmax.f32 %v3250, 0.0
    %v3323 = vmax.f32 %v3074, 0.0
    %v3324 = vmax.f32 %v3252, 0.0
    %v3325 = vmax.f32 %v3077, 0.0
    %v3326 = vmax.f32 %v3255, 0.0
    %v3327 = vmax.f32 %v3079, 0.0
    %v3328 = vmax.f32 %v3257, 0.0
    %v3329 = vmax.f32 %v3082, 0.0
    %v3330 = vmax.f32 %v3260, 0.0
    %v3331 = vmax.f32 %v3084, 0.0
    %v3332 = vmax.f32 %v3262, 0.0
    %v3333 = vmax.f32 %v3087, 0.0
    %v3334 = vmax.f32 %v3265, 0.0
    %v3335 = vmax.f32 %v3089, 0.0
    %v3336 = vmax.f32 %v3267, 0.0
    %v3337 = vmax.f32 %v3092, 0.0
    %v3338 = vmax.f32 %v3270, 0.0
    %v3339 = vmax.f32 %v3094, 0.0
    %v3340 = vmax.f32 %v3272, 0.0
    %v3341 = vmax.f32 %v3097, 0.0
    %v3342 = vmax.f32 %v3275, 0.0
    %v3343 = vmax.f32 %v3099, 0.0
    %v3344 = vmax.f32 %v3277, 0.0
    %v3345 = vmax.f32 %v3102, 0.0
    %v3346 = vmax.f32 %v3280, 0.0
    %v3347 = vmax.f32 %v3104, 0.0
    %v3348 = vmax.f32 %v3282, 0.0
    %v3349 = vmax.f32 %v3107, 0.0
    %v3350 = vmax.f32 %v3285, 0.0
    %v3351 = vmax.f32 %v3109, 0.0
    %v3352 = vmax.f32 %v3287, 0.0
    %v3353 = vpack.c.bf16 %v3290, %v3289
    %v3354 = vpack.c.bf16 %v3292, %v3291
    %v3355 = vpack.c.bf16 %v3294, %v3293
    %v3356 = vpack.c.bf16 %v3296, %v3295
    %v3357 = vpack.c.bf16 %v3298, %v3297
    %v3358 = vpack.c.bf16 %v3300, %v3299
    %v3359 = vpack.c.bf16 %v3302, %v3301
    %v3360 = vpack.c.bf16 %v3304, %v3303
    %v3361 = vpack.c.bf16 %v3306, %v3305
    %v3362 = vpack.c.bf16 %v3308, %v3307
    %v3363 = vpack.c.bf16 %v3310, %v3309
    %v3364 = vpack.c.bf16 %v3312, %v3311
    %v3365 = vpack.c.bf16 %v3314, %v3313
    %v3366 = vpack.c.bf16 %v3316, %v3315
    %v3367 = vpack.c.bf16 %v3318, %v3317
    %v3368 = vpack.c.bf16 %v3320, %v3319
    %v3369 = vpack.c.bf16 %v3322, %v3321
    %v3370 = vpack.c.bf16 %v3324, %v3323
    %v3371 = vpack.c.bf16 %v3326, %v3325
    %v3372 = vpack.c.bf16 %v3328, %v3327
    %v3373 = vpack.c.bf16 %v3330, %v3329
    %v3374 = vpack.c.bf16 %v3332, %v3331
    %v3375 = vpack.c.bf16 %v3334, %v3333
    %v3376 = vpack.c.bf16 %v3336, %v3335
    %v3377 = vpack.c.bf16 %v3338, %v3337
    %v3378 = vpack.c.bf16 %v3340, %v3339
    %v3379 = vpack.c.bf16 %v3342, %v3341
    %v3380 = vpack.c.bf16 %v3344, %v3343
    %v3381 = vpack.c.bf16 %v3346, %v3345
    %v3382 = vpack.c.bf16 %v3348, %v3347
    %v3383 = vpack.c.bf16 %v3350, %v3349
    %v3384 = vpack.c.bf16 %v3352, %v3351
    %v3385 = vunpack.c.l.bf16 %v2541
    %v3386 = vunpack.c.h.bf16 %v2541
    %v3387 = vunpack.c.l.bf16 %v2542
    %v3388 = vunpack.c.h.bf16 %v2542
    %v3389 = vunpack.c.l.bf16 %v2543
    %v3390 = vunpack.c.h.bf16 %v2543
    %v3391 = vunpack.c.l.bf16 %v2544
    %v3392 = vunpack.c.h.bf16 %v2544
    %v3393 = vunpack.c.l.bf16 %v2545
    %v3394 = vunpack.c.h.bf16 %v2545
    %v3395 = vunpack.c.l.bf16 %v2546
    %v3396 = vunpack.c.h.bf16 %v2546
    %v3397 = vunpack.c.l.bf16 %v2547
    %v3398 = vunpack.c.h.bf16 %v2547
    %v3399 = vunpack.c.l.bf16 %v2548
    %v3400 = vunpack.c.h.bf16 %v2548
    %v3401 = vunpack.c.l.bf16 %v2549
    %v3402 = vunpack.c.h.bf16 %v2549
    %v3403 = vunpack.c.l.bf16 %v2550
    %v3404 = vunpack.c.h.bf16 %v2550
    %v3405 = vunpack.c.l.bf16 %v2551
    %v3406 = vunpack.c.h.bf16 %v2551
    %v3407 = vunpack.c.l.bf16 %v2552
    %v3408 = vunpack.c.h.bf16 %v2552
    %v3409 = vunpack.c.l.bf16 %v2553
    %v3410 = vunpack.c.h.bf16 %v2553
    %v3411 = vunpack.c.l.bf16 %v2554
    %v3412 = vunpack.c.h.bf16 %v2554
    %v3413 = vunpack.c.l.bf16 %v2555
    %v3414 = vunpack.c.h.bf16 %v2555
    %v3415 = vunpack.c.l.bf16 %v2556
    %v3416 = vunpack.c.h.bf16 %v2556
    %v3417 = vunpack.c.l.bf16 %v2557
    %v3418 = vunpack.c.h.bf16 %v2557
    %v3419 = vunpack.c.l.bf16 %v2558
    %v3420 = vunpack.c.h.bf16 %v2558
    %v3421 = vunpack.c.l.bf16 %v2559
    %v3422 = vunpack.c.h.bf16 %v2559
    %v3423 = vunpack.c.l.bf16 %v2560
    %v3424 = vunpack.c.h.bf16 %v2560
    %v3425 = vunpack.c.l.bf16 %v2561
    %v3426 = vunpack.c.h.bf16 %v2561
    %v3427 = vunpack.c.l.bf16 %v2562
    %v3428 = vunpack.c.h.bf16 %v2562
    %v3429 = vunpack.c.l.bf16 %v2563
    %v3430 = vunpack.c.h.bf16 %v2563
    %v3431 = vunpack.c.l.bf16 %v2564
    %v3432 = vunpack.c.h.bf16 %v2564
    %v3433 = vunpack.c.l.bf16 %v2565
    %v3434 = vunpack.c.h.bf16 %v2565
    %v3435 = vunpack.c.l.bf16 %v2566
    %v3436 = vunpack.c.h.bf16 %v2566
    %v3437 = vunpack.c.l.bf16 %v2567
    %v3438 = vunpack.c.h.bf16 %v2567
    %v3439 = vunpack.c.l.bf16 %v2568
    %v3440 = vunpack.c.h.bf16 %v2568
    %v3441 = vunpack.c.l.bf16 %v2569
    %v3442 = vunpack.c.h.bf16 %v2569
    %v3443 = vunpack.c.l.bf16 %v2570
    %v3444 = vunpack.c.h.bf16 %v2570
    %v3445 = vunpack.c.l.bf16 %v2571
    %v3446 = vunpack.c.h.bf16 %v2571
    %v3447 = vunpack.c.l.bf16 %v2572
    %v3448 = vunpack.c.h.bf16 %v2572
    %v3449 = vunpack.c.l.bf16 %v3353
    %v3450 = vunpack.c.h.bf16 %v3353
    %v3451 = vunpack.c.l.bf16 %v3354
    %v3452 = vunpack.c.h.bf16 %v3354
    %v3453 = vunpack.c.l.bf16 %v3355
    %v3454 = vunpack.c.h.bf16 %v3355
    %v3455 = vunpack.c.l.bf16 %v3356
    %v3456 = vunpack.c.h.bf16 %v3356
    %v3457 = vunpack.c.l.bf16 %v3357
    %v3458 = vunpack.c.h.bf16 %v3357
    %v3459 = vunpack.c.l.bf16 %v3358
    %v3460 = vunpack.c.h.bf16 %v3358
    %v3461 = vunpack.c.l.bf16 %v3359
    %v3462 = vunpack.c.h.bf16 %v3359
    %v3463 = vunpack.c.l.bf16 %v3360
    %v3464 = vunpack.c.h.bf16 %v3360
    %v3465 = vunpack.c.l.bf16 %v3361
    %v3466 = vunpack.c.h.bf16 %v3361
    %v3467 = vunpack.c.l.bf16 %v3362
    %v3468 = vunpack.c.h.bf16 %v3362
    %v3469 = vunpack.c.l.bf16 %v3363
    %v3470 = vunpack.c.h.bf16 %v3363
    %v3471 = vunpack.c.l.bf16 %v3364
    %v3472 = vunpack.c.h.bf16 %v3364
    %v3473 = vunpack.c.l.bf16 %v3365
    %v3474 = vunpack.c.h.bf16 %v3365
    %v3475 = vunpack.c.l.bf16 %v3366
    %v3476 = vunpack.c.h.bf16 %v3366
    %v3477 = vunpack.c.l.bf16 %v3367
    %v3478 = vunpack.c.h.bf16 %v3367
    %v3479 = vunpack.c.l.bf16 %v3368
    %v3480 = vunpack.c.h.bf16 %v3368
    %v3481 = vunpack.c.l.bf16 %v3369
    %v3482 = vunpack.c.h.bf16 %v3369
    %v3483 = vunpack.c.l.bf16 %v3370
    %v3484 = vunpack.c.h.bf16 %v3370
    %v3485 = vunpack.c.l.bf16 %v3371
    %v3486 = vunpack.c.h.bf16 %v3371
    %v3487 = vunpack.c.l.bf16 %v3372
    %v3488 = vunpack.c.h.bf16 %v3372
    %v3489 = vunpack.c.l.bf16 %v3373
    %v3490 = vunpack.c.h.bf16 %v3373
    %v3491 = vunpack.c.l.bf16 %v3374
    %v3492 = vunpack.c.h.bf16 %v3374
    %v3493 = vunpack.c.l.bf16 %v3375
    %v3494 = vunpack.c.h.bf16 %v3375
    %v3495 = vunpack.c.l.bf16 %v3376
    %v3496 = vunpack.c.h.bf16 %v3376
    %v3497 = vunpack.c.l.bf16 %v3377
    %v3498 = vunpack.c.h.bf16 %v3377
    %v3499 = vunpack.c.l.bf16 %v3378
    %v3500 = vunpack.c.h.bf16 %v3378
    %v3501 = vunpack.c.l.bf16 %v3379
    %v3502 = vunpack.c.h.bf16 %v3379
    %v3503 = vunpack.c.l.bf16 %v3380
    %v3504 = vunpack.c.h.bf16 %v3380
    %v3505 = vunpack.c.l.bf16 %v3381
    %v3506 = vunpack.c.h.bf16 %v3381
    %v3507 = vunpack.c.l.bf16 %v3382
    %v3508 = vunpack.c.h.bf16 %v3382
    %v3509 = vunpack.c.l.bf16 %v3383
    %v3510 = vunpack.c.h.bf16 %v3383
    %v3511 = vunpack.c.l.bf16 %v3384
    %v3512 = vunpack.c.h.bf16 %v3384
    %v3513 = vadd.f32 %v3385, %v3449
    %v3514 = vadd.f32 %v3386, %v3450
    %v3515 = vadd.f32 %v3387, %v3451
    %v3516 = vadd.f32 %v3388, %v3452
    %v3517 = vadd.f32 %v3389, %v3453
    %v3518 = vadd.f32 %v3390, %v3454
    %v3519 = vadd.f32 %v3391, %v3455
    %v3520 = vadd.f32 %v3392, %v3456
    %v3521 = vadd.f32 %v3393, %v3457
    %v3522 = vadd.f32 %v3394, %v3458
    %v3523 = vadd.f32 %v3395, %v3459
    %v3524 = vadd.f32 %v3396, %v3460
    %v3525 = vadd.f32 %v3397, %v3461
    %v3526 = vadd.f32 %v3398, %v3462
    %v3527 = vadd.f32 %v3399, %v3463
    %v3528 = vadd.f32 %v3400, %v3464
    %v3529 = vadd.f32 %v3401, %v3465
    %v3530 = vadd.f32 %v3402, %v3466
    %v3531 = vadd.f32 %v3403, %v3467
    %v3532 = vadd.f32 %v3404, %v3468
    %v3533 = vadd.f32 %v3405, %v3469
    %v3534 = vadd.f32 %v3406, %v3470
    %v3535 = vadd.f32 %v3407, %v3471
    %v3536 = vadd.f32 %v3408, %v3472
    %v3537 = vadd.f32 %v3409, %v3473
    %v3538 = vadd.f32 %v3410, %v3474
    %v3539 = vadd.f32 %v3411, %v3475
    %v3540 = vadd.f32 %v3412, %v3476
    %v3541 = vadd.f32 %v3413, %v3477
    %v3542 = vadd.f32 %v3414, %v3478
    %v3543 = vadd.f32 %v3415, %v3479
    %v3544 = vadd.f32 %v3416, %v3480
    %v3545 = vadd.f32 %v3417, %v3481
    %v3546 = vadd.f32 %v3418, %v3482
    %v3547 = vadd.f32 %v3419, %v3483
    %v3548 = vadd.f32 %v3420, %v3484
    %v3549 = vadd.f32 %v3421, %v3485
    %v3550 = vadd.f32 %v3422, %v3486
    %v3551 = vadd.f32 %v3423, %v3487
    %v3552 = vadd.f32 %v3424, %v3488
    %v3553 = vadd.f32 %v3425, %v3489
    %v3554 = vadd.f32 %v3426, %v3490
    %v3555 = vadd.f32 %v3427, %v3491
    %v3556 = vadd.f32 %v3428, %v3492
    %v3557 = vadd.f32 %v3429, %v3493
    %v3558 = vadd.f32 %v3430, %v3494
    %v3559 = vadd.f32 %v3431, %v3495
    %v3560 = vadd.f32 %v3432, %v3496
    %v3561 = vadd.f32 %v3433, %v3497
    %v3562 = vadd.f32 %v3434, %v3498
    %v3563 = vadd.f32 %v3435, %v3499
    %v3564 = vadd.f32 %v3436, %v3500
    %v3565 = vadd.f32 %v3437, %v3501
    %v3566 = vadd.f32 %v3438, %v3502
    %v3567 = vadd.f32 %v3439, %v3503
    %v3568 = vadd.f32 %v3440, %v3504
    %v3569 = vadd.f32 %v3441, %v3505
    %v3570 = vadd.f32 %v3442, %v3506
    %v3571 = vadd.f32 %v3443, %v3507
    %v3572 = vadd.f32 %v3444, %v3508
    %v3573 = vadd.f32 %v3445, %v3509
    %v3574 = vadd.f32 %v3446, %v3510
    %v3575 = vadd.f32 %v3447, %v3511
    %v3576 = vadd.f32 %v3448, %v3512
    %v3577 = vpack.c.bf16 %v3514, %v3513
    %v3578 = vpack.c.bf16 %v3516, %v3515
    %v3579 = vpack.c.bf16 %v3518, %v3517
    %v3580 = vpack.c.bf16 %v3520, %v3519
    %v3581 = vpack.c.bf16 %v3522, %v3521
    %v3582 = vpack.c.bf16 %v3524, %v3523
    %v3583 = vpack.c.bf16 %v3526, %v3525
    %v3584 = vpack.c.bf16 %v3528, %v3527
    %v3585 = vpack.c.bf16 %v3530, %v3529
    %v3586 = vpack.c.bf16 %v3532, %v3531
    %v3587 = vpack.c.bf16 %v3534, %v3533
    %v3588 = vpack.c.bf16 %v3536, %v3535
    %v3589 = vpack.c.bf16 %v3538, %v3537
    %v3590 = vpack.c.bf16 %v3540, %v3539
    %v3591 = vpack.c.bf16 %v3542, %v3541
    %v3592 = vpack.c.bf16 %v3544, %v3543
    %v3593 = vpack.c.bf16 %v3546, %v3545
    %v3594 = vpack.c.bf16 %v3548, %v3547
    %v3595 = vpack.c.bf16 %v3550, %v3549
    %v3596 = vpack.c.bf16 %v3552, %v3551
    %v3597 = vpack.c.bf16 %v3554, %v3553
    %v3598 = vpack.c.bf16 %v3556, %v3555
    %v3599 = vpack.c.bf16 %v3558, %v3557
    %v3600 = vpack.c.bf16 %v3560, %v3559
    %v3601 = vpack.c.bf16 %v3562, %v3561
    %v3602 = vpack.c.bf16 %v3564, %v3563
    %v3603 = vpack.c.bf16 %v3566, %v3565
    %v3604 = vpack.c.bf16 %v3568, %v3567
    %v3605 = vpack.c.bf16 %v3570, %v3569
    %v3606 = vpack.c.bf16 %v3572, %v3571
    %v3607 = vpack.c.bf16 %v3574, %v3573
    %v3608 = vpack.c.bf16 %v3576, %v3575
    %v3609 = vadd.f32 %v1603, %v3449
    %v3610 = vadd.f32 %v1604, %v3450
    %v3611 = vadd.f32 %v1605, %v3451
    %v3612 = vadd.f32 %v1606, %v3452
    %v3613 = vadd.f32 %v1607, %v3453
    %v3614 = vadd.f32 %v1608, %v3454
    %v3615 = vadd.f32 %v1609, %v3455
    %v3616 = vadd.f32 %v1610, %v3456
    %v3617 = vadd.f32 %v1611, %v3457
    %v3618 = vadd.f32 %v1612, %v3458
    %v3619 = vadd.f32 %v1613, %v3459
    %v3620 = vadd.f32 %v1614, %v3460
    %v3621 = vadd.f32 %v1615, %v3461
    %v3622 = vadd.f32 %v1616, %v3462
    %v3623 = vadd.f32 %v1617, %v3463
    %v3624 = vadd.f32 %v1618, %v3464
    %v3625 = vadd.f32 %v1619, %v3465
    %v3626 = vadd.f32 %v1620, %v3466
    %v3627 = vadd.f32 %v1621, %v3467
    %v3628 = vadd.f32 %v1622, %v3468
    %v3629 = vadd.f32 %v1623, %v3469
    %v3630 = vadd.f32 %v1624, %v3470
    %v3631 = vadd.f32 %v1625, %v3471
    %v3632 = vadd.f32 %v1626, %v3472
    %v3633 = vadd.f32 %v1627, %v3473
    %v3634 = vadd.f32 %v1628, %v3474
    %v3635 = vadd.f32 %v1629, %v3475
    %v3636 = vadd.f32 %v1630, %v3476
    %v3637 = vadd.f32 %v1631, %v3477
    %v3638 = vadd.f32 %v1632, %v3478
    %v3639 = vadd.f32 %v1633, %v3479
    %v3640 = vadd.f32 %v1634, %v3480
    %v3641 = vadd.f32 %v1635, %v3481
    %v3642 = vadd.f32 %v1636, %v3482
    %v3643 = vadd.f32 %v1637, %v3483
    %v3644 = vadd.f32 %v1638, %v3484
    %v3645 = vadd.f32 %v1639, %v3485
    %v3646 = vadd.f32 %v1640, %v3486
    %v3647 = vadd.f32 %v1641, %v3487
    %v3648 = vadd.f32 %v1642, %v3488
    %v3649 = vadd.f32 %v1643, %v3489
    %v3650 = vadd.f32 %v1644, %v3490
    %v3651 = vadd.f32 %v1645, %v3491
    %v3652 = vadd.f32 %v1646, %v3492
    %v3653 = vadd.f32 %v1647, %v3493
    %v3654 = vadd.f32 %v1648, %v3494
    %v3655 = vadd.f32 %v1649, %v3495
    %v3656 = vadd.f32 %v1650, %v3496
    %v3657 = vadd.f32 %v1651, %v3497
    %v3658 = vadd.f32 %v1652, %v3498
    %v3659 = vadd.f32 %v1653, %v3499
    %v3660 = vadd.f32 %v1654, %v3500
    %v3661 = vadd.f32 %v1655, %v3501
    %v3662 = vadd.f32 %v1656, %v3502
    %v3663 = vadd.f32 %v1657, %v3503
    %v3664 = vadd.f32 %v1658, %v3504
    %v3665 = vadd.f32 %v1659, %v3505
    %v3666 = vadd.f32 %v1660, %v3506
    %v3667 = vadd.f32 %v1661, %v3507
    %v3668 = vadd.f32 %v1662, %v3508
    %v3669 = vadd.f32 %v1663, %v3509
    %v3670 = vadd.f32 %v1664, %v3510
    %v3671 = vadd.f32 %v1665, %v3511
    %v3672 = vadd.f32 %v1666, %v3512
    %v3673 = vpack.c.bf16 %v3611, %v3609
    %v3674 = vpack.c.bf16 %v3612, %v3610
    %v3675 = vpack.c.bf16 %v3615, %v3613
    %v3676 = vpack.c.bf16 %v3616, %v3614
    %v3677 = vpack.c.bf16 %v3619, %v3617
    %v3678 = vpack.c.bf16 %v3620, %v3618
    %v3679 = vpack.c.bf16 %v3623, %v3621
    %v3680 = vpack.c.bf16 %v3624, %v3622
    %v3681 = vpack.c.bf16 %v3627, %v3625
    %v3682 = vpack.c.bf16 %v3628, %v3626
    %v3683 = vpack.c.bf16 %v3631, %v3629
    %v3684 = vpack.c.bf16 %v3632, %v3630
    %v3685 = vpack.c.bf16 %v3635, %v3633
    %v3686 = vpack.c.bf16 %v3636, %v3634
    %v3687 = vpack.c.bf16 %v3639, %v3637
    %v3688 = vpack.c.bf16 %v3640, %v3638
    %v3689 = vpack.c.bf16 %v3643, %v3641
    %v3690 = vpack.c.bf16 %v3644, %v3642
    %v3691 = vpack.c.bf16 %v3647, %v3645
    %v3692 = vpack.c.bf16 %v3648, %v3646
    %v3693 = vpack.c.bf16 %v3651, %v3649
    %v3694 = vpack.c.bf16 %v3652, %v3650
    %v3695 = vpack.c.bf16 %v3655, %v3653
    %v3696 = vpack.c.bf16 %v3656, %v3654
    %v3697 = vpack.c.bf16 %v3659, %v3657
    %v3698 = vpack.c.bf16 %v3660, %v3658
    %v3699 = vpack.c.bf16 %v3663, %v3661
    %v3700 = vpack.c.bf16 %v3664, %v3662
    %v3701 = vpack.c.bf16 %v3667, %v3665
    %v3702 = vpack.c.bf16 %v3668, %v3666
    %v3703 = vpack.c.bf16 %v3671, %v3669
    %v3704 = vpack.c.bf16 %v3672, %v3670
    %s3705 = scalar_lea.vmem %s3, 512
    %v3706 = vld [vmem:[%s3705] sm:$0xff]
    %v3707 = vld [vmem:[%s3705 + $0x8] sm:$0xff]
    %v3708 = vld [vmem:[%s3705 + $0x10] sm:$0xff]
    %v3709 = vld [vmem:[%s3705 + $0x18] sm:$0xff]
    %v3710 = vld [vmem:[%s3705 + $0x20] sm:$0xff]
    %v3711 = vld [vmem:[%s3705 + $0x28] sm:$0xff]
    %v3712 = vld [vmem:[%s3705 + $0x30] sm:$0xff]
    %v3713 = vld [vmem:[%s3705 + $0x38] sm:$0xff]
    %v3714 = vld [vmem:[%s3705 + $0x40] sm:$0xff]
    %v3715 = vld [vmem:[%s3705 + $0x48] sm:$0xff]
    %v3716 = vld [vmem:[%s3705 + $0x50] sm:$0xff]
    %v3717 = vld [vmem:[%s3705 + $0x58] sm:$0xff]
    %v3718 = vld [vmem:[%s3705 + $0x60] sm:$0xff]
    %v3719 = vld [vmem:[%s3705 + $0x68] sm:$0xff]
    %v3720 = vld [vmem:[%s3705 + $0x70] sm:$0xff]
    %v3721 = vld [vmem:[%s3705 + $0x78] sm:$0xff]
    %v3722 = vld [vmem:[%s3705 + $0x80] sm:$0xff]
    %v3723 = vld [vmem:[%s3705 + $0x88] sm:$0xff]
    %v3724 = vld [vmem:[%s3705 + $0x90] sm:$0xff]
    %v3725 = vld [vmem:[%s3705 + $0x98] sm:$0xff]
    %v3726 = vld [vmem:[%s3705 + $0xa0] sm:$0xff]
    %v3727 = vld [vmem:[%s3705 + $0xa8] sm:$0xff]
    %v3728 = vld [vmem:[%s3705 + $0xb0] sm:$0xff]
    %v3729 = vld [vmem:[%s3705 + $0xb8] sm:$0xff]
    %v3730 = vld [vmem:[%s3705 + $0xc0] sm:$0xff]
    %v3731 = vld [vmem:[%s3705 + $0xc8] sm:$0xff]
    %v3732 = vld [vmem:[%s3705 + $0xd0] sm:$0xff]
    %v3733 = vld [vmem:[%s3705 + $0xd8] sm:$0xff]
    %v3734 = vld [vmem:[%s3705 + $0xe0] sm:$0xff]
    %v3735 = vld [vmem:[%s3705 + $0xe8] sm:$0xff]
    %v3736 = vld [vmem:[%s3705 + $0xf0] sm:$0xff]
    %v3737 = vld [vmem:[%s3705 + $0xf8] sm:$0xff]
    %s3738 = scalar_lea.vmem %s4, 4
    %v3739 = vld [vmem:[%s3738] sm:$0x3]
    %v3741 = vperm.slane %v3739, 0
    %v3742 = vperm.slane %v3739, 1
    %v3777 = vunpack.c.l.b16 %v3706
    %v3778 = vunpack.c.h.b16 %v3706
    %v3779 = vunpack.c.l.b16 %v3707
    %v3780 = vunpack.c.h.b16 %v3707
    %v3781 = vunpack.c.l.b16 %v3708
    %v3782 = vunpack.c.h.b16 %v3708
    %v3783 = vunpack.c.l.b16 %v3709
    %v3784 = vunpack.c.h.b16 %v3709
    %v3785 = vunpack.c.l.b16 %v3710
    %v3786 = vunpack.c.h.b16 %v3710
    %v3787 = vunpack.c.l.b16 %v3711
    %v3788 = vunpack.c.h.b16 %v3711
    %v3789 = vunpack.c.l.b16 %v3712
    %v3790 = vunpack.c.h.b16 %v3712
    %v3791 = vunpack.c.l.b16 %v3713
    %v3792 = vunpack.c.h.b16 %v3713
    %v3793 = vunpack.c.l.b16 %v3714
    %v3794 = vunpack.c.h.b16 %v3714
    %v3795 = vunpack.c.l.b16 %v3715
    %v3796 = vunpack.c.h.b16 %v3715
    %v3797 = vunpack.c.l.b16 %v3716
    %v3798 = vunpack.c.h.b16 %v3716
    %v3799 = vunpack.c.l.b16 %v3717
    %v3800 = vunpack.c.h.b16 %v3717
    %v3801 = vunpack.c.l.b16 %v3718
    %v3802 = vunpack.c.h.b16 %v3718
    %v3803 = vunpack.c.l.b16 %v3719
    %v3804 = vunpack.c.h.b16 %v3719
    %v3805 = vunpack.c.l.b16 %v3720
    %v3806 = vunpack.c.h.b16 %v3720
    %v3807 = vunpack.c.l.b16 %v3721
    %v3808 = vunpack.c.h.b16 %v3721
    %v3809 = vunpack.c.l.b16 %v3722
    %v3810 = vunpack.c.h.b16 %v3722
    %v3811 = vunpack.c.l.b16 %v3723
    %v3812 = vunpack.c.h.b16 %v3723
    %v3813 = vunpack.c.l.b16 %v3724
    %v3814 = vunpack.c.h.b16 %v3724
    %v3815 = vunpack.c.l.b16 %v3725
    %v3816 = vunpack.c.h.b16 %v3725
    %v3817 = vunpack.c.l.b16 %v3726
    %v3818 = vunpack.c.h.b16 %v3726
    %v3819 = vunpack.c.l.b16 %v3727
    %v3820 = vunpack.c.h.b16 %v3727
    %v3821 = vunpack.c.l.b16 %v3728
    %v3822 = vunpack.c.h.b16 %v3728
    %v3823 = vunpack.c.l.b16 %v3729
    %v3824 = vunpack.c.h.b16 %v3729
    %v3825 = vunpack.c.l.b16 %v3730
    %v3826 = vunpack.c.h.b16 %v3730
    %v3827 = vunpack.c.l.b16 %v3731
    %v3828 = vunpack.c.h.b16 %v3731
    %v3829 = vunpack.c.l.b16 %v3732
    %v3830 = vunpack.c.h.b16 %v3732
    %v3831 = vunpack.c.l.b16 %v3733
    %v3832 = vunpack.c.h.b16 %v3733
    %v3833 = vunpack.c.l.b16 %v3734
    %v3834 = vunpack.c.h.b16 %v3734
    %v3835 = vunpack.c.l.b16 %v3735
    %v3836 = vunpack.c.h.b16 %v3735
    %v3837 = vunpack.c.l.b16 %v3736
    %v3838 = vunpack.c.h.b16 %v3736
    %v3839 = vunpack.c.l.b16 %v3737
    %v3840 = vunpack.c.h.b16 %v3737
    %v3841 = vpack.c.b16 %v3779, %v3777
    %v3842 = vpack.c.b16 %v3780, %v3778
    %v3843 = vpack.c.b16 %v3783, %v3781
    %v3844 = vpack.c.b16 %v3784, %v3782
    %v3845 = vpack.c.b16 %v3787, %v3785
    %v3846 = vpack.c.b16 %v3788, %v3786
    %v3847 = vpack.c.b16 %v3791, %v3789
    %v3848 = vpack.c.b16 %v3792, %v3790
    %v3849 = vpack.c.b16 %v3795, %v3793
    %v3850 = vpack.c.b16 %v3796, %v3794
    %v3851 = vpack.c.b16 %v3799, %v3797
    %v3852 = vpack.c.b16 %v3800, %v3798
    %v3853 = vpack.c.b16 %v3803, %v3801
    %v3854 = vpack.c.b16 %v3804, %v3802
    %v3855 = vpack.c.b16 %v3807, %v3805
    %v3856 = vpack.c.b16 %v3808, %v3806
    %v3857 = vpack.c.b16 %v3811, %v3809
    %v3858 = vpack.c.b16 %v3812, %v3810
    %v3859 = vpack.c.b16 %v3815, %v3813
    %v3860 = vpack.c.b16 %v3816, %v3814
    %v3861 = vpack.c.b16 %v3819, %v3817
    %v3862 = vpack.c.b16 %v3820, %v3818
    %v3863 = vpack.c.b16 %v3823, %v3821
    %v3864 = vpack.c.b16 %v3824, %v3822
    %v3865 = vpack.c.b16 %v3827, %v3825
    %v3866 = vpack.c.b16 %v3828, %v3826
    %v3867 = vpack.c.b16 %v3831, %v3829
    %v3868 = vpack.c.b16 %v3832, %v3830
    %v3869 = vpack.c.b16 %v3835, %v3833
    %v3870 = vpack.c.b16 %v3836, %v3834
    %v3871 = vpack.c.b16 %v3839, %v3837
    %v3872 = vpack.c.b16 %v3840, %v3838
    %3905 = vmatpush.bf16.msra.mxu0 %v3855
    %3906 = vmatpush.bf16.msra.mxu0 %v3853
    %3907 = vmatpush.bf16.msra.mxu0 %v3851
    %3908 = vmatpush.bf16.msra.mxu0 %v3849
    %3909 = vmatpush.bf16.msra.mxu0 %v3847
    %3910 = vmatpush.bf16.msra.mxu0 %v3845
    %3911 = vmatpush.bf16.msra.mxu0 %v3843
    %3912 = vmatpush.bf16.msra.mxu0 %v3841
    %3913 = vmatmul.bf16.gmra.mxu0 %v3673
    %v3914 = vpop.f32.mrf.mxu0
    %v3915 = vadd.f32 %v3741, %v3914
    %v3916 = vpop.f32.mrf.mxu0
    %v3917 = vadd.f32 %v3741, %v3916
    %3918 = vmatmul.bf16.gmra.mxu0 %v3675
    %v3919 = vpop.f32.mrf.mxu0
    %v3920 = vadd.f32 %v3741, %v3919
    %v3921 = vpop.f32.mrf.mxu0
    %v3922 = vadd.f32 %v3741, %v3921
    %3923 = vmatmul.bf16.gmra.mxu0 %v3677
    %v3924 = vpop.f32.mrf.mxu0
    %v3925 = vadd.f32 %v3741, %v3924
    %v3926 = vpop.f32.mrf.mxu0
    %v3927 = vadd.f32 %v3741, %v3926
    %3928 = vmatmul.bf16.gmra.mxu0 %v3679
    %v3929 = vpop.f32.mrf.mxu0
    %v3930 = vadd.f32 %v3741, %v3929
    %v3931 = vpop.f32.mrf.mxu0
    %v3932 = vadd.f32 %v3741, %v3931
    %3933 = vmatmul.bf16.gmra.mxu0 %v3681
    %v3934 = vpop.f32.mrf.mxu0
    %v3935 = vadd.f32 %v3741, %v3934
    %v3936 = vpop.f32.mrf.mxu0
    %v3937 = vadd.f32 %v3741, %v3936
    %3938 = vmatmul.bf16.gmra.mxu0 %v3683
    %v3939 = vpop.f32.mrf.mxu0
    %v3940 = vadd.f32 %v3741, %v3939
    %v3941 = vpop.f32.mrf.mxu0
    %v3942 = vadd.f32 %v3741, %v3941
    %3943 = vmatmul.bf16.gmra.mxu0 %v3685
    %v3944 = vpop.f32.mrf.mxu0
    %v3945 = vadd.f32 %v3741, %v3944
    %v3946 = vpop.f32.mrf.mxu0
    %v3947 = vadd.f32 %v3741, %v3946
    %3948 = vmatmul.bf16.gmra.mxu0 %v3687
    %v3949 = vpop.f32.mrf.mxu0
    %v3950 = vadd.f32 %v3741, %v3949
    %v3951 = vpop.f32.mrf.mxu0
    %v3952 = vadd.f32 %v3741, %v3951
    %3953 = vmatmul.bf16.gmra.mxu0 %v3689
    %v3954 = vpop.f32.mrf.mxu0
    %v3955 = vadd.f32 %v3741, %v3954
    %v3956 = vpop.f32.mrf.mxu0
    %v3957 = vadd.f32 %v3741, %v3956
    %3958 = vmatmul.bf16.gmra.mxu0 %v3691
    %v3959 = vpop.f32.mrf.mxu0
    %v3960 = vadd.f32 %v3741, %v3959
    %v3961 = vpop.f32.mrf.mxu0
    %v3962 = vadd.f32 %v3741, %v3961
    %3963 = vmatmul.bf16.gmra.mxu0 %v3693
    %v3964 = vpop.f32.mrf.mxu0
    %v3965 = vadd.f32 %v3741, %v3964
    %v3966 = vpop.f32.mrf.mxu0
    %v3967 = vadd.f32 %v3741, %v3966
    %3968 = vmatmul.bf16.gmra.mxu0 %v3695
    %v3969 = vpop.f32.mrf.mxu0
    %v3970 = vadd.f32 %v3741, %v3969
    %v3971 = vpop.f32.mrf.mxu0
    %v3972 = vadd.f32 %v3741, %v3971
    %3973 = vmatmul.bf16.gmra.mxu0 %v3697
    %v3974 = vpop.f32.mrf.mxu0
    %v3975 = vadd.f32 %v3741, %v3974
    %v3976 = vpop.f32.mrf.mxu0
    %v3977 = vadd.f32 %v3741, %v3976
    %3978 = vmatmul.bf16.gmra.mxu0 %v3699
    %v3979 = vpop.f32.mrf.mxu0
    %v3980 = vadd.f32 %v3741, %v3979
    %v3981 = vpop.f32.mrf.mxu0
    %v3982 = vadd.f32 %v3741, %v3981
    %3983 = vmatmul.bf16.gmra.mxu0 %v3701
    %v3984 = vpop.f32.mrf.mxu0
    %v3985 = vadd.f32 %v3741, %v3984
    %v3986 = vpop.f32.mrf.mxu0
    %v3987 = vadd.f32 %v3741, %v3986
    %3988 = vmatmul.bf16.gmra.mxu0 %v3703
    %v3989 = vpop.f32.mrf.mxu0
    %v3990 = vadd.f32 %v3741, %v3989
    %v3991 = vpop.f32.mrf.mxu0
    %v3992 = vadd.f32 %v3741, %v3991
    %3993 = vdwg.mxu0
    %3994 = vmatpush.bf16.msra.mxu0 %v3871
    %3995 = vmatpush.bf16.msra.mxu0 %v3869
    %3996 = vmatpush.bf16.msra.mxu0 %v3867
    %3997 = vmatpush.bf16.msra.mxu0 %v3865
    %3998 = vmatpush.bf16.msra.mxu0 %v3863
    %3999 = vmatpush.bf16.msra.mxu0 %v3861
    %4000 = vmatpush.bf16.msra.mxu0 %v3859
    %4001 = vmatpush.bf16.msra.mxu0 %v3857
    %4002 = vmatmul.bf16.gmra.mxu0 %v3674
    %v4003 = vpop.f32.mrf.mxu0
    %v4004 = vadd.f32 %v3915, %v4003
    %v4005 = vpop.f32.mrf.mxu0
    %v4006 = vadd.f32 %v3917, %v4005
    %4007 = vmatmul.bf16.gmra.mxu0 %v3676
    %v4008 = vpop.f32.mrf.mxu0
    %v4009 = vadd.f32 %v3920, %v4008
    %v4010 = vpop.f32.mrf.mxu0
    %v4011 = vadd.f32 %v3922, %v4010
    %4012 = vmatmul.bf16.gmra.mxu0 %v3678
    %v4013 = vpop.f32.mrf.mxu0
    %v4014 = vadd.f32 %v3925, %v4013
    %v4015 = vpop.f32.mrf.mxu0
    %v4016 = vadd.f32 %v3927, %v4015
    %4017 = vmatmul.bf16.gmra.mxu0 %v3680
    %v4018 = vpop.f32.mrf.mxu0
    %v4019 = vadd.f32 %v3930, %v4018
    %v4020 = vpop.f32.mrf.mxu0
    %v4021 = vadd.f32 %v3932, %v4020
    %4022 = vmatmul.bf16.gmra.mxu0 %v3682
    %v4023 = vpop.f32.mrf.mxu0
    %v4024 = vadd.f32 %v3935, %v4023
    %v4025 = vpop.f32.mrf.mxu0
    %v4026 = vadd.f32 %v3937, %v4025
    %4027 = vmatmul.bf16.gmra.mxu0 %v3684
    %v4028 = vpop.f32.mrf.mxu0
    %v4029 = vadd.f32 %v3940, %v4028
    %v4030 = vpop.f32.mrf.mxu0
    %v4031 = vadd.f32 %v3942, %v4030
    %4032 = vmatmul.bf16.gmra.mxu0 %v3686
    %v4033 = vpop.f32.mrf.mxu0
    %v4034 = vadd.f32 %v3945, %v4033
    %v4035 = vpop.f32.mrf.mxu0
    %v4036 = vadd.f32 %v3947, %v4035
    %4037 = vmatmul.bf16.gmra.mxu0 %v3688
    %v4038 = vpop.f32.mrf.mxu0
    %v4039 = vadd.f32 %v3950, %v4038
    %v4040 = vpop.f32.mrf.mxu0
    %v4041 = vadd.f32 %v3952, %v4040
    %4042 = vmatmul.bf16.gmra.mxu0 %v3690
    %v4043 = vpop.f32.mrf.mxu0
    %v4044 = vadd.f32 %v3955, %v4043
    %v4045 = vpop.f32.mrf.mxu0
    %v4046 = vadd.f32 %v3957, %v4045
    %4047 = vmatmul.bf16.gmra.mxu0 %v3692
    %v4048 = vpop.f32.mrf.mxu0
    %v4049 = vadd.f32 %v3960, %v4048
    %v4050 = vpop.f32.mrf.mxu0
    %v4051 = vadd.f32 %v3962, %v4050
    %4052 = vmatmul.bf16.gmra.mxu0 %v3694
    %v4053 = vpop.f32.mrf.mxu0
    %v4054 = vadd.f32 %v3965, %v4053
    %v4055 = vpop.f32.mrf.mxu0
    %v4056 = vadd.f32 %v3967, %v4055
    %4057 = vmatmul.bf16.gmra.mxu0 %v3696
    %v4058 = vpop.f32.mrf.mxu0
    %v4059 = vadd.f32 %v3970, %v4058
    %v4060 = vpop.f32.mrf.mxu0
    %v4061 = vadd.f32 %v3972, %v4060
    %4062 = vmatmul.bf16.gmra.mxu0 %v3698
    %v4063 = vpop.f32.mrf.mxu0
    %v4064 = vadd.f32 %v3975, %v4063
    %v4065 = vpop.f32.mrf.mxu0
    %v4066 = vadd.f32 %v3977, %v4065
    %4067 = vmatmul.bf16.gmra.mxu0 %v3700
    %v4068 = vpop.f32.mrf.mxu0
    %v4069 = vadd.f32 %v3980, %v4068
    %v4070 = vpop.f32.mrf.mxu0
    %v4071 = vadd.f32 %v3982, %v4070
    %4072 = vmatmul.bf16.gmra.mxu0 %v3702
    %v4073 = vpop.f32.mrf.mxu0
    %v4074 = vadd.f32 %v3985, %v4073
    %v4075 = vpop.f32.mrf.mxu0
    %v4076 = vadd.f32 %v3987, %v4075
    %4077 = vmatmul.bf16.gmra.mxu0 %v3704
    %v4078 = vpop.f32.mrf.mxu0
    %v4079 = vadd.f32 %v3990, %v4078
    %v4080 = vpop.f32.mrf.mxu0
    %v4081 = vadd.f32 %v3992, %v4080
    %4082 = vdwg.mxu0
    %4083 = vmatpush.bf16.msra.mxu0 %v3856
    %4084 = vmatpush.bf16.msra.mxu0 %v3854
    %4085 = vmatpush.bf16.msra.mxu0 %v3852
    %4086 = vmatpush.bf16.msra.mxu0 %v3850
    %4087 = vmatpush.bf16.msra.mxu0 %v3848
    %4088 = vmatpush.bf16.msra.mxu0 %v3846
    %4089 = vmatpush.bf16.msra.mxu0 %v3844
    %4090 = vmatpush.bf16.msra.mxu0 %v3842
    %4091 = vmatmul.bf16.gmra.mxu0 %v3673
    %v4092 = vpop.f32.mrf.mxu0
    %v4093 = vadd.f32 %v3742, %v4092
    %v4094 = vpop.f32.mrf.mxu0
    %v4095 = vadd.f32 %v3742, %v4094
    %4096 = vmatmul.bf16.gmra.mxu0 %v3675
    %v4097 = vpop.f32.mrf.mxu0
    %v4098 = vadd.f32 %v3742, %v4097
    %v4099 = vpop.f32.mrf.mxu0
    %v4100 = vadd.f32 %v3742, %v4099
    %4101 = vmatmul.bf16.gmra.mxu0 %v3677
    %v4102 = vpop.f32.mrf.mxu0
    %v4103 = vadd.f32 %v3742, %v4102
    %v4104 = vpop.f32.mrf.mxu0
    %v4105 = vadd.f32 %v3742, %v4104
    %4106 = vmatmul.bf16.gmra.mxu0 %v3679
    %v4107 = vpop.f32.mrf.mxu0
    %v4108 = vadd.f32 %v3742, %v4107
    %v4109 = vpop.f32.mrf.mxu0
    %v4110 = vadd.f32 %v3742, %v4109
    %4111 = vmatmul.bf16.gmra.mxu0 %v3681
    %v4112 = vpop.f32.mrf.mxu0
    %v4113 = vadd.f32 %v3742, %v4112
    %v4114 = vpop.f32.mrf.mxu0
    %v4115 = vadd.f32 %v3742, %v4114
    %4116 = vmatmul.bf16.gmra.mxu0 %v3683
    %v4117 = vpop.f32.mrf.mxu0
    %v4118 = vadd.f32 %v3742, %v4117
    %v4119 = vpop.f32.mrf.mxu0
    %v4120 = vadd.f32 %v3742, %v4119
    %4121 = vmatmul.bf16.gmra.mxu0 %v3685
    %v4122 = vpop.f32.mrf.mxu0
    %v4123 = vadd.f32 %v3742, %v4122
    %v4124 = vpop.f32.mrf.mxu0
    %v4125 = vadd.f32 %v3742, %v4124
    %4126 = vmatmul.bf16.gmra.mxu0 %v3687
    %v4127 = vpop.f32.mrf.mxu0
    %v4128 = vadd.f32 %v3742, %v4127
    %v4129 = vpop.f32.mrf.mxu0
    %v4130 = vadd.f32 %v3742, %v4129
    %4131 = vmatmul.bf16.gmra.mxu0 %v3689
    %v4132 = vpop.f32.mrf.mxu0
    %v4133 = vadd.f32 %v3742, %v4132
    %v4134 = vpop.f32.mrf.mxu0
    %v4135 = vadd.f32 %v3742, %v4134
    %4136 = vmatmul.bf16.gmra.mxu0 %v3691
    %v4137 = vpop.f32.mrf.mxu0
    %v4138 = vadd.f32 %v3742, %v4137
    %v4139 = vpop.f32.mrf.mxu0
    %v4140 = vadd.f32 %v3742, %v4139
    %4141 = vmatmul.bf16.gmra.mxu0 %v3693
    %v4142 = vpop.f32.mrf.mxu0
    %v4143 = vadd.f32 %v3742, %v4142
    %v4144 = vpop.f32.mrf.mxu0
    %v4145 = vadd.f32 %v3742, %v4144
    %4146 = vmatmul.bf16.gmra.mxu0 %v3695
    %v4147 = vpop.f32.mrf.mxu0
    %v4148 = vadd.f32 %v3742, %v4147
    %v4149 = vpop.f32.mrf.mxu0
    %v4150 = vadd.f32 %v3742, %v4149
    %4151 = vmatmul.bf16.gmra.mxu0 %v3697
    %v4152 = vpop.f32.mrf.mxu0
    %v4153 = vadd.f32 %v3742, %v4152
    %v4154 = vpop.f32.mrf.mxu0
    %v4155 = vadd.f32 %v3742, %v4154
    %4156 = vmatmul.bf16.gmra.mxu0 %v3699
    %v4157 = vpop.f32.mrf.mxu0
    %v4158 = vadd.f32 %v3742, %v4157
    %v4159 = vpop.f32.mrf.mxu0
    %v4160 = vadd.f32 %v3742, %v4159
    %4161 = vmatmul.bf16.gmra.mxu0 %v3701
    %v4162 = vpop.f32.mrf.mxu0
    %v4163 = vadd.f32 %v3742, %v4162
    %v4164 = vpop.f32.mrf.mxu0
    %v4165 = vadd.f32 %v3742, %v4164
    %4166 = vmatmul.bf16.gmra.mxu0 %v3703
    %v4167 = vpop.f32.mrf.mxu0
    %v4168 = vadd.f32 %v3742, %v4167
    %v4169 = vpop.f32.mrf.mxu0
    %v4170 = vadd.f32 %v3742, %v4169
    %4171 = vdwg.mxu0
    %4172 = vmatpush.bf16.msra.mxu0 %v3872
    %4173 = vmatpush.bf16.msra.mxu0 %v3870
    %4174 = vmatpush.bf16.msra.mxu0 %v3868
    %4175 = vmatpush.bf16.msra.mxu0 %v3866
    %4176 = vmatpush.bf16.msra.mxu0 %v3864
    %4177 = vmatpush.bf16.msra.mxu0 %v3862
    %4178 = vmatpush.bf16.msra.mxu0 %v3860
    %4179 = vmatpush.bf16.msra.mxu0 %v3858
    %4180 = vmatmul.bf16.gmra.mxu0 %v3674
    %v4181 = vpop.f32.mrf.mxu0
    %v4182 = vadd.f32 %v4093, %v4181
    %v4183 = vpop.f32.mrf.mxu0
    %v4184 = vadd.f32 %v4095, %v4183
    %4185 = vmatmul.bf16.gmra.mxu0 %v3676
    %v4186 = vpop.f32.mrf.mxu0
    %v4187 = vadd.f32 %v4098, %v4186
    %v4188 = vpop.f32.mrf.mxu0
    %v4189 = vadd.f32 %v4100, %v4188
    %4190 = vmatmul.bf16.gmra.mxu0 %v3678
    %v4191 = vpop.f32.mrf.mxu0
    %v4192 = vadd.f32 %v4103, %v4191
    %v4193 = vpop.f32.mrf.mxu0
    %v4194 = vadd.f32 %v4105, %v4193
    %4195 = vmatmul.bf16.gmra.mxu0 %v3680
    %v4196 = vpop.f32.mrf.mxu0
    %v4197 = vadd.f32 %v4108, %v4196
    %v4198 = vpop.f32.mrf.mxu0
    %v4199 = vadd.f32 %v4110, %v4198
    %4200 = vmatmul.bf16.gmra.mxu0 %v3682
    %v4201 = vpop.f32.mrf.mxu0
    %v4202 = vadd.f32 %v4113, %v4201
    %v4203 = vpop.f32.mrf.mxu0
    %v4204 = vadd.f32 %v4115, %v4203
    %4205 = vmatmul.bf16.gmra.mxu0 %v3684
    %v4206 = vpop.f32.mrf.mxu0
    %v4207 = vadd.f32 %v4118, %v4206
    %v4208 = vpop.f32.mrf.mxu0
    %v4209 = vadd.f32 %v4120, %v4208
    %4210 = vmatmul.bf16.gmra.mxu0 %v3686
    %v4211 = vpop.f32.mrf.mxu0
    %v4212 = vadd.f32 %v4123, %v4211
    %v4213 = vpop.f32.mrf.mxu0
    %v4214 = vadd.f32 %v4125, %v4213
    %4215 = vmatmul.bf16.gmra.mxu0 %v3688
    %v4216 = vpop.f32.mrf.mxu0
    %v4217 = vadd.f32 %v4128, %v4216
    %v4218 = vpop.f32.mrf.mxu0
    %v4219 = vadd.f32 %v4130, %v4218
    %4220 = vmatmul.bf16.gmra.mxu0 %v3690
    %v4221 = vpop.f32.mrf.mxu0
    %v4222 = vadd.f32 %v4133, %v4221
    %v4223 = vpop.f32.mrf.mxu0
    %v4224 = vadd.f32 %v4135, %v4223
    %4225 = vmatmul.bf16.gmra.mxu0 %v3692
    %v4226 = vpop.f32.mrf.mxu0
    %v4227 = vadd.f32 %v4138, %v4226
    %v4228 = vpop.f32.mrf.mxu0
    %v4229 = vadd.f32 %v4140, %v4228
    %4230 = vmatmul.bf16.gmra.mxu0 %v3694
    %v4231 = vpop.f32.mrf.mxu0
    %v4232 = vadd.f32 %v4143, %v4231
    %v4233 = vpop.f32.mrf.mxu0
    %v4234 = vadd.f32 %v4145, %v4233
    %4235 = vmatmul.bf16.gmra.mxu0 %v3696
    %v4236 = vpop.f32.mrf.mxu0
    %v4237 = vadd.f32 %v4148, %v4236
    %v4238 = vpop.f32.mrf.mxu0
    %v4239 = vadd.f32 %v4150, %v4238
    %4240 = vmatmul.bf16.gmra.mxu0 %v3698
    %v4241 = vpop.f32.mrf.mxu0
    %v4242 = vadd.f32 %v4153, %v4241
    %v4243 = vpop.f32.mrf.mxu0
    %v4244 = vadd.f32 %v4155, %v4243
    %4245 = vmatmul.bf16.gmra.mxu0 %v3700
    %v4246 = vpop.f32.mrf.mxu0
    %v4247 = vadd.f32 %v4158, %v4246
    %v4248 = vpop.f32.mrf.mxu0
    %v4249 = vadd.f32 %v4160, %v4248
    %4250 = vmatmul.bf16.gmra.mxu0 %v3702
    %v4251 = vpop.f32.mrf.mxu0
    %v4252 = vadd.f32 %v4163, %v4251
    %v4253 = vpop.f32.mrf.mxu0
    %v4254 = vadd.f32 %v4165, %v4253
    %4255 = vmatmul.bf16.gmra.mxu0 %v3704
    %v4256 = vpop.f32.mrf.mxu0
    %v4257 = vadd.f32 %v4168, %v4256
    %v4258 = vpop.f32.mrf.mxu0
    %v4259 = vadd.f32 %v4170, %v4258
    %4260 = vdwg.mxu0
    %v4261 = vmax.f32 %v4004, 0.0
    %v4262 = vmax.f32 %v4182, 0.0
    %v4263 = vmax.f32 %v4006, 0.0
    %v4264 = vmax.f32 %v4184, 0.0
    %v4265 = vmax.f32 %v4009, 0.0
    %v4266 = vmax.f32 %v4187, 0.0
    %v4267 = vmax.f32 %v4011, 0.0
    %v4268 = vmax.f32 %v4189, 0.0
    %v4269 = vmax.f32 %v4014, 0.0
    %v4270 = vmax.f32 %v4192, 0.0
    %v4271 = vmax.f32 %v4016, 0.0
    %v4272 = vmax.f32 %v4194, 0.0
    %v4273 = vmax.f32 %v4019, 0.0
    %v4274 = vmax.f32 %v4197, 0.0
    %v4275 = vmax.f32 %v4021, 0.0
    %v4276 = vmax.f32 %v4199, 0.0
    %v4277 = vmax.f32 %v4024, 0.0
    %v4278 = vmax.f32 %v4202, 0.0
    %v4279 = vmax.f32 %v4026, 0.0
    %v4280 = vmax.f32 %v4204, 0.0
    %v4281 = vmax.f32 %v4029, 0.0
    %v4282 = vmax.f32 %v4207, 0.0
    %v4283 = vmax.f32 %v4031, 0.0
    %v4284 = vmax.f32 %v4209, 0.0
    %v4285 = vmax.f32 %v4034, 0.0
    %v4286 = vmax.f32 %v4212, 0.0
    %v4287 = vmax.f32 %v4036, 0.0
    %v4288 = vmax.f32 %v4214, 0.0
    %v4289 = vmax.f32 %v4039, 0.0
    %v4290 = vmax.f32 %v4217, 0.0
    %v4291 = vmax.f32 %v4041, 0.0
    %v4292 = vmax.f32 %v4219, 0.0
    %v4293 = vmax.f32 %v4044, 0.0
    %v4294 = vmax.f32 %v4222, 0.0
    %v4295 = vmax.f32 %v4046, 0.0
    %v4296 = vmax.f32 %v4224, 0.0
    %v4297 = vmax.f32 %v4049, 0.0
    %v4298 = vmax.f32 %v4227, 0.0
    %v4299 = vmax.f32 %v4051, 0.0
    %v4300 = vmax.f32 %v4229, 0.0
    %v4301 = vmax.f32 %v4054, 0.0
    %v4302 = vmax.f32 %v4232, 0.0
    %v4303 = vmax.f32 %v4056, 0.0
    %v4304 = vmax.f32 %v4234, 0.0
    %v4305 = vmax.f32 %v4059, 0.0
    %v4306 = vmax.f32 %v4237, 0.0
    %v4307 = vmax.f32 %v4061, 0.0
    %v4308 = vmax.f32 %v4239, 0.0
    %v4309 = vmax.f32 %v4064, 0.0
    %v4310 = vmax.f32 %v4242, 0.0
    %v4311 = vmax.f32 %v4066, 0.0
    %v4312 = vmax.f32 %v4244, 0.0
    %v4313 = vmax.f32 %v4069, 0.0
    %v4314 = vmax.f32 %v4247, 0.0
    %v4315 = vmax.f32 %v4071, 0.0
    %v4316 = vmax.f32 %v4249, 0.0
    %v4317 = vmax.f32 %v4074, 0.0
    %v4318 = vmax.f32 %v4252, 0.0
    %v4319 = vmax.f32 %v4076, 0.0
    %v4320 = vmax.f32 %v4254, 0.0
    %v4321 = vmax.f32 %v4079, 0.0
    %v4322 = vmax.f32 %v4257, 0.0
    %v4323 = vmax.f32 %v4081, 0.0
    %v4324 = vmax.f32 %v4259, 0.0
    %v4325 = vpack.c.bf16 %v4262, %v4261
    %v4326 = vpack.c.bf16 %v4264, %v4263
    %v4327 = vpack.c.bf16 %v4266, %v4265
    %v4328 = vpack.c.bf16 %v4268, %v4267
    %v4329 = vpack.c.bf16 %v4270, %v4269
    %v4330 = vpack.c.bf16 %v4272, %v4271
    %v4331 = vpack.c.bf16 %v4274, %v4273
    %v4332 = vpack.c.bf16 %v4276, %v4275
    %v4333 = vpack.c.bf16 %v4278, %v4277
    %v4334 = vpack.c.bf16 %v4280, %v4279
    %v4335 = vpack.c.bf16 %v4282, %v4281
    %v4336 = vpack.c.bf16 %v4284, %v4283
    %v4337 = vpack.c.bf16 %v4286, %v4285
    %v4338 = vpack.c.bf16 %v4288, %v4287
    %v4339 = vpack.c.bf16 %v4290, %v4289
    %v4340 = vpack.c.bf16 %v4292, %v4291
    %v4341 = vpack.c.bf16 %v4294, %v4293
    %v4342 = vpack.c.bf16 %v4296, %v4295
    %v4343 = vpack.c.bf16 %v4298, %v4297
    %v4344 = vpack.c.bf16 %v4300, %v4299
    %v4345 = vpack.c.bf16 %v4302, %v4301
    %v4346 = vpack.c.bf16 %v4304, %v4303
    %v4347 = vpack.c.bf16 %v4306, %v4305
    %v4348 = vpack.c.bf16 %v4308, %v4307
    %v4349 = vpack.c.bf16 %v4310, %v4309
    %v4350 = vpack.c.bf16 %v4312, %v4311
    %v4351 = vpack.c.bf16 %v4314, %v4313
    %v4352 = vpack.c.bf16 %v4316, %v4315
    %v4353 = vpack.c.bf16 %v4318, %v4317
    %v4354 = vpack.c.bf16 %v4320, %v4319
    %v4355 = vpack.c.bf16 %v4322, %v4321
    %v4356 = vpack.c.bf16 %v4324, %v4323
    %v4357 = vunpack.c.l.bf16 %v3577
    %v4358 = vunpack.c.h.bf16 %v3577
    %v4359 = vunpack.c.l.bf16 %v3578
    %v4360 = vunpack.c.h.bf16 %v3578
    %v4361 = vunpack.c.l.bf16 %v3579
    %v4362 = vunpack.c.h.bf16 %v3579
    %v4363 = vunpack.c.l.bf16 %v3580
    %v4364 = vunpack.c.h.bf16 %v3580
    %v4365 = vunpack.c.l.bf16 %v3581
    %v4366 = vunpack.c.h.bf16 %v3581
    %v4367 = vunpack.c.l.bf16 %v3582
    %v4368 = vunpack.c.h.bf16 %v3582
    %v4369 = vunpack.c.l.bf16 %v3583
    %v4370 = vunpack.c.h.bf16 %v3583
    %v4371 = vunpack.c.l.bf16 %v3584
    %v4372 = vunpack.c.h.bf16 %v3584
    %v4373 = vunpack.c.l.bf16 %v3585
    %v4374 = vunpack.c.h.bf16 %v3585
    %v4375 = vunpack.c.l.bf16 %v3586
    %v4376 = vunpack.c.h.bf16 %v3586
    %v4377 = vunpack.c.l.bf16 %v3587
    %v4378 = vunpack.c.h.bf16 %v3587
    %v4379 = vunpack.c.l.bf16 %v3588
    %v4380 = vunpack.c.h.bf16 %v3588
    %v4381 = vunpack.c.l.bf16 %v3589
    %v4382 = vunpack.c.h.bf16 %v3589
    %v4383 = vunpack.c.l.bf16 %v3590
    %v4384 = vunpack.c.h.bf16 %v3590
    %v4385 = vunpack.c.l.bf16 %v3591
    %v4386 = vunpack.c.h.bf16 %v3591
    %v4387 = vunpack.c.l.bf16 %v3592
    %v4388 = vunpack.c.h.bf16 %v3592
    %v4389 = vunpack.c.l.bf16 %v3593
    %v4390 = vunpack.c.h.bf16 %v3593
    %v4391 = vunpack.c.l.bf16 %v3594
    %v4392 = vunpack.c.h.bf16 %v3594
    %v4393 = vunpack.c.l.bf16 %v3595
    %v4394 = vunpack.c.h.bf16 %v3595
    %v4395 = vunpack.c.l.bf16 %v3596
    %v4396 = vunpack.c.h.bf16 %v3596
    %v4397 = vunpack.c.l.bf16 %v3597
    %v4398 = vunpack.c.h.bf16 %v3597
    %v4399 = vunpack.c.l.bf16 %v3598
    %v4400 = vunpack.c.h.bf16 %v3598
    %v4401 = vunpack.c.l.bf16 %v3599
    %v4402 = vunpack.c.h.bf16 %v3599
    %v4403 = vunpack.c.l.bf16 %v3600
    %v4404 = vunpack.c.h.bf16 %v3600
    %v4405 = vunpack.c.l.bf16 %v3601
    %v4406 = vunpack.c.h.bf16 %v3601
    %v4407 = vunpack.c.l.bf16 %v3602
    %v4408 = vunpack.c.h.bf16 %v3602
    %v4409 = vunpack.c.l.bf16 %v3603
    %v4410 = vunpack.c.h.bf16 %v3603
    %v4411 = vunpack.c.l.bf16 %v3604
    %v4412 = vunpack.c.h.bf16 %v3604
    %v4413 = vunpack.c.l.bf16 %v3605
    %v4414 = vunpack.c.h.bf16 %v3605
    %v4415 = vunpack.c.l.bf16 %v3606
    %v4416 = vunpack.c.h.bf16 %v3606
    %v4417 = vunpack.c.l.bf16 %v3607
    %v4418 = vunpack.c.h.bf16 %v3607
    %v4419 = vunpack.c.l.bf16 %v3608
    %v4420 = vunpack.c.h.bf16 %v3608
    %v4421 = vunpack.c.l.bf16 %v4325
    %v4422 = vunpack.c.h.bf16 %v4325
    %v4423 = vunpack.c.l.bf16 %v4326
    %v4424 = vunpack.c.h.bf16 %v4326
    %v4425 = vunpack.c.l.bf16 %v4327
    %v4426 = vunpack.c.h.bf16 %v4327
    %v4427 = vunpack.c.l.bf16 %v4328
    %v4428 = vunpack.c.h.bf16 %v4328
    %v4429 = vunpack.c.l.bf16 %v4329
    %v4430 = vunpack.c.h.bf16 %v4329
    %v4431 = vunpack.c.l.bf16 %v4330
    %v4432 = vunpack.c.h.bf16 %v4330
    %v4433 = vunpack.c.l.bf16 %v4331
    %v4434 = vunpack.c.h.bf16 %v4331
    %v4435 = vunpack.c.l.bf16 %v4332
    %v4436 = vunpack.c.h.bf16 %v4332
    %v4437 = vunpack.c.l.bf16 %v4333
    %v4438 = vunpack.c.h.bf16 %v4333
    %v4439 = vunpack.c.l.bf16 %v4334
    %v4440 = vunpack.c.h.bf16 %v4334
    %v4441 = vunpack.c.l.bf16 %v4335
    %v4442 = vunpack.c.h.bf16 %v4335
    %v4443 = vunpack.c.l.bf16 %v4336
    %v4444 = vunpack.c.h.bf16 %v4336
    %v4445 = vunpack.c.l.bf16 %v4337
    %v4446 = vunpack.c.h.bf16 %v4337
    %v4447 = vunpack.c.l.bf16 %v4338
    %v4448 = vunpack.c.h.bf16 %v4338
    %v4449 = vunpack.c.l.bf16 %v4339
    %v4450 = vunpack.c.h.bf16 %v4339
    %v4451 = vunpack.c.l.bf16 %v4340
    %v4452 = vunpack.c.h.bf16 %v4340
    %v4453 = vunpack.c.l.bf16 %v4341
    %v4454 = vunpack.c.h.bf16 %v4341
    %v4455 = vunpack.c.l.bf16 %v4342
    %v4456 = vunpack.c.h.bf16 %v4342
    %v4457 = vunpack.c.l.bf16 %v4343
    %v4458 = vunpack.c.h.bf16 %v4343
    %v4459 = vunpack.c.l.bf16 %v4344
    %v4460 = vunpack.c.h.bf16 %v4344
    %v4461 = vunpack.c.l.bf16 %v4345
    %v4462 = vunpack.c.h.bf16 %v4345
    %v4463 = vunpack.c.l.bf16 %v4346
    %v4464 = vunpack.c.h.bf16 %v4346
    %v4465 = vunpack.c.l.bf16 %v4347
    %v4466 = vunpack.c.h.bf16 %v4347
    %v4467 = vunpack.c.l.bf16 %v4348
    %v4468 = vunpack.c.h.bf16 %v4348
    %v4469 = vunpack.c.l.bf16 %v4349
    %v4470 = vunpack.c.h.bf16 %v4349
    %v4471 = vunpack.c.l.bf16 %v4350
    %v4472 = vunpack.c.h.bf16 %v4350
    %v4473 = vunpack.c.l.bf16 %v4351
    %v4474 = vunpack.c.h.bf16 %v4351
    %v4475 = vunpack.c.l.bf16 %v4352
    %v4476 = vunpack.c.h.bf16 %v4352
    %v4477 = vunpack.c.l.bf16 %v4353
    %v4478 = vunpack.c.h.bf16 %v4353
    %v4479 = vunpack.c.l.bf16 %v4354
    %v4480 = vunpack.c.h.bf16 %v4354
    %v4481 = vunpack.c.l.bf16 %v4355
    %v4482 = vunpack.c.h.bf16 %v4355
    %v4483 = vunpack.c.l.bf16 %v4356
    %v4484 = vunpack.c.h.bf16 %v4356
    %v4485 = vadd.f32 %v4357, %v4421
    %v4486 = vadd.f32 %v4358, %v4422
    %v4487 = vadd.f32 %v4359, %v4423
    %v4488 = vadd.f32 %v4360, %v4424
    %v4489 = vadd.f32 %v4361, %v4425
    %v4490 = vadd.f32 %v4362, %v4426
    %v4491 = vadd.f32 %v4363, %v4427
    %v4492 = vadd.f32 %v4364, %v4428
    %v4493 = vadd.f32 %v4365, %v4429
    %v4494 = vadd.f32 %v4366, %v4430
    %v4495 = vadd.f32 %v4367, %v4431
    %v4496 = vadd.f32 %v4368, %v4432
    %v4497 = vadd.f32 %v4369, %v4433
    %v4498 = vadd.f32 %v4370, %v4434
    %v4499 = vadd.f32 %v4371, %v4435
    %v4500 = vadd.f32 %v4372, %v4436
    %v4501 = vadd.f32 %v4373, %v4437
    %v4502 = vadd.f32 %v4374, %v4438
    %v4503 = vadd.f32 %v4375, %v4439
    %v4504 = vadd.f32 %v4376, %v4440
    %v4505 = vadd.f32 %v4377, %v4441
    %v4506 = vadd.f32 %v4378, %v4442
    %v4507 = vadd.f32 %v4379, %v4443
    %v4508 = vadd.f32 %v4380, %v4444
    %v4509 = vadd.f32 %v4381, %v4445
    %v4510 = vadd.f32 %v4382, %v4446
    %v4511 = vadd.f32 %v4383, %v4447
    %v4512 = vadd.f32 %v4384, %v4448
    %v4513 = vadd.f32 %v4385, %v4449
    %v4514 = vadd.f32 %v4386, %v4450
    %v4515 = vadd.f32 %v4387, %v4451
    %v4516 = vadd.f32 %v4388, %v4452
    %v4517 = vadd.f32 %v4389, %v4453
    %v4518 = vadd.f32 %v4390, %v4454
    %v4519 = vadd.f32 %v4391, %v4455
    %v4520 = vadd.f32 %v4392, %v4456
    %v4521 = vadd.f32 %v4393, %v4457
    %v4522 = vadd.f32 %v4394, %v4458
    %v4523 = vadd.f32 %v4395, %v4459
    %v4524 = vadd.f32 %v4396, %v4460
    %v4525 = vadd.f32 %v4397, %v4461
    %v4526 = vadd.f32 %v4398, %v4462
    %v4527 = vadd.f32 %v4399, %v4463
    %v4528 = vadd.f32 %v4400, %v4464
    %v4529 = vadd.f32 %v4401, %v4465
    %v4530 = vadd.f32 %v4402, %v4466
    %v4531 = vadd.f32 %v4403, %v4467
    %v4532 = vadd.f32 %v4404, %v4468
    %v4533 = vadd.f32 %v4405, %v4469
    %v4534 = vadd.f32 %v4406, %v4470
    %v4535 = vadd.f32 %v4407, %v4471
    %v4536 = vadd.f32 %v4408, %v4472
    %v4537 = vadd.f32 %v4409, %v4473
    %v4538 = vadd.f32 %v4410, %v4474
    %v4539 = vadd.f32 %v4411, %v4475
    %v4540 = vadd.f32 %v4412, %v4476
    %v4541 = vadd.f32 %v4413, %v4477
    %v4542 = vadd.f32 %v4414, %v4478
    %v4543 = vadd.f32 %v4415, %v4479
    %v4544 = vadd.f32 %v4416, %v4480
    %v4545 = vadd.f32 %v4417, %v4481
    %v4546 = vadd.f32 %v4418, %v4482
    %v4547 = vadd.f32 %v4419, %v4483
    %v4548 = vadd.f32 %v4420, %v4484
    %v4549 = vpack.c.bf16 %v4487, %v4485
    %v4550 = vpack.c.bf16 %v4488, %v4486
    %v4551 = vpack.c.bf16 %v4491, %v4489
    %v4552 = vpack.c.bf16 %v4492, %v4490
    %v4553 = vpack.c.bf16 %v4495, %v4493
    %v4554 = vpack.c.bf16 %v4496, %v4494
    %v4555 = vpack.c.bf16 %v4499, %v4497
    %v4556 = vpack.c.bf16 %v4500, %v4498
    %v4557 = vpack.c.bf16 %v4503, %v4501
    %v4558 = vpack.c.bf16 %v4504, %v4502
    %v4559 = vpack.c.bf16 %v4507, %v4505
    %v4560 = vpack.c.bf16 %v4508, %v4506
    %v4561 = vpack.c.bf16 %v4511, %v4509
    %v4562 = vpack.c.bf16 %v4512, %v4510
    %v4563 = vpack.c.bf16 %v4515, %v4513
    %v4564 = vpack.c.bf16 %v4516, %v4514
    %v4565 = vpack.c.bf16 %v4519, %v4517
    %v4566 = vpack.c.bf16 %v4520, %v4518
    %v4567 = vpack.c.bf16 %v4523, %v4521
    %v4568 = vpack.c.bf16 %v4524, %v4522
    %v4569 = vpack.c.bf16 %v4527, %v4525
    %v4570 = vpack.c.bf16 %v4528, %v4526
    %v4571 = vpack.c.bf16 %v4531, %v4529
    %v4572 = vpack.c.bf16 %v4532, %v4530
    %v4573 = vpack.c.bf16 %v4535, %v4533
    %v4574 = vpack.c.bf16 %v4536, %v4534
    %v4575 = vpack.c.bf16 %v4539, %v4537
    %v4576 = vpack.c.bf16 %v4540, %v4538
    %v4577 = vpack.c.bf16 %v4543, %v4541
    %v4578 = vpack.c.bf16 %v4544, %v4542
    %v4579 = vpack.c.bf16 %v4547, %v4545
    %v4580 = vpack.c.bf16 %v4548, %v4546
    %v4581 = vld [vmem:[%s5] sm:$0xff]
    %v4582 = vld [vmem:[%s5 + $0x8] sm:$0xff]
    %v4583 = vld [vmem:[%s5 + $0x10] sm:$0xff]
    %v4584 = vld [vmem:[%s5 + $0x18] sm:$0xff]
    %v4585 = vld [vmem:[%s5 + $0x20] sm:$0xff]
    %v4586 = vld [vmem:[%s5 + $0x28] sm:$0xff]
    %v4587 = vld [vmem:[%s5 + $0x30] sm:$0xff]
    %v4588 = vld [vmem:[%s5 + $0x38] sm:$0xff]
    %v4589 = vld [vmem:[%s5 + $0x40] sm:$0xff]
    %v4590 = vld [vmem:[%s5 + $0x48] sm:$0xff]
    %v4591 = vld [vmem:[%s5 + $0x50] sm:$0xff]
    %v4592 = vld [vmem:[%s5 + $0x58] sm:$0xff]
    %v4593 = vld [vmem:[%s5 + $0x60] sm:$0xff]
    %v4594 = vld [vmem:[%s5 + $0x68] sm:$0xff]
    %v4595 = vld [vmem:[%s5 + $0x70] sm:$0xff]
    %v4596 = vld [vmem:[%s5 + $0x78] sm:$0xff]
    %v4597 = vld [vmem:[%s5 + $0x80] sm:$0xff]
    %v4598 = vld [vmem:[%s5 + $0x88] sm:$0xff]
    %v4599 = vld [vmem:[%s5 + $0x90] sm:$0xff]
    %v4600 = vld [vmem:[%s5 + $0x98] sm:$0xff]
    %v4601 = vld [vmem:[%s5 + $0xa0] sm:$0xff]
    %v4602 = vld [vmem:[%s5 + $0xa8] sm:$0xff]
    %v4603 = vld [vmem:[%s5 + $0xb0] sm:$0xff]
    %v4604 = vld [vmem:[%s5 + $0xb8] sm:$0xff]
    %v4605 = vld [vmem:[%s5 + $0xc0] sm:$0xff]
    %v4606 = vld [vmem:[%s5 + $0xc8] sm:$0xff]
    %v4607 = vld [vmem:[%s5 + $0xd0] sm:$0xff]
    %v4608 = vld [vmem:[%s5 + $0xd8] sm:$0xff]
    %v4609 = vld [vmem:[%s5 + $0xe0] sm:$0xff]
    %v4610 = vld [vmem:[%s5 + $0xe8] sm:$0xff]
    %v4611 = vld [vmem:[%s5 + $0xf0] sm:$0xff]
    %v4612 = vld [vmem:[%s5 + $0xf8] sm:$0xff]
    %v4613 = vld [vmem:[%s5 + $0x100] sm:$0xff]
    %v4614 = vld [vmem:[%s5 + $0x108] sm:$0xff]
    %v4615 = vld [vmem:[%s5 + $0x110] sm:$0xff]
    %v4616 = vld [vmem:[%s5 + $0x118] sm:$0xff]
    %v4617 = vld [vmem:[%s5 + $0x120] sm:$0xff]
    %v4618 = vld [vmem:[%s5 + $0x128] sm:$0xff]
    %v4619 = vld [vmem:[%s5 + $0x130] sm:$0xff]
    %v4620 = vld [vmem:[%s5 + $0x138] sm:$0xff]
    %v4621 = vld [vmem:[%s5 + $0x140] sm:$0xff]
    %v4622 = vld [vmem:[%s5 + $0x148] sm:$0xff]
    %v4623 = vld [vmem:[%s5 + $0x150] sm:$0xff]
    %v4624 = vld [vmem:[%s5 + $0x158] sm:$0xff]
    %v4625 = vld [vmem:[%s5 + $0x160] sm:$0xff]
    %v4626 = vld [vmem:[%s5 + $0x168] sm:$0xff]
    %v4627 = vld [vmem:[%s5 + $0x170] sm:$0xff]
    %v4628 = vld [vmem:[%s5 + $0x178] sm:$0xff]
    %v4629 = vld [vmem:[%s5 + $0x180] sm:$0xff]
    %v4630 = vld [vmem:[%s5 + $0x188] sm:$0xff]
    %v4631 = vld [vmem:[%s5 + $0x190] sm:$0xff]
    %v4632 = vld [vmem:[%s5 + $0x198] sm:$0xff]
    %v4633 = vld [vmem:[%s5 + $0x1a0] sm:$0xff]
    %v4634 = vld [vmem:[%s5 + $0x1a8] sm:$0xff]
    %v4635 = vld [vmem:[%s5 + $0x1b0] sm:$0xff]
    %v4636 = vld [vmem:[%s5 + $0x1b8] sm:$0xff]
    %v4637 = vld [vmem:[%s5 + $0x1c0] sm:$0xff]
    %v4638 = vld [vmem:[%s5 + $0x1c8] sm:$0xff]
    %v4639 = vld [vmem:[%s5 + $0x1d0] sm:$0xff]
    %v4640 = vld [vmem:[%s5 + $0x1d8] sm:$0xff]
    %v4641 = vld [vmem:[%s5 + $0x1e0] sm:$0xff]
    %v4642 = vld [vmem:[%s5 + $0x1e8] sm:$0xff]
    %v4643 = vld [vmem:[%s5 + $0x1f0] sm:$0xff]
    %v4644 = vld [vmem:[%s5 + $0x1f8] sm:$0xff]
    %v4645 = vld [vmem:[%s6] sm:$0xf]
    %v4647 = vperm.slane %v4645, 0
    %v4648 = vperm.slane %v4645, 1
    %v4649 = vperm.slane %v4645, 2
    %v4650 = vperm.slane %v4645, 3
    %v4719 = vunpack.c.l.b16 %v4581
    %v4720 = vunpack.c.h.b16 %v4581
    %v4721 = vunpack.c.l.b16 %v4582
    %v4722 = vunpack.c.h.b16 %v4582
    %v4723 = vunpack.c.l.b16 %v4583
    %v4724 = vunpack.c.h.b16 %v4583
    %v4725 = vunpack.c.l.b16 %v4584
    %v4726 = vunpack.c.h.b16 %v4584
    %v4727 = vunpack.c.l.b16 %v4585
    %v4728 = vunpack.c.h.b16 %v4585
    %v4729 = vunpack.c.l.b16 %v4586
    %v4730 = vunpack.c.h.b16 %v4586
    %v4731 = vunpack.c.l.b16 %v4587
    %v4732 = vunpack.c.h.b16 %v4587
    %v4733 = vunpack.c.l.b16 %v4588
    %v4734 = vunpack.c.h.b16 %v4588
    %v4735 = vunpack.c.l.b16 %v4589
    %v4736 = vunpack.c.h.b16 %v4589
    %v4737 = vunpack.c.l.b16 %v4590
    %v4738 = vunpack.c.h.b16 %v4590
    %v4739 = vunpack.c.l.b16 %v4591
    %v4740 = vunpack.c.h.b16 %v4591
    %v4741 = vunpack.c.l.b16 %v4592
    %v4742 = vunpack.c.h.b16 %v4592
    %v4743 = vunpack.c.l.b16 %v4593
    %v4744 = vunpack.c.h.b16 %v4593
    %v4745 = vunpack.c.l.b16 %v4594
    %v4746 = vunpack.c.h.b16 %v4594
    %v4747 = vunpack.c.l.b16 %v4595
    %v4748 = vunpack.c.h.b16 %v4595
    %v4749 = vunpack.c.l.b16 %v4596
    %v4750 = vunpack.c.h.b16 %v4596
    %v4751 = vunpack.c.l.b16 %v4597
    %v4752 = vunpack.c.h.b16 %v4597
    %v4753 = vunpack.c.l.b16 %v4598
    %v4754 = vunpack.c.h.b16 %v4598
    %v4755 = vunpack.c.l.b16 %v4599
    %v4756 = vunpack.c.h.b16 %v4599
    %v4757 = vunpack.c.l.b16 %v4600
    %v4758 = vunpack.c.h.b16 %v4600
    %v4759 = vunpack.c.l.b16 %v4601
    %v4760 = vunpack.c.h.b16 %v4601
    %v4761 = vunpack.c.l.b16 %v4602
    %v4762 = vunpack.c.h.b16 %v4602
    %v4763 = vunpack.c.l.b16 %v4603
    %v4764 = vunpack.c.h.b16 %v4603
    %v4765 = vunpack.c.l.b16 %v4604
    %v4766 = vunpack.c.h.b16 %v4604
    %v4767 = vunpack.c.l.b16 %v4605
    %v4768 = vunpack.c.h.b16 %v4605
    %v4769 = vunpack.c.l.b16 %v4606
    %v4770 = vunpack.c.h.b16 %v4606
    %v4771 = vunpack.c.l.b16 %v4607
    %v4772 = vunpack.c.h.b16 %v4607
    %v4773 = vunpack.c.l.b16 %v4608
    %v4774 = vunpack.c.h.b16 %v4608
    %v4775 = vunpack.c.l.b16 %v4609
    %v4776 = vunpack.c.h.b16 %v4609
    %v4777 = vunpack.c.l.b16 %v4610
    %v4778 = vunpack.c.h.b16 %v4610
    %v4779 = vunpack.c.l.b16 %v4611
    %v4780 = vunpack.c.h.b16 %v4611
    %v4781 = vunpack.c.l.b16 %v4612
    %v4782 = vunpack.c.h.b16 %v4612
    %v4783 = vunpack.c.l.b16 %v4613
    %v4784 = vunpack.c.h.b16 %v4613
    %v4785 = vunpack.c.l.b16 %v4614
    %v4786 = vunpack.c.h.b16 %v4614
    %v4787 = vunpack.c.l.b16 %v4615
    %v4788 = vunpack.c.h.b16 %v4615
    %v4789 = vunpack.c.l.b16 %v4616
    %v4790 = vunpack.c.h.b16 %v4616
    %v4791 = vunpack.c.l.b16 %v4617
    %v4792 = vunpack.c.h.b16 %v4617
    %v4793 = vunpack.c.l.b16 %v4618
    %v4794 = vunpack.c.h.b16 %v4618
    %v4795 = vunpack.c.l.b16 %v4619
    %v4796 = vunpack.c.h.b16 %v4619
    %v4797 = vunpack.c.l.b16 %v4620
    %v4798 = vunpack.c.h.b16 %v4620
    %v4799 = vunpack.c.l.b16 %v4621
    %v4800 = vunpack.c.h.b16 %v4621
    %v4801 = vunpack.c.l.b16 %v4622
    %v4802 = vunpack.c.h.b16 %v4622
    %v4803 = vunpack.c.l.b16 %v4623
    %v4804 = vunpack.c.h.b16 %v4623
    %v4805 = vunpack.c.l.b16 %v4624
    %v4806 = vunpack.c.h.b16 %v4624
    %v4807 = vunpack.c.l.b16 %v4625
    %v4808 = vunpack.c.h.b16 %v4625
    %v4809 = vunpack.c.l.b16 %v4626
    %v4810 = vunpack.c.h.b16 %v4626
    %v4811 = vunpack.c.l.b16 %v4627
    %v4812 = vunpack.c.h.b16 %v4627
    %v4813 = vunpack.c.l.b16 %v4628
    %v4814 = vunpack.c.h.b16 %v4628
    %v4815 = vunpack.c.l.b16 %v4629
    %v4816 = vunpack.c.h.b16 %v4629
    %v4817 = vunpack.c.l.b16 %v4630
    %v4818 = vunpack.c.h.b16 %v4630
    %v4819 = vunpack.c.l.b16 %v4631
    %v4820 = vunpack.c.h.b16 %v4631
    %v4821 = vunpack.c.l.b16 %v4632
    %v4822 = vunpack.c.h.b16 %v4632
    %v4823 = vunpack.c.l.b16 %v4633
    %v4824 = vunpack.c.h.b16 %v4633
    %v4825 = vunpack.c.l.b16 %v4634
    %v4826 = vunpack.c.h.b16 %v4634
    %v4827 = vunpack.c.l.b16 %v4635
    %v4828 = vunpack.c.h.b16 %v4635
    %v4829 = vunpack.c.l.b16 %v4636
    %v4830 = vunpack.c.h.b16 %v4636
    %v4831 = vunpack.c.l.b16 %v4637
    %v4832 = vunpack.c.h.b16 %v4637
    %v4833 = vunpack.c.l.b16 %v4638
    %v4834 = vunpack.c.h.b16 %v4638
    %v4835 = vunpack.c.l.b16 %v4639
    %v4836 = vunpack.c.h.b16 %v4639
    %v4837 = vunpack.c.l.b16 %v4640
    %v4838 = vunpack.c.h.b16 %v4640
    %v4839 = vunpack.c.l.b16 %v4641
    %v4840 = vunpack.c.h.b16 %v4641
    %v4841 = vunpack.c.l.b16 %v4642
    %v4842 = vunpack.c.h.b16 %v4642
    %v4843 = vunpack.c.l.b16 %v4643
    %v4844 = vunpack.c.h.b16 %v4643
    %v4845 = vunpack.c.l.b16 %v4644
    %v4846 = vunpack.c.h.b16 %v4644
    %v4847 = vpack.c.b16 %v4723, %v4719
    %v4848 = vpack.c.b16 %v4724, %v4720
    %v4849 = vpack.c.b16 %v4725, %v4721
    %v4850 = vpack.c.b16 %v4726, %v4722
    %v4851 = vpack.c.b16 %v4731, %v4727
    %v4852 = vpack.c.b16 %v4732, %v4728
    %v4853 = vpack.c.b16 %v4733, %v4729
    %v4854 = vpack.c.b16 %v4734, %v4730
    %v4855 = vpack.c.b16 %v4739, %v4735
    %v4856 = vpack.c.b16 %v4740, %v4736
    %v4857 = vpack.c.b16 %v4741, %v4737
    %v4858 = vpack.c.b16 %v4742, %v4738
    %v4859 = vpack.c.b16 %v4747, %v4743
    %v4860 = vpack.c.b16 %v4748, %v4744
    %v4861 = vpack.c.b16 %v4749, %v4745
    %v4862 = vpack.c.b16 %v4750, %v4746
    %v4863 = vpack.c.b16 %v4755, %v4751
    %v4864 = vpack.c.b16 %v4756, %v4752
    %v4865 = vpack.c.b16 %v4757, %v4753
    %v4866 = vpack.c.b16 %v4758, %v4754
    %v4867 = vpack.c.b16 %v4763, %v4759
    %v4868 = vpack.c.b16 %v4764, %v4760
    %v4869 = vpack.c.b16 %v4765, %v4761
    %v4870 = vpack.c.b16 %v4766, %v4762
    %v4871 = vpack.c.b16 %v4771, %v4767
    %v4872 = vpack.c.b16 %v4772, %v4768
    %v4873 = vpack.c.b16 %v4773, %v4769
    %v4874 = vpack.c.b16 %v4774, %v4770
    %v4875 = vpack.c.b16 %v4779, %v4775
    %v4876 = vpack.c.b16 %v4780, %v4776
    %v4877 = vpack.c.b16 %v4781, %v4777
    %v4878 = vpack.c.b16 %v4782, %v4778
    %v4879 = vpack.c.b16 %v4787, %v4783
    %v4880 = vpack.c.b16 %v4788, %v4784
    %v4881 = vpack.c.b16 %v4789, %v4785
    %v4882 = vpack.c.b16 %v4790, %v4786
    %v4883 = vpack.c.b16 %v4795, %v4791
    %v4884 = vpack.c.b16 %v4796, %v4792
    %v4885 = vpack.c.b16 %v4797, %v4793
    %v4886 = vpack.c.b16 %v4798, %v4794
    %v4887 = vpack.c.b16 %v4803, %v4799
    %v4888 = vpack.c.b16 %v4804, %v4800
    %v4889 = vpack.c.b16 %v4805, %v4801
    %v4890 = vpack.c.b16 %v4806, %v4802
    %v4891 = vpack.c.b16 %v4811, %v4807
    %v4892 = vpack.c.b16 %v4812, %v4808
    %v4893 = vpack.c.b16 %v4813, %v4809
    %v4894 = vpack.c.b16 %v4814, %v4810
    %v4895 = vpack.c.b16 %v4819, %v4815
    %v4896 = vpack.c.b16 %v4820, %v4816
    %v4897 = vpack.c.b16 %v4821, %v4817
    %v4898 = vpack.c.b16 %v4822, %v4818
    %v4899 = vpack.c.b16 %v4827, %v4823
    %v4900 = vpack.c.b16 %v4828, %v4824
    %v4901 = vpack.c.b16 %v4829, %v4825
    %v4902 = vpack.c.b16 %v4830, %v4826
    %v4903 = vpack.c.b16 %v4835, %v4831
    %v4904 = vpack.c.b16 %v4836, %v4832
    %v4905 = vpack.c.b16 %v4837, %v4833
    %v4906 = vpack.c.b16 %v4838, %v4834
    %v4907 = vpack.c.b16 %v4843, %v4839
    %v4908 = vpack.c.b16 %v4844, %v4840
    %v4909 = vpack.c.b16 %v4845, %v4841
    %v4910 = vpack.c.b16 %v4846, %v4842
    %4975 = vmatpush.bf16.msra.mxu0 %v4875
    %4976 = vmatpush.bf16.msra.mxu0 %v4871
    %4977 = vmatpush.bf16.msra.mxu0 %v4867
    %4978 = vmatpush.bf16.msra.mxu0 %v4863
    %4979 = vmatpush.bf16.msra.mxu0 %v4859
    %4980 = vmatpush.bf16.msra.mxu0 %v4855
    %4981 = vmatpush.bf16.msra.mxu0 %v4851
    %4982 = vmatpush.bf16.msra.mxu0 %v4847
    %4983 = vmatmul.bf16.gmra.mxu0 %v4549
    %v4984 = vpop.f32.mrf.mxu0
    %v4985 = vadd.f32 %v4647, %v4984
    %v4986 = vpop.f32.mrf.mxu0
    %v4987 = vadd.f32 %v4647, %v4986
    %4988 = vmatmul.bf16.gmra.mxu0 %v4551
    %v4989 = vpop.f32.mrf.mxu0
    %v4990 = vadd.f32 %v4647, %v4989
    %v4991 = vpop.f32.mrf.mxu0
    %v4992 = vadd.f32 %v4647, %v4991
    %4993 = vmatmul.bf16.gmra.mxu0 %v4553
    %v4994 = vpop.f32.mrf.mxu0
    %v4995 = vadd.f32 %v4647, %v4994
    %v4996 = vpop.f32.mrf.mxu0
    %v4997 = vadd.f32 %v4647, %v4996
    %4998 = vmatmul.bf16.gmra.mxu0 %v4555
    %v4999 = vpop.f32.mrf.mxu0
    %v5000 = vadd.f32 %v4647, %v4999
    %v5001 = vpop.f32.mrf.mxu0
    %v5002 = vadd.f32 %v4647, %v5001
    %5003 = vmatmul.bf16.gmra.mxu0 %v4557
    %v5004 = vpop.f32.mrf.mxu0
    %v5005 = vadd.f32 %v4647, %v5004
    %v5006 = vpop.f32.mrf.mxu0
    %v5007 = vadd.f32 %v4647, %v5006
    %5008 = vmatmul.bf16.gmra.mxu0 %v4559
    %v5009 = vpop.f32.mrf.mxu0
    %v5010 = vadd.f32 %v4647, %v5009
    %v5011 = vpop.f32.mrf.mxu0
    %v5012 = vadd.f32 %v4647, %v5011
    %5013 = vmatmul.bf16.gmra.mxu0 %v4561
    %v5014 = vpop.f32.mrf.mxu0
    %v5015 = vadd.f32 %v4647, %v5014
    %v5016 = vpop.f32.mrf.mxu0
    %v5017 = vadd.f32 %v4647, %v5016
    %5018 = vmatmul.bf16.gmra.mxu0 %v4563
    %v5019 = vpop.f32.mrf.mxu0
    %v5020 = vadd.f32 %v4647, %v5019
    %v5021 = vpop.f32.mrf.mxu0
    %v5022 = vadd.f32 %v4647, %v5021
    %5023 = vmatmul.bf16.gmra.mxu0 %v4565
    %v5024 = vpop.f32.mrf.mxu0
    %v5025 = vadd.f32 %v4647, %v5024
    %v5026 = vpop.f32.mrf.mxu0
    %v5027 = vadd.f32 %v4647, %v5026
    %5028 = vmatmul.bf16.gmra.mxu0 %v4567
    %v5029 = vpop.f32.mrf.mxu0
    %v5030 = vadd.f32 %v4647, %v5029
    %v5031 = vpop.f32.mrf.mxu0
    %v5032 = vadd.f32 %v4647, %v5031
    %5033 = vmatmul.bf16.gmra.mxu0 %v4569
    %v5034 = vpop.f32.mrf.mxu0
    %v5035 = vadd.f32 %v4647, %v5034
    %v5036 = vpop.f32.mrf.mxu0
    %v5037 = vadd.f32 %v4647, %v5036
    %5038 = vmatmul.bf16.gmra.mxu0 %v4571
    %v5039 = vpop.f32.mrf.mxu0
    %v5040 = vadd.f32 %v4647, %v5039
    %v5041 = vpop.f32.mrf.mxu0
    %v5042 = vadd.f32 %v4647, %v5041
    %5043 = vmatmul.bf16.gmra.mxu0 %v4573
    %v5044 = vpop.f32.mrf.mxu0
    %v5045 = vadd.f32 %v4647, %v5044
    %v5046 = vpop.f32.mrf.mxu0
    %v5047 = vadd.f32 %v4647, %v5046
    %5048 = vmatmul.bf16.gmra.mxu0 %v4575
    %v5049 = vpop.f32.mrf.mxu0
    %v5050 = vadd.f32 %v4647, %v5049
    %v5051 = vpop.f32.mrf.mxu0
    %v5052 = vadd.f32 %v4647, %v5051
    %5053 = vmatmul.bf16.gmra.mxu0 %v4577
    %v5054 = vpop.f32.mrf.mxu0
    %v5055 = vadd.f32 %v4647, %v5054
    %v5056 = vpop.f32.mrf.mxu0
    %v5057 = vadd.f32 %v4647, %v5056
    %5058 = vmatmul.bf16.gmra.mxu0 %v4579
    %v5059 = vpop.f32.mrf.mxu0
    %v5060 = vadd.f32 %v4647, %v5059
    %v5061 = vpop.f32.mrf.mxu0
    %v5062 = vadd.f32 %v4647, %v5061
    %5063 = vdwg.mxu0
    %5064 = vmatpush.bf16.msra.mxu0 %v4907
    %5065 = vmatpush.bf16.msra.mxu0 %v4903
    %5066 = vmatpush.bf16.msra.mxu0 %v4899
    %5067 = vmatpush.bf16.msra.mxu0 %v4895
    %5068 = vmatpush.bf16.msra.mxu0 %v4891
    %5069 = vmatpush.bf16.msra.mxu0 %v4887
    %5070 = vmatpush.bf16.msra.mxu0 %v4883
    %5071 = vmatpush.bf16.msra.mxu0 %v4879
    %5072 = vmatmul.bf16.gmra.mxu0 %v4550
    %v5073 = vpop.f32.mrf.mxu0
    %v5074 = vadd.f32 %v4985, %v5073
    %v5075 = vpop.f32.mrf.mxu0
    %v5076 = vadd.f32 %v4987, %v5075
    %5077 = vmatmul.bf16.gmra.mxu0 %v4552
    %v5078 = vpop.f32.mrf.mxu0
    %v5079 = vadd.f32 %v4990, %v5078
    %v5080 = vpop.f32.mrf.mxu0
    %v5081 = vadd.f32 %v4992, %v5080
    %5082 = vmatmul.bf16.gmra.mxu0 %v4554
    %v5083 = vpop.f32.mrf.mxu0
    %v5084 = vadd.f32 %v4995, %v5083
    %v5085 = vpop.f32.mrf.mxu0
    %v5086 = vadd.f32 %v4997, %v5085
    %5087 = vmatmul.bf16.gmra.mxu0 %v4556
    %v5088 = vpop.f32.mrf.mxu0
    %v5089 = vadd.f32 %v5000, %v5088
    %v5090 = vpop.f32.mrf.mxu0
    %v5091 = vadd.f32 %v5002, %v5090
    %5092 = vmatmul.bf16.gmra.mxu0 %v4558
    %v5093 = vpop.f32.mrf.mxu0
    %v5094 = vadd.f32 %v5005, %v5093
    %v5095 = vpop.f32.mrf.mxu0
    %v5096 = vadd.f32 %v5007, %v5095
    %5097 = vmatmul.bf16.gmra.mxu0 %v4560
    %v5098 = vpop.f32.mrf.mxu0
    %v5099 = vadd.f32 %v5010, %v5098
    %v5100 = vpop.f32.mrf.mxu0
    %v5101 = vadd.f32 %v5012, %v5100
    %5102 = vmatmul.bf16.gmra.mxu0 %v4562
    %v5103 = vpop.f32.mrf.mxu0
    %v5104 = vadd.f32 %v5015, %v5103
    %v5105 = vpop.f32.mrf.mxu0
    %v5106 = vadd.f32 %v5017, %v5105
    %5107 = vmatmul.bf16.gmra.mxu0 %v4564
    %v5108 = vpop.f32.mrf.mxu0
    %v5109 = vadd.f32 %v5020, %v5108
    %v5110 = vpop.f32.mrf.mxu0
    %v5111 = vadd.f32 %v5022, %v5110
    %5112 = vmatmul.bf16.gmra.mxu0 %v4566
    %v5113 = vpop.f32.mrf.mxu0
    %v5114 = vadd.f32 %v5025, %v5113
    %v5115 = vpop.f32.mrf.mxu0
    %v5116 = vadd.f32 %v5027, %v5115
    %5117 = vmatmul.bf16.gmra.mxu0 %v4568
    %v5118 = vpop.f32.mrf.mxu0
    %v5119 = vadd.f32 %v5030, %v5118
    %v5120 = vpop.f32.mrf.mxu0
    %v5121 = vadd.f32 %v5032, %v5120
    %5122 = vmatmul.bf16.gmra.mxu0 %v4570
    %v5123 = vpop.f32.mrf.mxu0
    %v5124 = vadd.f32 %v5035, %v5123
    %v5125 = vpop.f32.mrf.mxu0
    %v5126 = vadd.f32 %v5037, %v5125
    %5127 = vmatmul.bf16.gmra.mxu0 %v4572
    %v5128 = vpop.f32.mrf.mxu0
    %v5129 = vadd.f32 %v5040, %v5128
    %v5130 = vpop.f32.mrf.mxu0
    %v5131 = vadd.f32 %v5042, %v5130
    %5132 = vmatmul.bf16.gmra.mxu0 %v4574
    %v5133 = vpop.f32.mrf.mxu0
    %v5134 = vadd.f32 %v5045, %v5133
    %v5135 = vpop.f32.mrf.mxu0
    %v5136 = vadd.f32 %v5047, %v5135
    %5137 = vmatmul.bf16.gmra.mxu0 %v4576
    %v5138 = vpop.f32.mrf.mxu0
    %v5139 = vadd.f32 %v5050, %v5138
    %v5140 = vpop.f32.mrf.mxu0
    %v5141 = vadd.f32 %v5052, %v5140
    %5142 = vmatmul.bf16.gmra.mxu0 %v4578
    %v5143 = vpop.f32.mrf.mxu0
    %v5144 = vadd.f32 %v5055, %v5143
    %v5145 = vpop.f32.mrf.mxu0
    %v5146 = vadd.f32 %v5057, %v5145
    %5147 = vmatmul.bf16.gmra.mxu0 %v4580
    %v5148 = vpop.f32.mrf.mxu0
    %v5149 = vadd.f32 %v5060, %v5148
    %v5150 = vpop.f32.mrf.mxu0
    %v5151 = vadd.f32 %v5062, %v5150
    %5152 = vdwg.mxu0
    %5153 = vmatpush.bf16.msra.mxu0 %v4876
    %5154 = vmatpush.bf16.msra.mxu0 %v4872
    %5155 = vmatpush.bf16.msra.mxu0 %v4868
    %5156 = vmatpush.bf16.msra.mxu0 %v4864
    %5157 = vmatpush.bf16.msra.mxu0 %v4860
    %5158 = vmatpush.bf16.msra.mxu0 %v4856
    %5159 = vmatpush.bf16.msra.mxu0 %v4852
    %5160 = vmatpush.bf16.msra.mxu0 %v4848
    %5161 = vmatmul.bf16.gmra.mxu0 %v4549
    %v5162 = vpop.f32.mrf.mxu0
    %v5163 = vadd.f32 %v4648, %v5162
    %v5164 = vpop.f32.mrf.mxu0
    %v5165 = vadd.f32 %v4648, %v5164
    %5166 = vmatmul.bf16.gmra.mxu0 %v4551
    %v5167 = vpop.f32.mrf.mxu0
    %v5168 = vadd.f32 %v4648, %v5167
    %v5169 = vpop.f32.mrf.mxu0
    %v5170 = vadd.f32 %v4648, %v5169
    %5171 = vmatmul.bf16.gmra.mxu0 %v4553
    %v5172 = vpop.f32.mrf.mxu0
    %v5173 = vadd.f32 %v4648, %v5172
    %v5174 = vpop.f32.mrf.mxu0
    %v5175 = vadd.f32 %v4648, %v5174
    %5176 = vmatmul.bf16.gmra.mxu0 %v4555
    %v5177 = vpop.f32.mrf.mxu0
    %v5178 = vadd.f32 %v4648, %v5177
    %v5179 = vpop.f32.mrf.mxu0
    %v5180 = vadd.f32 %v4648, %v5179
    %5181 = vmatmul.bf16.gmra.mxu0 %v4557
    %v5182 = vpop.f32.mrf.mxu0
    %v5183 = vadd.f32 %v4648, %v5182
    %v5184 = vpop.f32.mrf.mxu0
    %v5185 = vadd.f32 %v4648, %v5184
    %5186 = vmatmul.bf16.gmra.mxu0 %v4559
    %v5187 = vpop.f32.mrf.mxu0
    %v5188 = vadd.f32 %v4648, %v5187
    %v5189 = vpop.f32.mrf.mxu0
    %v5190 = vadd.f32 %v4648, %v5189
    %5191 = vmatmul.bf16.gmra.mxu0 %v4561
    %v5192 = vpop.f32.mrf.mxu0
    %v5193 = vadd.f32 %v4648, %v5192
    %v5194 = vpop.f32.mrf.mxu0
    %v5195 = vadd.f32 %v4648, %v5194
    %5196 = vmatmul.bf16.gmra.mxu0 %v4563
    %v5197 = vpop.f32.mrf.mxu0
    %v5198 = vadd.f32 %v4648, %v5197
    %v5199 = vpop.f32.mrf.mxu0
    %v5200 = vadd.f32 %v4648, %v5199
    %5201 = vmatmul.bf16.gmra.mxu0 %v4565
    %v5202 = vpop.f32.mrf.mxu0
    %v5203 = vadd.f32 %v4648, %v5202
    %v5204 = vpop.f32.mrf.mxu0
    %v5205 = vadd.f32 %v4648, %v5204
    %5206 = vmatmul.bf16.gmra.mxu0 %v4567
    %v5207 = vpop.f32.mrf.mxu0
    %v5208 = vadd.f32 %v4648, %v5207
    %v5209 = vpop.f32.mrf.mxu0
    %v5210 = vadd.f32 %v4648, %v5209
    %5211 = vmatmul.bf16.gmra.mxu0 %v4569
    %v5212 = vpop.f32.mrf.mxu0
    %v5213 = vadd.f32 %v4648, %v5212
    %v5214 = vpop.f32.mrf.mxu0
    %v5215 = vadd.f32 %v4648, %v5214
    %5216 = vmatmul.bf16.gmra.mxu0 %v4571
    %v5217 = vpop.f32.mrf.mxu0
    %v5218 = vadd.f32 %v4648, %v5217
    %v5219 = vpop.f32.mrf.mxu0
    %v5220 = vadd.f32 %v4648, %v5219
    %5221 = vmatmul.bf16.gmra.mxu0 %v4573
    %v5222 = vpop.f32.mrf.mxu0
    %v5223 = vadd.f32 %v4648, %v5222
    %v5224 = vpop.f32.mrf.mxu0
    %v5225 = vadd.f32 %v4648, %v5224
    %5226 = vmatmul.bf16.gmra.mxu0 %v4575
    %v5227 = vpop.f32.mrf.mxu0
    %v5228 = vadd.f32 %v4648, %v5227
    %v5229 = vpop.f32.mrf.mxu0
    %v5230 = vadd.f32 %v4648, %v5229
    %5231 = vmatmul.bf16.gmra.mxu0 %v4577
    %v5232 = vpop.f32.mrf.mxu0
    %v5233 = vadd.f32 %v4648, %v5232
    %v5234 = vpop.f32.mrf.mxu0
    %v5235 = vadd.f32 %v4648, %v5234
    %5236 = vmatmul.bf16.gmra.mxu0 %v4579
    %v5237 = vpop.f32.mrf.mxu0
    %v5238 = vadd.f32 %v4648, %v5237
    %v5239 = vpop.f32.mrf.mxu0
    %v5240 = vadd.f32 %v4648, %v5239
    %5241 = vdwg.mxu0
    %5242 = vmatpush.bf16.msra.mxu0 %v4908
    %5243 = vmatpush.bf16.msra.mxu0 %v4904
    %5244 = vmatpush.bf16.msra.mxu0 %v4900
    %5245 = vmatpush.bf16.msra.mxu0 %v4896
    %5246 = vmatpush.bf16.msra.mxu0 %v4892
    %5247 = vmatpush.bf16.msra.mxu0 %v4888
    %5248 = vmatpush.bf16.msra.mxu0 %v4884
    %5249 = vmatpush.bf16.msra.mxu0 %v4880
    %5250 = vmatmul.bf16.gmra.mxu0 %v4550
    %v5251 = vpop.f32.mrf.mxu0
    %v5252 = vadd.f32 %v5163, %v5251
    %v5253 = vpop.f32.mrf.mxu0
    %v5254 = vadd.f32 %v5165, %v5253
    %5255 = vmatmul.bf16.gmra.mxu0 %v4552
    %v5256 = vpop.f32.mrf.mxu0
    %v5257 = vadd.f32 %v5168, %v5256
    %v5258 = vpop.f32.mrf.mxu0
    %v5259 = vadd.f32 %v5170, %v5258
    %5260 = vmatmul.bf16.gmra.mxu0 %v4554
    %v5261 = vpop.f32.mrf.mxu0
    %v5262 = vadd.f32 %v5173, %v5261
    %v5263 = vpop.f32.mrf.mxu0
    %v5264 = vadd.f32 %v5175, %v5263
    %5265 = vmatmul.bf16.gmra.mxu0 %v4556
    %v5266 = vpop.f32.mrf.mxu0
    %v5267 = vadd.f32 %v5178, %v5266
    %v5268 = vpop.f32.mrf.mxu0
    %v5269 = vadd.f32 %v5180, %v5268
    %5270 = vmatmul.bf16.gmra.mxu0 %v4558
    %v5271 = vpop.f32.mrf.mxu0
    %v5272 = vadd.f32 %v5183, %v5271
    %v5273 = vpop.f32.mrf.mxu0
    %v5274 = vadd.f32 %v5185, %v5273
    %5275 = vmatmul.bf16.gmra.mxu0 %v4560
    %v5276 = vpop.f32.mrf.mxu0
    %v5277 = vadd.f32 %v5188, %v5276
    %v5278 = vpop.f32.mrf.mxu0
    %v5279 = vadd.f32 %v5190, %v5278
    %5280 = vmatmul.bf16.gmra.mxu0 %v4562
    %v5281 = vpop.f32.mrf.mxu0
    %v5282 = vadd.f32 %v5193, %v5281
    %v5283 = vpop.f32.mrf.mxu0
    %v5284 = vadd.f32 %v5195, %v5283
    %5285 = vmatmul.bf16.gmra.mxu0 %v4564
    %v5286 = vpop.f32.mrf.mxu0
    %v5287 = vadd.f32 %v5198, %v5286
    %v5288 = vpop.f32.mrf.mxu0
    %v5289 = vadd.f32 %v5200, %v5288
    %5290 = vmatmul.bf16.gmra.mxu0 %v4566
    %v5291 = vpop.f32.mrf.mxu0
    %v5292 = vadd.f32 %v5203, %v5291
    %v5293 = vpop.f32.mrf.mxu0
    %v5294 = vadd.f32 %v5205, %v5293
    %5295 = vmatmul.bf16.gmra.mxu0 %v4568
    %v5296 = vpop.f32.mrf.mxu0
    %v5297 = vadd.f32 %v5208, %v5296
    %v5298 = vpop.f32.mrf.mxu0
    %v5299 = vadd.f32 %v5210, %v5298
    %5300 = vmatmul.bf16.gmra.mxu0 %v4570
    %v5301 = vpop.f32.mrf.mxu0
    %v5302 = vadd.f32 %v5213, %v5301
    %v5303 = vpop.f32.mrf.mxu0
    %v5304 = vadd.f32 %v5215, %v5303
    %5305 = vmatmul.bf16.gmra.mxu0 %v4572
    %v5306 = vpop.f32.mrf.mxu0
    %v5307 = vadd.f32 %v5218, %v5306
    %v5308 = vpop.f32.mrf.mxu0
    %v5309 = vadd.f32 %v5220, %v5308
    %5310 = vmatmul.bf16.gmra.mxu0 %v4574
    %v5311 = vpop.f32.mrf.mxu0
    %v5312 = vadd.f32 %v5223, %v5311
    %v5313 = vpop.f32.mrf.mxu0
    %v5314 = vadd.f32 %v5225, %v5313
    %5315 = vmatmul.bf16.gmra.mxu0 %v4576
    %v5316 = vpop.f32.mrf.mxu0
    %v5317 = vadd.f32 %v5228, %v5316
    %v5318 = vpop.f32.mrf.mxu0
    %v5319 = vadd.f32 %v5230, %v5318
    %5320 = vmatmul.bf16.gmra.mxu0 %v4578
    %v5321 = vpop.f32.mrf.mxu0
    %v5322 = vadd.f32 %v5233, %v5321
    %v5323 = vpop.f32.mrf.mxu0
    %v5324 = vadd.f32 %v5235, %v5323
    %5325 = vmatmul.bf16.gmra.mxu0 %v4580
    %v5326 = vpop.f32.mrf.mxu0
    %v5327 = vadd.f32 %v5238, %v5326
    %v5328 = vpop.f32.mrf.mxu0
    %v5329 = vadd.f32 %v5240, %v5328
    %5330 = vdwg.mxu0
    %5331 = vmatpush.bf16.msra.mxu0 %v4877
    %5332 = vmatpush.bf16.msra.mxu0 %v4873
    %5333 = vmatpush.bf16.msra.mxu0 %v4869
    %5334 = vmatpush.bf16.msra.mxu0 %v4865
    %5335 = vmatpush.bf16.msra.mxu0 %v4861
    %5336 = vmatpush.bf16.msra.mxu0 %v4857
    %5337 = vmatpush.bf16.msra.mxu0 %v4853
    %5338 = vmatpush.bf16.msra.mxu0 %v4849
    %5339 = vmatmul.bf16.gmra.mxu0 %v4549
    %v5340 = vpop.f32.mrf.mxu0
    %v5341 = vadd.f32 %v4649, %v5340
    %v5342 = vpop.f32.mrf.mxu0
    %v5343 = vadd.f32 %v4649, %v5342
    %5344 = vmatmul.bf16.gmra.mxu0 %v4551
    %v5345 = vpop.f32.mrf.mxu0
    %v5346 = vadd.f32 %v4649, %v5345
    %v5347 = vpop.f32.mrf.mxu0
    %v5348 = vadd.f32 %v4649, %v5347
    %5349 = vmatmul.bf16.gmra.mxu0 %v4553
    %v5350 = vpop.f32.mrf.mxu0
    %v5351 = vadd.f32 %v4649, %v5350
    %v5352 = vpop.f32.mrf.mxu0
    %v5353 = vadd.f32 %v4649, %v5352
    %5354 = vmatmul.bf16.gmra.mxu0 %v4555
    %v5355 = vpop.f32.mrf.mxu0
    %v5356 = vadd.f32 %v4649, %v5355
    %v5357 = vpop.f32.mrf.mxu0
    %v5358 = vadd.f32 %v4649, %v5357
    %5359 = vmatmul.bf16.gmra.mxu0 %v4557
    %v5360 = vpop.f32.mrf.mxu0
    %v5361 = vadd.f32 %v4649, %v5360
    %v5362 = vpop.f32.mrf.mxu0
    %v5363 = vadd.f32 %v4649, %v5362
    %5364 = vmatmul.bf16.gmra.mxu0 %v4559
    %v5365 = vpop.f32.mrf.mxu0
    %v5366 = vadd.f32 %v4649, %v5365
    %v5367 = vpop.f32.mrf.mxu0
    %v5368 = vadd.f32 %v4649, %v5367
    %5369 = vmatmul.bf16.gmra.mxu0 %v4561
    %v5370 = vpop.f32.mrf.mxu0
    %v5371 = vadd.f32 %v4649, %v5370
    %v5372 = vpop.f32.mrf.mxu0
    %v5373 = vadd.f32 %v4649, %v5372
    %5374 = vmatmul.bf16.gmra.mxu0 %v4563
    %v5375 = vpop.f32.mrf.mxu0
    %v5376 = vadd.f32 %v4649, %v5375
    %v5377 = vpop.f32.mrf.mxu0
    %v5378 = vadd.f32 %v4649, %v5377
    %5379 = vmatmul.bf16.gmra.mxu0 %v4565
    %v5380 = vpop.f32.mrf.mxu0
    %v5381 = vadd.f32 %v4649, %v5380
    %v5382 = vpop.f32.mrf.mxu0
    %v5383 = vadd.f32 %v4649, %v5382
    %5384 = vmatmul.bf16.gmra.mxu0 %v4567
    %v5385 = vpop.f32.mrf.mxu0
    %v5386 = vadd.f32 %v4649, %v5385
    %v5387 = vpop.f32.mrf.mxu0
    %v5388 = vadd.f32 %v4649, %v5387
    %5389 = vmatmul.bf16.gmra.mxu0 %v4569
    %v5390 = vpop.f32.mrf.mxu0
    %v5391 = vadd.f32 %v4649, %v5390
    %v5392 = vpop.f32.mrf.mxu0
    %v5393 = vadd.f32 %v4649, %v5392
    %5394 = vmatmul.bf16.gmra.mxu0 %v4571
    %v5395 = vpop.f32.mrf.mxu0
    %v5396 = vadd.f32 %v4649, %v5395
    %v5397 = vpop.f32.mrf.mxu0
    %v5398 = vadd.f32 %v4649, %v5397
    %5399 = vmatmul.bf16.gmra.mxu0 %v4573
    %v5400 = vpop.f32.mrf.mxu0
    %v5401 = vadd.f32 %v4649, %v5400
    %v5402 = vpop.f32.mrf.mxu0
    %v5403 = vadd.f32 %v4649, %v5402
    %5404 = vmatmul.bf16.gmra.mxu0 %v4575
    %v5405 = vpop.f32.mrf.mxu0
    %v5406 = vadd.f32 %v4649, %v5405
    %v5407 = vpop.f32.mrf.mxu0
    %v5408 = vadd.f32 %v4649, %v5407
    %5409 = vmatmul.bf16.gmra.mxu0 %v4577
    %v5410 = vpop.f32.mrf.mxu0
    %v5411 = vadd.f32 %v4649, %v5410
    %v5412 = vpop.f32.mrf.mxu0
    %v5413 = vadd.f32 %v4649, %v5412
    %5414 = vmatmul.bf16.gmra.mxu0 %v4579
    %v5415 = vpop.f32.mrf.mxu0
    %v5416 = vadd.f32 %v4649, %v5415
    %v5417 = vpop.f32.mrf.mxu0
    %v5418 = vadd.f32 %v4649, %v5417
    %5419 = vdwg.mxu0
    %5420 = vmatpush.bf16.msra.mxu0 %v4909
    %5421 = vmatpush.bf16.msra.mxu0 %v4905
    %5422 = vmatpush.bf16.msra.mxu0 %v4901
    %5423 = vmatpush.bf16.msra.mxu0 %v4897
    %5424 = vmatpush.bf16.msra.mxu0 %v4893
    %5425 = vmatpush.bf16.msra.mxu0 %v4889
    %5426 = vmatpush.bf16.msra.mxu0 %v4885
    %5427 = vmatpush.bf16.msra.mxu0 %v4881
    %5428 = vmatmul.bf16.gmra.mxu0 %v4550
    %v5429 = vpop.f32.mrf.mxu0
    %v5430 = vadd.f32 %v5341, %v5429
    %v5431 = vpop.f32.mrf.mxu0
    %v5432 = vadd.f32 %v5343, %v5431
    %5433 = vmatmul.bf16.gmra.mxu0 %v4552
    %v5434 = vpop.f32.mrf.mxu0
    %v5435 = vadd.f32 %v5346, %v5434
    %v5436 = vpop.f32.mrf.mxu0
    %v5437 = vadd.f32 %v5348, %v5436
    %5438 = vmatmul.bf16.gmra.mxu0 %v4554
    %v5439 = vpop.f32.mrf.mxu0
    %v5440 = vadd.f32 %v5351, %v5439
    %v5441 = vpop.f32.mrf.mxu0
    %v5442 = vadd.f32 %v5353, %v5441
    %5443 = vmatmul.bf16.gmra.mxu0 %v4556
    %v5444 = vpop.f32.mrf.mxu0
    %v5445 = vadd.f32 %v5356, %v5444
    %v5446 = vpop.f32.mrf.mxu0
    %v5447 = vadd.f32 %v5358, %v5446
    %5448 = vmatmul.bf16.gmra.mxu0 %v4558
    %v5449 = vpop.f32.mrf.mxu0
    %v5450 = vadd.f32 %v5361, %v5449
    %v5451 = vpop.f32.mrf.mxu0
    %v5452 = vadd.f32 %v5363, %v5451
    %5453 = vmatmul.bf16.gmra.mxu0 %v4560
    %v5454 = vpop.f32.mrf.mxu0
    %v5455 = vadd.f32 %v5366, %v5454
    %v5456 = vpop.f32.mrf.mxu0
    %v5457 = vadd.f32 %v5368, %v5456
    %5458 = vmatmul.bf16.gmra.mxu0 %v4562
    %v5459 = vpop.f32.mrf.mxu0
    %v5460 = vadd.f32 %v5371, %v5459
    %v5461 = vpop.f32.mrf.mxu0
    %v5462 = vadd.f32 %v5373, %v5461
    %5463 = vmatmul.bf16.gmra.mxu0 %v4564
    %v5464 = vpop.f32.mrf.mxu0
    %v5465 = vadd.f32 %v5376, %v5464
    %v5466 = vpop.f32.mrf.mxu0
    %v5467 = vadd.f32 %v5378, %v5466
    %5468 = vmatmul.bf16.gmra.mxu0 %v4566
    %v5469 = vpop.f32.mrf.mxu0
    %v5470 = vadd.f32 %v5381, %v5469
    %v5471 = vpop.f32.mrf.mxu0
    %v5472 = vadd.f32 %v5383, %v5471
    %5473 = vmatmul.bf16.gmra.mxu0 %v4568
    %v5474 = vpop.f32.mrf.mxu0
    %v5475 = vadd.f32 %v5386, %v5474
    %v5476 = vpop.f32.mrf.mxu0
    %v5477 = vadd.f32 %v5388, %v5476
    %5478 = vmatmul.bf16.gmra.mxu0 %v4570
    %v5479 = vpop.f32.mrf.mxu0
    %v5480 = vadd.f32 %v5391, %v5479
    %v5481 = vpop.f32.mrf.mxu0
    %v5482 = vadd.f32 %v5393, %v5481
    %5483 = vmatmul.bf16.gmra.mxu0 %v4572
    %v5484 = vpop.f32.mrf.mxu0
    %v5485 = vadd.f32 %v5396, %v5484
    %v5486 = vpop.f32.mrf.mxu0
    %v5487 = vadd.f32 %v5398, %v5486
    %5488 = vmatmul.bf16.gmra.mxu0 %v4574
    %v5489 = vpop.f32.mrf.mxu0
    %v5490 = vadd.f32 %v5401, %v5489
    %v5491 = vpop.f32.mrf.mxu0
    %v5492 = vadd.f32 %v5403, %v5491
    %5493 = vmatmul.bf16.gmra.mxu0 %v4576
    %v5494 = vpop.f32.mrf.mxu0
    %v5495 = vadd.f32 %v5406, %v5494
    %v5496 = vpop.f32.mrf.mxu0
    %v5497 = vadd.f32 %v5408, %v5496
    %5498 = vmatmul.bf16.gmra.mxu0 %v4578
    %v5499 = vpop.f32.mrf.mxu0
    %v5500 = vadd.f32 %v5411, %v5499
    %v5501 = vpop.f32.mrf.mxu0
    %v5502 = vadd.f32 %v5413, %v5501
    %5503 = vmatmul.bf16.gmra.mxu0 %v4580
    %v5504 = vpop.f32.mrf.mxu0
    %v5505 = vadd.f32 %v5416, %v5504
    %v5506 = vpop.f32.mrf.mxu0
    %v5507 = vadd.f32 %v5418, %v5506
    %5508 = vdwg.mxu0
    %5509 = vmatpush.bf16.msra.mxu0 %v4878
    %5510 = vmatpush.bf16.msra.mxu0 %v4874
    %5511 = vmatpush.bf16.msra.mxu0 %v4870
    %5512 = vmatpush.bf16.msra.mxu0 %v4866
    %5513 = vmatpush.bf16.msra.mxu0 %v4862
    %5514 = vmatpush.bf16.msra.mxu0 %v4858
    %5515 = vmatpush.bf16.msra.mxu0 %v4854
    %5516 = vmatpush.bf16.msra.mxu0 %v4850
    %5517 = vmatmul.bf16.gmra.mxu0 %v4549
    %v5518 = vpop.f32.mrf.mxu0
    %v5519 = vadd.f32 %v4650, %v5518
    %v5520 = vpop.f32.mrf.mxu0
    %v5521 = vadd.f32 %v4650, %v5520
    %5522 = vmatmul.bf16.gmra.mxu0 %v4551
    %v5523 = vpop.f32.mrf.mxu0
    %v5524 = vadd.f32 %v4650, %v5523
    %v5525 = vpop.f32.mrf.mxu0
    %v5526 = vadd.f32 %v4650, %v5525
    %5527 = vmatmul.bf16.gmra.mxu0 %v4553
    %v5528 = vpop.f32.mrf.mxu0
    %v5529 = vadd.f32 %v4650, %v5528
    %v5530 = vpop.f32.mrf.mxu0
    %v5531 = vadd.f32 %v4650, %v5530
    %5532 = vmatmul.bf16.gmra.mxu0 %v4555
    %v5533 = vpop.f32.mrf.mxu0
    %v5534 = vadd.f32 %v4650, %v5533
    %v5535 = vpop.f32.mrf.mxu0
    %v5536 = vadd.f32 %v4650, %v5535
    %5537 = vmatmul.bf16.gmra.mxu0 %v4557
    %v5538 = vpop.f32.mrf.mxu0
    %v5539 = vadd.f32 %v4650, %v5538
    %v5540 = vpop.f32.mrf.mxu0
    %v5541 = vadd.f32 %v4650, %v5540
    %5542 = vmatmul.bf16.gmra.mxu0 %v4559
    %v5543 = vpop.f32.mrf.mxu0
    %v5544 = vadd.f32 %v4650, %v5543
    %v5545 = vpop.f32.mrf.mxu0
    %v5546 = vadd.f32 %v4650, %v5545
    %5547 = vmatmul.bf16.gmra.mxu0 %v4561
    %v5548 = vpop.f32.mrf.mxu0
    %v5549 = vadd.f32 %v4650, %v5548
    %v5550 = vpop.f32.mrf.mxu0
    %v5551 = vadd.f32 %v4650, %v5550
    %5552 = vmatmul.bf16.gmra.mxu0 %v4563
    %v5553 = vpop.f32.mrf.mxu0
    %v5554 = vadd.f32 %v4650, %v5553
    %v5555 = vpop.f32.mrf.mxu0
    %v5556 = vadd.f32 %v4650, %v5555
    %5557 = vmatmul.bf16.gmra.mxu0 %v4565
    %v5558 = vpop.f32.mrf.mxu0
    %v5559 = vadd.f32 %v4650, %v5558
    %v5560 = vpop.f32.mrf.mxu0
    %v5561 = vadd.f32 %v4650, %v5560
    %5562 = vmatmul.bf16.gmra.mxu0 %v4567
    %v5563 = vpop.f32.mrf.mxu0
    %v5564 = vadd.f32 %v4650, %v5563
    %v5565 = vpop.f32.mrf.mxu0
    %v5566 = vadd.f32 %v4650, %v5565
    %5567 = vmatmul.bf16.gmra.mxu0 %v4569
    %v5568 = vpop.f32.mrf.mxu0
    %v5569 = vadd.f32 %v4650, %v5568
    %v5570 = vpop.f32.mrf.mxu0
    %v5571 = vadd.f32 %v4650, %v5570
    %5572 = vmatmul.bf16.gmra.mxu0 %v4571
    %v5573 = vpop.f32.mrf.mxu0
    %v5574 = vadd.f32 %v4650, %v5573
    %v5575 = vpop.f32.mrf.mxu0
    %v5576 = vadd.f32 %v4650, %v5575
    %5577 = vmatmul.bf16.gmra.mxu0 %v4573
    %v5578 = vpop.f32.mrf.mxu0
    %v5579 = vadd.f32 %v4650, %v5578
    %v5580 = vpop.f32.mrf.mxu0
    %v5581 = vadd.f32 %v4650, %v5580
    %5582 = vmatmul.bf16.gmra.mxu0 %v4575
    %v5583 = vpop.f32.mrf.mxu0
    %v5584 = vadd.f32 %v4650, %v5583
    %v5585 = vpop.f32.mrf.mxu0
    %v5586 = vadd.f32 %v4650, %v5585
    %5587 = vmatmul.bf16.gmra.mxu0 %v4577
    %v5588 = vpop.f32.mrf.mxu0
    %v5589 = vadd.f32 %v4650, %v5588
    %v5590 = vpop.f32.mrf.mxu0
    %v5591 = vadd.f32 %v4650, %v5590
    %5592 = vmatmul.bf16.gmra.mxu0 %v4579
    %v5593 = vpop.f32.mrf.mxu0
    %v5594 = vadd.f32 %v4650, %v5593
    %v5595 = vpop.f32.mrf.mxu0
    %v5596 = vadd.f32 %v4650, %v5595
    %5597 = vdwg.mxu0
    %5598 = vmatpush.bf16.msra.mxu0 %v4910
    %5599 = vmatpush.bf16.msra.mxu0 %v4906
    %5600 = vmatpush.bf16.msra.mxu0 %v4902
    %5601 = vmatpush.bf16.msra.mxu0 %v4898
    %5602 = vmatpush.bf16.msra.mxu0 %v4894
    %5603 = vmatpush.bf16.msra.mxu0 %v4890
    %5604 = vmatpush.bf16.msra.mxu0 %v4886
    %5605 = vmatpush.bf16.msra.mxu0 %v4882
    %5606 = vmatmul.bf16.gmra.mxu0 %v4550
    %v5607 = vpop.f32.mrf.mxu0
    %v5608 = vadd.f32 %v5519, %v5607
    %v5609 = vpop.f32.mrf.mxu0
    %v5610 = vadd.f32 %v5521, %v5609
    %5611 = vmatmul.bf16.gmra.mxu0 %v4552
    %v5612 = vpop.f32.mrf.mxu0
    %v5613 = vadd.f32 %v5524, %v5612
    %v5614 = vpop.f32.mrf.mxu0
    %v5615 = vadd.f32 %v5526, %v5614
    %5616 = vmatmul.bf16.gmra.mxu0 %v4554
    %v5617 = vpop.f32.mrf.mxu0
    %v5618 = vadd.f32 %v5529, %v5617
    %v5619 = vpop.f32.mrf.mxu0
    %v5620 = vadd.f32 %v5531, %v5619
    %5621 = vmatmul.bf16.gmra.mxu0 %v4556
    %v5622 = vpop.f32.mrf.mxu0
    %v5623 = vadd.f32 %v5534, %v5622
    %v5624 = vpop.f32.mrf.mxu0
    %v5625 = vadd.f32 %v5536, %v5624
    %5626 = vmatmul.bf16.gmra.mxu0 %v4558
    %v5627 = vpop.f32.mrf.mxu0
    %v5628 = vadd.f32 %v5539, %v5627
    %v5629 = vpop.f32.mrf.mxu0
    %v5630 = vadd.f32 %v5541, %v5629
    %5631 = vmatmul.bf16.gmra.mxu0 %v4560
    %v5632 = vpop.f32.mrf.mxu0
    %v5633 = vadd.f32 %v5544, %v5632
    %v5634 = vpop.f32.mrf.mxu0
    %v5635 = vadd.f32 %v5546, %v5634
    %5636 = vmatmul.bf16.gmra.mxu0 %v4562
    %v5637 = vpop.f32.mrf.mxu0
    %v5638 = vadd.f32 %v5549, %v5637
    %v5639 = vpop.f32.mrf.mxu0
    %v5640 = vadd.f32 %v5551, %v5639
    %5641 = vmatmul.bf16.gmra.mxu0 %v4564
    %v5642 = vpop.f32.mrf.mxu0
    %v5643 = vadd.f32 %v5554, %v5642
    %v5644 = vpop.f32.mrf.mxu0
    %v5645 = vadd.f32 %v5556, %v5644
    %5646 = vmatmul.bf16.gmra.mxu0 %v4566
    %v5647 = vpop.f32.mrf.mxu0
    %v5648 = vadd.f32 %v5559, %v5647
    %v5649 = vpop.f32.mrf.mxu0
    %v5650 = vadd.f32 %v5561, %v5649
    %5651 = vmatmul.bf16.gmra.mxu0 %v4568
    %v5652 = vpop.f32.mrf.mxu0
    %v5653 = vadd.f32 %v5564, %v5652
    %v5654 = vpop.f32.mrf.mxu0
    %v5655 = vadd.f32 %v5566, %v5654
    %5656 = vmatmul.bf16.gmra.mxu0 %v4570
    %v5657 = vpop.f32.mrf.mxu0
    %v5658 = vadd.f32 %v5569, %v5657
    %v5659 = vpop.f32.mrf.mxu0
    %v5660 = vadd.f32 %v5571, %v5659
    %5661 = vmatmul.bf16.gmra.mxu0 %v4572
    %v5662 = vpop.f32.mrf.mxu0
    %v5663 = vadd.f32 %v5574, %v5662
    %v5664 = vpop.f32.mrf.mxu0
    %v5665 = vadd.f32 %v5576, %v5664
    %5666 = vmatmul.bf16.gmra.mxu0 %v4574
    %v5667 = vpop.f32.mrf.mxu0
    %v5668 = vadd.f32 %v5579, %v5667
    %v5669 = vpop.f32.mrf.mxu0
    %v5670 = vadd.f32 %v5581, %v5669
    %5671 = vmatmul.bf16.gmra.mxu0 %v4576
    %v5672 = vpop.f32.mrf.mxu0
    %v5673 = vadd.f32 %v5584, %v5672
    %v5674 = vpop.f32.mrf.mxu0
    %v5675 = vadd.f32 %v5586, %v5674
    %5676 = vmatmul.bf16.gmra.mxu0 %v4578
    %v5677 = vpop.f32.mrf.mxu0
    %v5678 = vadd.f32 %v5589, %v5677
    %v5679 = vpop.f32.mrf.mxu0
    %v5680 = vadd.f32 %v5591, %v5679
    %5681 = vmatmul.bf16.gmra.mxu0 %v4580
    %v5682 = vpop.f32.mrf.mxu0
    %v5683 = vadd.f32 %v5594, %v5682
    %v5684 = vpop.f32.mrf.mxu0
    %v5685 = vadd.f32 %v5596, %v5684
    %5686 = vdwg.mxu0
    %v5687 = vmax.f32 %v5074, 0.0
    %v5688 = vmax.f32 %v5252, 0.0
    %v5689 = vmax.f32 %v5430, 0.0
    %v5690 = vmax.f32 %v5608, 0.0
    %v5691 = vmax.f32 %v5076, 0.0
    %v5692 = vmax.f32 %v5254, 0.0
    %v5693 = vmax.f32 %v5432, 0.0
    %v5694 = vmax.f32 %v5610, 0.0
    %v5695 = vmax.f32 %v5079, 0.0
    %v5696 = vmax.f32 %v5257, 0.0
    %v5697 = vmax.f32 %v5435, 0.0
    %v5698 = vmax.f32 %v5613, 0.0
    %v5699 = vmax.f32 %v5081, 0.0
    %v5700 = vmax.f32 %v5259, 0.0
    %v5701 = vmax.f32 %v5437, 0.0
    %v5702 = vmax.f32 %v5615, 0.0
    %v5703 = vmax.f32 %v5084, 0.0
    %v5704 = vmax.f32 %v5262, 0.0
    %v5705 = vmax.f32 %v5440, 0.0
    %v5706 = vmax.f32 %v5618, 0.0
    %v5707 = vmax.f32 %v5086, 0.0
    %v5708 = vmax.f32 %v5264, 0.0
    %v5709 = vmax.f32 %v5442, 0.0
    %v5710 = vmax.f32 %v5620, 0.0
    %v5711 = vmax.f32 %v5089, 0.0
    %v5712 = vmax.f32 %v5267, 0.0
    %v5713 = vmax.f32 %v5445, 0.0
    %v5714 = vmax.f32 %v5623, 0.0
    %v5715 = vmax.f32 %v5091, 0.0
    %v5716 = vmax.f32 %v5269, 0.0
    %v5717 = vmax.f32 %v5447, 0.0
    %v5718 = vmax.f32 %v5625, 0.0
    %v5719 = vmax.f32 %v5094, 0.0
    %v5720 = vmax.f32 %v5272, 0.0
    %v5721 = vmax.f32 %v5450, 0.0
    %v5722 = vmax.f32 %v5628, 0.0
    %v5723 = vmax.f32 %v5096, 0.0
    %v5724 = vmax.f32 %v5274, 0.0
    %v5725 = vmax.f32 %v5452, 0.0
    %v5726 = vmax.f32 %v5630, 0.0
    %v5727 = vmax.f32 %v5099, 0.0
    %v5728 = vmax.f32 %v5277, 0.0
    %v5729 = vmax.f32 %v5455, 0.0
    %v5730 = vmax.f32 %v5633, 0.0
    %v5731 = vmax.f32 %v5101, 0.0
    %v5732 = vmax.f32 %v5279, 0.0
    %v5733 = vmax.f32 %v5457, 0.0
    %v5734 = vmax.f32 %v5635, 0.0
    %v5735 = vmax.f32 %v5104, 0.0
    %v5736 = vmax.f32 %v5282, 0.0
    %v5737 = vmax.f32 %v5460, 0.0
    %v5738 = vmax.f32 %v5638, 0.0
    %v5739 = vmax.f32 %v5106, 0.0
    %v5740 = vmax.f32 %v5284, 0.0
    %v5741 = vmax.f32 %v5462, 0.0
    %v5742 = vmax.f32 %v5640, 0.0
    %v5743 = vmax.f32 %v5109, 0.0
    %v5744 = vmax.f32 %v5287, 0.0
    %v5745 = vmax.f32 %v5465, 0.0
    %v5746 = vmax.f32 %v5643, 0.0
    %v5747 = vmax.f32 %v5111, 0.0
    %v5748 = vmax.f32 %v5289, 0.0
    %v5749 = vmax.f32 %v5467, 0.0
    %v5750 = vmax.f32 %v5645, 0.0
    %v5751 = vmax.f32 %v5114, 0.0
    %v5752 = vmax.f32 %v5292, 0.0
    %v5753 = vmax.f32 %v5470, 0.0
    %v5754 = vmax.f32 %v5648, 0.0
    %v5755 = vmax.f32 %v5116, 0.0
    %v5756 = vmax.f32 %v5294, 0.0
    %v5757 = vmax.f32 %v5472, 0.0
    %v5758 = vmax.f32 %v5650, 0.0
    %v5759 = vmax.f32 %v5119, 0.0
    %v5760 = vmax.f32 %v5297, 0.0
    %v5761 = vmax.f32 %v5475, 0.0
    %v5762 = vmax.f32 %v5653, 0.0
    %v5763 = vmax.f32 %v5121, 0.0
    %v5764 = vmax.f32 %v5299, 0.0
    %v5765 = vmax.f32 %v5477, 0.0
    %v5766 = vmax.f32 %v5655, 0.0
    %v5767 = vmax.f32 %v5124, 0.0
    %v5768 = vmax.f32 %v5302, 0.0
    %v5769 = vmax.f32 %v5480, 0.0
    %v5770 = vmax.f32 %v5658, 0.0
    %v5771 = vmax.f32 %v5126, 0.0
    %v5772 = vmax.f32 %v5304, 0.0
    %v5773 = vmax.f32 %v5482, 0.0
    %v5774 = vmax.f32 %v5660, 0.0
    %v5775 = vmax.f32 %v5129, 0.0
    %v5776 = vmax.f32 %v5307, 0.0
    %v5777 = vmax.f32 %v5485, 0.0
    %v5778 = vmax.f32 %v5663, 0.0
    %v5779 = vmax.f32 %v5131, 0.0
    %v5780 = vmax.f32 %v5309, 0.0
    %v5781 = vmax.f32 %v5487, 0.0
    %v5782 = vmax.f32 %v5665, 0.0
    %v5783 = vmax.f32 %v5134, 0.0
    %v5784 = vmax.f32 %v5312, 0.0
    %v5785 = vmax.f32 %v5490, 0.0
    %v5786 = vmax.f32 %v5668, 0.0
    %v5787 = vmax.f32 %v5136, 0.0
    %v5788 = vmax.f32 %v5314, 0.0
    %v5789 = vmax.f32 %v5492, 0.0
    %v5790 = vmax.f32 %v5670, 0.0
    %v5791 = vmax.f32 %v5139, 0.0
    %v5792 = vmax.f32 %v5317, 0.0
    %v5793 = vmax.f32 %v5495, 0.0
    %v5794 = vmax.f32 %v5673, 0.0
    %v5795 = vmax.f32 %v5141, 0.0
    %v5796 = vmax.f32 %v5319, 0.0
    %v5797 = vmax.f32 %v5497, 0.0
    %v5798 = vmax.f32 %v5675, 0.0
    %v5799 = vmax.f32 %v5144, 0.0
    %v5800 = vmax.f32 %v5322, 0.0
    %v5801 = vmax.f32 %v5500, 0.0
    %v5802 = vmax.f32 %v5678, 0.0
    %v5803 = vmax.f32 %v5146, 0.0
    %v5804 = vmax.f32 %v5324, 0.0
    %v5805 = vmax.f32 %v5502, 0.0
    %v5806 = vmax.f32 %v5680, 0.0
    %v5807 = vmax.f32 %v5149, 0.0
    %v5808 = vmax.f32 %v5327, 0.0
    %v5809 = vmax.f32 %v5505, 0.0
    %v5810 = vmax.f32 %v5683, 0.0
    %v5811 = vmax.f32 %v5151, 0.0
    %v5812 = vmax.f32 %v5329, 0.0
    %v5813 = vmax.f32 %v5507, 0.0
    %v5814 = vmax.f32 %v5685, 0.0
    %v5815 = vpack.c.bf16 %v5691, %v5687
    %v5816 = vpack.c.bf16 %v5692, %v5688
    %v5817 = vpack.c.bf16 %v5693, %v5689
    %v5818 = vpack.c.bf16 %v5694, %v5690
    %v5819 = vpack.c.bf16 %v5699, %v5695
    %v5820 = vpack.c.bf16 %v5700, %v5696
    %v5821 = vpack.c.bf16 %v5701, %v5697
    %v5822 = vpack.c.bf16 %v5702, %v5698
    %v5823 = vpack.c.bf16 %v5707, %v5703
    %v5824 = vpack.c.bf16 %v5708, %v5704
    %v5825 = vpack.c.bf16 %v5709, %v5705
    %v5826 = vpack.c.bf16 %v5710, %v5706
    %v5827 = vpack.c.bf16 %v5715, %v5711
    %v5828 = vpack.c.bf16 %v5716, %v5712
    %v5829 = vpack.c.bf16 %v5717, %v5713
    %v5830 = vpack.c.bf16 %v5718, %v5714
    %v5831 = vpack.c.bf16 %v5723, %v5719
    %v5832 = vpack.c.bf16 %v5724, %v5720
    %v5833 = vpack.c.bf16 %v5725, %v5721
    %v5834 = vpack.c.bf16 %v5726, %v5722
    %v5835 = vpack.c.bf16 %v5731, %v5727
    %v5836 = vpack.c.bf16 %v5732, %v5728
    %v5837 = vpack.c.bf16 %v5733, %v5729
    %v5838 = vpack.c.bf16 %v5734, %v5730
    %v5839 = vpack.c.bf16 %v5739, %v5735
    %v5840 = vpack.c.bf16 %v5740, %v5736
    %v5841 = vpack.c.bf16 %v5741, %v5737
    %v5842 = vpack.c.bf16 %v5742, %v5738
    %v5843 = vpack.c.bf16 %v5747, %v5743
    %v5844 = vpack.c.bf16 %v5748, %v5744
    %v5845 = vpack.c.bf16 %v5749, %v5745
    %v5846 = vpack.c.bf16 %v5750, %v5746
    %v5847 = vpack.c.bf16 %v5755, %v5751
    %v5848 = vpack.c.bf16 %v5756, %v5752
    %v5849 = vpack.c.bf16 %v5757, %v5753
    %v5850 = vpack.c.bf16 %v5758, %v5754
    %v5851 = vpack.c.bf16 %v5763, %v5759
    %v5852 = vpack.c.bf16 %v5764, %v5760
    %v5853 = vpack.c.bf16 %v5765, %v5761
    %v5854 = vpack.c.bf16 %v5766, %v5762
    %v5855 = vpack.c.bf16 %v5771, %v5767
    %v5856 = vpack.c.bf16 %v5772, %v5768
    %v5857 = vpack.c.bf16 %v5773, %v5769
    %v5858 = vpack.c.bf16 %v5774, %v5770
    %v5859 = vpack.c.bf16 %v5779, %v5775
    %v5860 = vpack.c.bf16 %v5780, %v5776
    %v5861 = vpack.c.bf16 %v5781, %v5777
    %v5862 = vpack.c.bf16 %v5782, %v5778
    %v5863 = vpack.c.bf16 %v5787, %v5783
    %v5864 = vpack.c.bf16 %v5788, %v5784
    %v5865 = vpack.c.bf16 %v5789, %v5785
    %v5866 = vpack.c.bf16 %v5790, %v5786
    %v5867 = vpack.c.bf16 %v5795, %v5791
    %v5868 = vpack.c.bf16 %v5796, %v5792
    %v5869 = vpack.c.bf16 %v5797, %v5793
    %v5870 = vpack.c.bf16 %v5798, %v5794
    %v5871 = vpack.c.bf16 %v5803, %v5799
    %v5872 = vpack.c.bf16 %v5804, %v5800
    %v5873 = vpack.c.bf16 %v5805, %v5801
    %v5874 = vpack.c.bf16 %v5806, %v5802
    %v5875 = vpack.c.bf16 %v5811, %v5807
    %v5876 = vpack.c.bf16 %v5812, %v5808
    %v5877 = vpack.c.bf16 %v5813, %v5809
    %v5878 = vpack.c.bf16 %v5814, %v5810
    %v5879 = vld [vmem:[#allocation6] sm:$0xf]
    %v5880 = vld [vmem:[#allocation6 + $0x4] sm:$0xf]
    %v5881 = vld [vmem:[#allocation6 + $0x8] sm:$0xf]
    %v5882 = vld [vmem:[#allocation6 + $0xc] sm:$0xf]
    %v5883 = vld [vmem:[#allocation6 + $0x10] sm:$0xf]
    %v5884 = vld [vmem:[#allocation6 + $0x14] sm:$0xf]
    %v5885 = vld [vmem:[#allocation6 + $0x18] sm:$0xf]
    %v5886 = vld [vmem:[#allocation6 + $0x1c] sm:$0xf]
    %v5887 = vld [vmem:[#allocation6 + $0x20] sm:$0xf]
    %v5888 = vld [vmem:[#allocation6 + $0x24] sm:$0xf]
    %v5889 = vld [vmem:[#allocation6 + $0x28] sm:$0xf]
    %v5890 = vld [vmem:[#allocation6 + $0x2c] sm:$0xf]
    %v5891 = vld [vmem:[#allocation6 + $0x30] sm:$0xf]
    %v5892 = vld [vmem:[#allocation6 + $0x34] sm:$0xf]
    %v5893 = vld [vmem:[#allocation6 + $0x38] sm:$0xf]
    %v5894 = vld [vmem:[#allocation6 + $0x3c] sm:$0xf]
    %v5895 = vld [vmem:[#allocation6 + $0x40] sm:$0xf]
    %v5896 = vld [vmem:[#allocation6 + $0x44] sm:$0xf]
    %v5897 = vld [vmem:[#allocation6 + $0x48] sm:$0xf]
    %v5898 = vld [vmem:[#allocation6 + $0x4c] sm:$0xf]
    %v5899 = vld [vmem:[#allocation6 + $0x50] sm:$0xf]
    %v5900 = vld [vmem:[#allocation6 + $0x54] sm:$0xf]
    %v5901 = vld [vmem:[#allocation6 + $0x58] sm:$0xf]
    %v5902 = vld [vmem:[#allocation6 + $0x5c] sm:$0xf]
    %v5903 = vld [vmem:[#allocation6 + $0x60] sm:$0xf]
    %v5904 = vld [vmem:[#allocation6 + $0x64] sm:$0xf]
    %v5905 = vld [vmem:[#allocation6 + $0x68] sm:$0xf]
    %v5906 = vld [vmem:[#allocation6 + $0x6c] sm:$0xf]
    %v5907 = vld [vmem:[#allocation6 + $0x70] sm:$0xf]
    %v5908 = vld [vmem:[#allocation6 + $0x74] sm:$0xf]
    %v5909 = vld [vmem:[#allocation6 + $0x78] sm:$0xf]
    %v5910 = vld [vmem:[#allocation6 + $0x7c] sm:$0xf]
    %v5911 = vld [vmem:[#allocation6 + $0x80] sm:$0xf]
    %v5912 = vld [vmem:[#allocation6 + $0x84] sm:$0xf]
    %v5913 = vld [vmem:[#allocation6 + $0x88] sm:$0xf]
    %v5914 = vld [vmem:[#allocation6 + $0x8c] sm:$0xf]
    %v5915 = vld [vmem:[#allocation6 + $0x90] sm:$0xf]
    %v5916 = vld [vmem:[#allocation6 + $0x94] sm:$0xf]
    %v5917 = vld [vmem:[#allocation6 + $0x98] sm:$0xf]
    %v5918 = vld [vmem:[#allocation6 + $0x9c] sm:$0xf]
    %v5919 = vld [vmem:[#allocation6 + $0xa0] sm:$0xf]
    %v5920 = vld [vmem:[#allocation6 + $0xa4] sm:$0xf]
    %v5921 = vld [vmem:[#allocation6 + $0xa8] sm:$0xf]
    %v5922 = vld [vmem:[#allocation6 + $0xac] sm:$0xf]
    %v5923 = vld [vmem:[#allocation6 + $0xb0] sm:$0xf]
    %v5924 = vld [vmem:[#allocation6 + $0xb4] sm:$0xf]
    %v5925 = vld [vmem:[#allocation6 + $0xb8] sm:$0xf]
    %v5926 = vld [vmem:[#allocation6 + $0xbc] sm:$0xf]
    %v5927 = vld [vmem:[#allocation6 + $0xc0] sm:$0xf]
    %v5928 = vld [vmem:[#allocation6 + $0xc4] sm:$0xf]
    %v5929 = vld [vmem:[#allocation6 + $0xc8] sm:$0xf]
    %v5930 = vld [vmem:[#allocation6 + $0xcc] sm:$0xf]
    %v5931 = vld [vmem:[#allocation6 + $0xd0] sm:$0xf]
    %v5932 = vld [vmem:[#allocation6 + $0xd4] sm:$0xf]
    %v5933 = vld [vmem:[#allocation6 + $0xd8] sm:$0xf]
    %v5934 = vld [vmem:[#allocation6 + $0xdc] sm:$0xf]
    %v5935 = vld [vmem:[#allocation6 + $0xe0] sm:$0xf]
    %v5936 = vld [vmem:[#allocation6 + $0xe4] sm:$0xf]
    %v5937 = vld [vmem:[#allocation6 + $0xe8] sm:$0xf]
    %v5938 = vld [vmem:[#allocation6 + $0xec] sm:$0xf]
    %v5939 = vld [vmem:[#allocation6 + $0xf0] sm:$0xf]
    %v5940 = vld [vmem:[#allocation6 + $0xf4] sm:$0xf]
    %v5941 = vld [vmem:[#allocation6 + $0xf8] sm:$0xf]
    %v5942 = vld [vmem:[#allocation6 + $0xfc] sm:$0xf]
    %v5943 = vld [vmem:[%s8] sm:$0x1]
    %v5945 = vperm.slane %v5943, 0
    %v6011 = vunpack.c.l.b16 %v5879
    %v6012 = vunpack.c.l.b16 %v5880
    %v6013 = vunpack.c.l.b16 %v5881
    %v6014 = vunpack.c.l.b16 %v5882
    %v6015 = vunpack.c.l.b16 %v5883
    %v6016 = vunpack.c.l.b16 %v5884
    %v6017 = vunpack.c.l.b16 %v5885
    %v6018 = vunpack.c.l.b16 %v5886
    %v6019 = vunpack.c.l.b16 %v5887
    %v6020 = vunpack.c.l.b16 %v5888
    %v6021 = vunpack.c.l.b16 %v5889
    %v6022 = vunpack.c.l.b16 %v5890
    %v6023 = vunpack.c.l.b16 %v5891
    %v6024 = vunpack.c.l.b16 %v5892
    %v6025 = vunpack.c.l.b16 %v5893
    %v6026 = vunpack.c.l.b16 %v5894
    %v6027 = vunpack.c.l.b16 %v5895
    %v6028 = vunpack.c.l.b16 %v5896
    %v6029 = vunpack.c.l.b16 %v5897
    %v6030 = vunpack.c.l.b16 %v5898
    %v6031 = vunpack.c.l.b16 %v5899
    %v6032 = vunpack.c.l.b16 %v5900
    %v6033 = vunpack.c.l.b16 %v5901
    %v6034 = vunpack.c.l.b16 %v5902
    %v6035 = vunpack.c.l.b16 %v5903
    %v6036 = vunpack.c.l.b16 %v5904
    %v6037 = vunpack.c.l.b16 %v5905
    %v6038 = vunpack.c.l.b16 %v5906
    %v6039 = vunpack.c.l.b16 %v5907
    %v6040 = vunpack.c.l.b16 %v5908
    %v6041 = vunpack.c.l.b16 %v5909
    %v6042 = vunpack.c.l.b16 %v5910
    %v6043 = vunpack.c.l.b16 %v5911
    %v6044 = vunpack.c.l.b16 %v5912
    %v6045 = vunpack.c.l.b16 %v5913
    %v6046 = vunpack.c.l.b16 %v5914
    %v6047 = vunpack.c.l.b16 %v5915
    %v6048 = vunpack.c.l.b16 %v5916
    %v6049 = vunpack.c.l.b16 %v5917
    %v6050 = vunpack.c.l.b16 %v5918
    %v6051 = vunpack.c.l.b16 %v5919
    %v6052 = vunpack.c.l.b16 %v5920
    %v6053 = vunpack.c.l.b16 %v5921
    %v6054 = vunpack.c.l.b16 %v5922
    %v6055 = vunpack.c.l.b16 %v5923
    %v6056 = vunpack.c.l.b16 %v5924
    %v6057 = vunpack.c.l.b16 %v5925
    %v6058 = vunpack.c.l.b16 %v5926
    %v6059 = vunpack.c.l.b16 %v5927
    %v6060 = vunpack.c.l.b16 %v5928
    %v6061 = vunpack.c.l.b16 %v5929
    %v6062 = vunpack.c.l.b16 %v5930
    %v6063 = vunpack.c.l.b16 %v5931
    %v6064 = vunpack.c.l.b16 %v5932
    %v6065 = vunpack.c.l.b16 %v5933
    %v6066 = vunpack.c.l.b16 %v5934
    %v6067 = vunpack.c.l.b16 %v5935
    %v6068 = vunpack.c.l.b16 %v5936
    %v6069 = vunpack.c.l.b16 %v5937
    %v6070 = vunpack.c.l.b16 %v5938
    %v6071 = vunpack.c.l.b16 %v5939
    %v6072 = vunpack.c.l.b16 %v5940
    %v6073 = vunpack.c.l.b16 %v5941
    %v6074 = vunpack.c.l.b16 %v5942
    %v6075 = vpack.c.b16 %v6012, %v6011
    %v6076 = vpack.c.b16 %v6014, %v6013
    %v6077 = vpack.c.b16 %v6016, %v6015
    %v6078 = vpack.c.b16 %v6018, %v6017
    %v6079 = vpack.c.b16 %v6020, %v6019
    %v6080 = vpack.c.b16 %v6022, %v6021
    %v6081 = vpack.c.b16 %v6024, %v6023
    %v6082 = vpack.c.b16 %v6026, %v6025
    %v6083 = vpack.c.b16 %v6028, %v6027
    %v6084 = vpack.c.b16 %v6030, %v6029
    %v6085 = vpack.c.b16 %v6032, %v6031
    %v6086 = vpack.c.b16 %v6034, %v6033
    %v6087 = vpack.c.b16 %v6036, %v6035
    %v6088 = vpack.c.b16 %v6038, %v6037
    %v6089 = vpack.c.b16 %v6040, %v6039
    %v6090 = vpack.c.b16 %v6042, %v6041
    %v6091 = vpack.c.b16 %v6044, %v6043
    %v6092 = vpack.c.b16 %v6046, %v6045
    %v6093 = vpack.c.b16 %v6048, %v6047
    %v6094 = vpack.c.b16 %v6050, %v6049
    %v6095 = vpack.c.b16 %v6052, %v6051
    %v6096 = vpack.c.b16 %v6054, %v6053
    %v6097 = vpack.c.b16 %v6056, %v6055
    %v6098 = vpack.c.b16 %v6058, %v6057
    %v6099 = vpack.c.b16 %v6060, %v6059
    %v6100 = vpack.c.b16 %v6062, %v6061
    %v6101 = vpack.c.b16 %v6064, %v6063
    %v6102 = vpack.c.b16 %v6066, %v6065
    %v6103 = vpack.c.b16 %v6068, %v6067
    %v6104 = vpack.c.b16 %v6070, %v6069
    %v6105 = vpack.c.b16 %v6072, %v6071
    %v6106 = vpack.c.b16 %v6074, %v6073
    %6139 = vmatpush.bf16.msra.mxu0 %v6082
    %6140 = vmatpush.bf16.msra.mxu0 %v6081
    %6141 = vmatpush.bf16.msra.mxu0 %v6080
    %6142 = vmatpush.bf16.msra.mxu0 %v6079
    %6143 = vmatpush.bf16.msra.mxu0 %v6078
    %6144 = vmatpush.bf16.msra.mxu0 %v6077
    %6145 = vmatpush.bf16.msra.mxu0 %v6076
    %6146 = vmatpush.bf16.msra.mxu0 %v6075
    %6147 = vmatmul.bf16.gmra.mxu0 %v5815
    %v6148 = vpop.f32.mrf.mxu0
    %v6149 = vadd.f32 %v5945, %v6148
    %v6150 = vpop.f32.mrf.mxu0
    %v6151 = vadd.f32 %v5945, %v6150
    %6152 = vmatmul.bf16.gmra.mxu0 %v5819
    %v6153 = vpop.f32.mrf.mxu0
    %v6154 = vadd.f32 %v5945, %v6153
    %v6155 = vpop.f32.mrf.mxu0
    %v6156 = vadd.f32 %v5945, %v6155
    %6157 = vmatmul.bf16.gmra.mxu0 %v5823
    %v6158 = vpop.f32.mrf.mxu0
    %v6159 = vadd.f32 %v5945, %v6158
    %v6160 = vpop.f32.mrf.mxu0
    %v6161 = vadd.f32 %v5945, %v6160
    %6162 = vmatmul.bf16.gmra.mxu0 %v5827
    %v6163 = vpop.f32.mrf.mxu0
    %v6164 = vadd.f32 %v5945, %v6163
    %v6165 = vpop.f32.mrf.mxu0
    %v6166 = vadd.f32 %v5945, %v6165
    %6167 = vmatmul.bf16.gmra.mxu0 %v5831
    %v6168 = vpop.f32.mrf.mxu0
    %v6169 = vadd.f32 %v5945, %v6168
    %v6170 = vpop.f32.mrf.mxu0
    %v6171 = vadd.f32 %v5945, %v6170
    %6172 = vmatmul.bf16.gmra.mxu0 %v5835
    %v6173 = vpop.f32.mrf.mxu0
    %v6174 = vadd.f32 %v5945, %v6173
    %v6175 = vpop.f32.mrf.mxu0
    %v6176 = vadd.f32 %v5945, %v6175
    %6177 = vmatmul.bf16.gmra.mxu0 %v5839
    %v6178 = vpop.f32.mrf.mxu0
    %v6179 = vadd.f32 %v5945, %v6178
    %v6180 = vpop.f32.mrf.mxu0
    %v6181 = vadd.f32 %v5945, %v6180
    %6182 = vmatmul.bf16.gmra.mxu0 %v5843
    %v6183 = vpop.f32.mrf.mxu0
    %v6184 = vadd.f32 %v5945, %v6183
    %v6185 = vpop.f32.mrf.mxu0
    %v6186 = vadd.f32 %v5945, %v6185
    %6187 = vmatmul.bf16.gmra.mxu0 %v5847
    %v6188 = vpop.f32.mrf.mxu0
    %v6189 = vadd.f32 %v5945, %v6188
    %v6190 = vpop.f32.mrf.mxu0
    %v6191 = vadd.f32 %v5945, %v6190
    %6192 = vmatmul.bf16.gmra.mxu0 %v5851
    %v6193 = vpop.f32.mrf.mxu0
    %v6194 = vadd.f32 %v5945, %v6193
    %v6195 = vpop.f32.mrf.mxu0
    %v6196 = vadd.f32 %v5945, %v6195
    %6197 = vmatmul.bf16.gmra.mxu0 %v5855
    %v6198 = vpop.f32.mrf.mxu0
    %v6199 = vadd.f32 %v5945, %v6198
    %v6200 = vpop.f32.mrf.mxu0
    %v6201 = vadd.f32 %v5945, %v6200
    %6202 = vmatmul.bf16.gmra.mxu0 %v5859
    %v6203 = vpop.f32.mrf.mxu0
    %v6204 = vadd.f32 %v5945, %v6203
    %v6205 = vpop.f32.mrf.mxu0
    %v6206 = vadd.f32 %v5945, %v6205
    %6207 = vmatmul.bf16.gmra.mxu0 %v5863
    %v6208 = vpop.f32.mrf.mxu0
    %v6209 = vadd.f32 %v5945, %v6208
    %v6210 = vpop.f32.mrf.mxu0
    %v6211 = vadd.f32 %v5945, %v6210
    %6212 = vmatmul.bf16.gmra.mxu0 %v5867
    %v6213 = vpop.f32.mrf.mxu0
    %v6214 = vadd.f32 %v5945, %v6213
    %v6215 = vpop.f32.mrf.mxu0
    %v6216 = vadd.f32 %v5945, %v6215
    %6217 = vmatmul.bf16.gmra.mxu0 %v5871
    %v6218 = vpop.f32.mrf.mxu0
    %v6219 = vadd.f32 %v5945, %v6218
    %v6220 = vpop.f32.mrf.mxu0
    %v6221 = vadd.f32 %v5945, %v6220
    %6222 = vmatmul.bf16.gmra.mxu0 %v5875
    %v6223 = vpop.f32.mrf.mxu0
    %v6224 = vadd.f32 %v5945, %v6223
    %v6225 = vpop.f32.mrf.mxu0
    %v6226 = vadd.f32 %v5945, %v6225
    %6227 = vdwg.mxu0
    %6228 = vmatpush.bf16.msra.mxu0 %v6090
    %6229 = vmatpush.bf16.msra.mxu0 %v6089
    %6230 = vmatpush.bf16.msra.mxu0 %v6088
    %6231 = vmatpush.bf16.msra.mxu0 %v6087
    %6232 = vmatpush.bf16.msra.mxu0 %v6086
    %6233 = vmatpush.bf16.msra.mxu0 %v6085
    %6234 = vmatpush.bf16.msra.mxu0 %v6084
    %6235 = vmatpush.bf16.msra.mxu0 %v6083
    %6236 = vmatmul.bf16.gmra.mxu0 %v5816
    %v6237 = vpop.f32.mrf.mxu0
    %v6238 = vadd.f32 %v6149, %v6237
    %v6239 = vpop.f32.mrf.mxu0
    %v6240 = vadd.f32 %v6151, %v6239
    %6241 = vmatmul.bf16.gmra.mxu0 %v5820
    %v6242 = vpop.f32.mrf.mxu0
    %v6243 = vadd.f32 %v6154, %v6242
    %v6244 = vpop.f32.mrf.mxu0
    %v6245 = vadd.f32 %v6156, %v6244
    %6246 = vmatmul.bf16.gmra.mxu0 %v5824
    %v6247 = vpop.f32.mrf.mxu0
    %v6248 = vadd.f32 %v6159, %v6247
    %v6249 = vpop.f32.mrf.mxu0
    %v6250 = vadd.f32 %v6161, %v6249
    %6251 = vmatmul.bf16.gmra.mxu0 %v5828
    %v6252 = vpop.f32.mrf.mxu0
    %v6253 = vadd.f32 %v6164, %v6252
    %v6254 = vpop.f32.mrf.mxu0
    %v6255 = vadd.f32 %v6166, %v6254
    %6256 = vmatmul.bf16.gmra.mxu0 %v5832
    %v6257 = vpop.f32.mrf.mxu0
    %v6258 = vadd.f32 %v6169, %v6257
    %v6259 = vpop.f32.mrf.mxu0
    %v6260 = vadd.f32 %v6171, %v6259
    %6261 = vmatmul.bf16.gmra.mxu0 %v5836
    %v6262 = vpop.f32.mrf.mxu0
    %v6263 = vadd.f32 %v6174, %v6262
    %v6264 = vpop.f32.mrf.mxu0
    %v6265 = vadd.f32 %v6176, %v6264
    %6266 = vmatmul.bf16.gmra.mxu0 %v5840
    %v6267 = vpop.f32.mrf.mxu0
    %v6268 = vadd.f32 %v6179, %v6267
    %v6269 = vpop.f32.mrf.mxu0
    %v6270 = vadd.f32 %v6181, %v6269
    %6271 = vmatmul.bf16.gmra.mxu0 %v5844
    %v6272 = vpop.f32.mrf.mxu0
    %v6273 = vadd.f32 %v6184, %v6272
    %v6274 = vpop.f32.mrf.mxu0
    %v6275 = vadd.f32 %v6186, %v6274
    %6276 = vmatmul.bf16.gmra.mxu0 %v5848
    %v6277 = vpop.f32.mrf.mxu0
    %v6278 = vadd.f32 %v6189, %v6277
    %v6279 = vpop.f32.mrf.mxu0
    %v6280 = vadd.f32 %v6191, %v6279
    %6281 = vmatmul.bf16.gmra.mxu0 %v5852
    %v6282 = vpop.f32.mrf.mxu0
    %v6283 = vadd.f32 %v6194, %v6282
    %v6284 = vpop.f32.mrf.mxu0
    %v6285 = vadd.f32 %v6196, %v6284
    %6286 = vmatmul.bf16.gmra.mxu0 %v5856
    %v6287 = vpop.f32.mrf.mxu0
    %v6288 = vadd.f32 %v6199, %v6287
    %v6289 = vpop.f32.mrf.mxu0
    %v6290 = vadd.f32 %v6201, %v6289
    %6291 = vmatmul.bf16.gmra.mxu0 %v5860
    %v6292 = vpop.f32.mrf.mxu0
    %v6293 = vadd.f32 %v6204, %v6292
    %v6294 = vpop.f32.mrf.mxu0
    %v6295 = vadd.f32 %v6206, %v6294
    %6296 = vmatmul.bf16.gmra.mxu0 %v5864
    %v6297 = vpop.f32.mrf.mxu0
    %v6298 = vadd.f32 %v6209, %v6297
    %v6299 = vpop.f32.mrf.mxu0
    %v6300 = vadd.f32 %v6211, %v6299
    %6301 = vmatmul.bf16.gmra.mxu0 %v5868
    %v6302 = vpop.f32.mrf.mxu0
    %v6303 = vadd.f32 %v6214, %v6302
    %v6304 = vpop.f32.mrf.mxu0
    %v6305 = vadd.f32 %v6216, %v6304
    %6306 = vmatmul.bf16.gmra.mxu0 %v5872
    %v6307 = vpop.f32.mrf.mxu0
    %v6308 = vadd.f32 %v6219, %v6307
    %v6309 = vpop.f32.mrf.mxu0
    %v6310 = vadd.f32 %v6221, %v6309
    %6311 = vmatmul.bf16.gmra.mxu0 %v5876
    %v6312 = vpop.f32.mrf.mxu0
    %v6313 = vadd.f32 %v6224, %v6312
    %v6314 = vpop.f32.mrf.mxu0
    %v6315 = vadd.f32 %v6226, %v6314
    %6316 = vdwg.mxu0
    %6317 = vmatpush.bf16.msra.mxu0 %v6098
    %6318 = vmatpush.bf16.msra.mxu0 %v6097
    %6319 = vmatpush.bf16.msra.mxu0 %v6096
    %6320 = vmatpush.bf16.msra.mxu0 %v6095
    %6321 = vmatpush.bf16.msra.mxu0 %v6094
    %6322 = vmatpush.bf16.msra.mxu0 %v6093
    %6323 = vmatpush.bf16.msra.mxu0 %v6092
    %6324 = vmatpush.bf16.msra.mxu0 %v6091
    %6325 = vmatmul.bf16.gmra.mxu0 %v5817
    %v6326 = vpop.f32.mrf.mxu0
    %v6327 = vadd.f32 %v6238, %v6326
    %v6328 = vpop.f32.mrf.mxu0
    %v6329 = vadd.f32 %v6240, %v6328
    %6330 = vmatmul.bf16.gmra.mxu0 %v5821
    %v6331 = vpop.f32.mrf.mxu0
    %v6332 = vadd.f32 %v6243, %v6331
    %v6333 = vpop.f32.mrf.mxu0
    %v6334 = vadd.f32 %v6245, %v6333
    %6335 = vmatmul.bf16.gmra.mxu0 %v5825
    %v6336 = vpop.f32.mrf.mxu0
    %v6337 = vadd.f32 %v6248, %v6336
    %v6338 = vpop.f32.mrf.mxu0
    %v6339 = vadd.f32 %v6250, %v6338
    %6340 = vmatmul.bf16.gmra.mxu0 %v5829
    %v6341 = vpop.f32.mrf.mxu0
    %v6342 = vadd.f32 %v6253, %v6341
    %v6343 = vpop.f32.mrf.mxu0
    %v6344 = vadd.f32 %v6255, %v6343
    %6345 = vmatmul.bf16.gmra.mxu0 %v5833
    %v6346 = vpop.f32.mrf.mxu0
    %v6347 = vadd.f32 %v6258, %v6346
    %v6348 = vpop.f32.mrf.mxu0
    %v6349 = vadd.f32 %v6260, %v6348
    %6350 = vmatmul.bf16.gmra.mxu0 %v5837
    %v6351 = vpop.f32.mrf.mxu0
    %v6352 = vadd.f32 %v6263, %v6351
    %v6353 = vpop.f32.mrf.mxu0
    %v6354 = vadd.f32 %v6265, %v6353
    %6355 = vmatmul.bf16.gmra.mxu0 %v5841
    %v6356 = vpop.f32.mrf.mxu0
    %v6357 = vadd.f32 %v6268, %v6356
    %v6358 = vpop.f32.mrf.mxu0
    %v6359 = vadd.f32 %v6270, %v6358
    %6360 = vmatmul.bf16.gmra.mxu0 %v5845
    %v6361 = vpop.f32.mrf.mxu0
    %v6362 = vadd.f32 %v6273, %v6361
    %v6363 = vpop.f32.mrf.mxu0
    %v6364 = vadd.f32 %v6275, %v6363
    %6365 = vmatmul.bf16.gmra.mxu0 %v5849
    %v6366 = vpop.f32.mrf.mxu0
    %v6367 = vadd.f32 %v6278, %v6366
    %v6368 = vpop.f32.mrf.mxu0
    %v6369 = vadd.f32 %v6280, %v6368
    %6370 = vmatmul.bf16.gmra.mxu0 %v5853
    %v6371 = vpop.f32.mrf.mxu0
    %v6372 = vadd.f32 %v6283, %v6371
    %v6373 = vpop.f32.mrf.mxu0
    %v6374 = vadd.f32 %v6285, %v6373
    %6375 = vmatmul.bf16.gmra.mxu0 %v5857
    %v6376 = vpop.f32.mrf.mxu0
    %v6377 = vadd.f32 %v6288, %v6376
    %v6378 = vpop.f32.mrf.mxu0
    %v6379 = vadd.f32 %v6290, %v6378
    %6380 = vmatmul.bf16.gmra.mxu0 %v5861
    %v6381 = vpop.f32.mrf.mxu0
    %v6382 = vadd.f32 %v6293, %v6381
    %v6383 = vpop.f32.mrf.mxu0
    %v6384 = vadd.f32 %v6295, %v6383
    %6385 = vmatmul.bf16.gmra.mxu0 %v5865
    %v6386 = vpop.f32.mrf.mxu0
    %v6387 = vadd.f32 %v6298, %v6386
    %v6388 = vpop.f32.mrf.mxu0
    %v6389 = vadd.f32 %v6300, %v6388
    %6390 = vmatmul.bf16.gmra.mxu0 %v5869
    %v6391 = vpop.f32.mrf.mxu0
    %v6392 = vadd.f32 %v6303, %v6391
    %v6393 = vpop.f32.mrf.mxu0
    %v6394 = vadd.f32 %v6305, %v6393
    %6395 = vmatmul.bf16.gmra.mxu0 %v5873
    %v6396 = vpop.f32.mrf.mxu0
    %v6397 = vadd.f32 %v6308, %v6396
    %v6398 = vpop.f32.mrf.mxu0
    %v6399 = vadd.f32 %v6310, %v6398
    %6400 = vmatmul.bf16.gmra.mxu0 %v5877
    %v6401 = vpop.f32.mrf.mxu0
    %v6402 = vadd.f32 %v6313, %v6401
    %v6403 = vpop.f32.mrf.mxu0
    %v6404 = vadd.f32 %v6315, %v6403
    %6405 = vdwg.mxu0
    %6406 = vmatpush.bf16.msra.mxu0 %v6106
    %6407 = vmatpush.bf16.msra.mxu0 %v6105
    %6408 = vmatpush.bf16.msra.mxu0 %v6104
    %6409 = vmatpush.bf16.msra.mxu0 %v6103
    %6410 = vmatpush.bf16.msra.mxu0 %v6102
    %6411 = vmatpush.bf16.msra.mxu0 %v6101
    %6412 = vmatpush.bf16.msra.mxu0 %v6100
    %6413 = vmatpush.bf16.msra.mxu0 %v6099
    %6414 = vmatmul.bf16.gmra.mxu0 %v5818
    %v6415 = vpop.f32.mrf.mxu0
    %v6416 = vadd.f32 %v6327, %v6415
    %v6417 = vpop.f32.mrf.mxu0
    %v6418 = vadd.f32 %v6329, %v6417
    %6419 = vmatmul.bf16.gmra.mxu0 %v5822
    %v6420 = vpop.f32.mrf.mxu0
    %v6421 = vadd.f32 %v6332, %v6420
    %v6422 = vpop.f32.mrf.mxu0
    %v6423 = vadd.f32 %v6334, %v6422
    %6424 = vmatmul.bf16.gmra.mxu0 %v5826
    %v6425 = vpop.f32.mrf.mxu0
    %v6426 = vadd.f32 %v6337, %v6425
    %v6427 = vpop.f32.mrf.mxu0
    %v6428 = vadd.f32 %v6339, %v6427
    %6429 = vmatmul.bf16.gmra.mxu0 %v5830
    %v6430 = vpop.f32.mrf.mxu0
    %v6431 = vadd.f32 %v6342, %v6430
    %v6432 = vpop.f32.mrf.mxu0
    %v6433 = vadd.f32 %v6344, %v6432
    %6434 = vmatmul.bf16.gmra.mxu0 %v5834
    %v6435 = vpop.f32.mrf.mxu0
    %v6436 = vadd.f32 %v6347, %v6435
    %v6437 = vpop.f32.mrf.mxu0
    %v6438 = vadd.f32 %v6349, %v6437
    %6439 = vmatmul.bf16.gmra.mxu0 %v5838
    %v6440 = vpop.f32.mrf.mxu0
    %v6441 = vadd.f32 %v6352, %v6440
    %v6442 = vpop.f32.mrf.mxu0
    %v6443 = vadd.f32 %v6354, %v6442
    %6444 = vmatmul.bf16.gmra.mxu0 %v5842
    %v6445 = vpop.f32.mrf.mxu0
    %v6446 = vadd.f32 %v6357, %v6445
    %v6447 = vpop.f32.mrf.mxu0
    %v6448 = vadd.f32 %v6359, %v6447
    %6449 = vmatmul.bf16.gmra.mxu0 %v5846
    %v6450 = vpop.f32.mrf.mxu0
    %v6451 = vadd.f32 %v6362, %v6450
    %v6452 = vpop.f32.mrf.mxu0
    %v6453 = vadd.f32 %v6364, %v6452
    %6454 = vmatmul.bf16.gmra.mxu0 %v5850
    %v6455 = vpop.f32.mrf.mxu0
    %v6456 = vadd.f32 %v6367, %v6455
    %v6457 = vpop.f32.mrf.mxu0
    %v6458 = vadd.f32 %v6369, %v6457
    %6459 = vmatmul.bf16.gmra.mxu0 %v5854
    %v6460 = vpop.f32.mrf.mxu0
    %v6461 = vadd.f32 %v6372, %v6460
    %v6462 = vpop.f32.mrf.mxu0
    %v6463 = vadd.f32 %v6374, %v6462
    %6464 = vmatmul.bf16.gmra.mxu0 %v5858
    %v6465 = vpop.f32.mrf.mxu0
    %v6466 = vadd.f32 %v6377, %v6465
    %v6467 = vpop.f32.mrf.mxu0
    %v6468 = vadd.f32 %v6379, %v6467
    %6469 = vmatmul.bf16.gmra.mxu0 %v5862
    %v6470 = vpop.f32.mrf.mxu0
    %v6471 = vadd.f32 %v6382, %v6470
    %v6472 = vpop.f32.mrf.mxu0
    %v6473 = vadd.f32 %v6384, %v6472
    %6474 = vmatmul.bf16.gmra.mxu0 %v5866
    %v6475 = vpop.f32.mrf.mxu0
    %v6476 = vadd.f32 %v6387, %v6475
    %v6477 = vpop.f32.mrf.mxu0
    %v6478 = vadd.f32 %v6389, %v6477
    %6479 = vmatmul.bf16.gmra.mxu0 %v5870
    %v6480 = vpop.f32.mrf.mxu0
    %v6481 = vadd.f32 %v6392, %v6480
    %v6482 = vpop.f32.mrf.mxu0
    %v6483 = vadd.f32 %v6394, %v6482
    %6484 = vmatmul.bf16.gmra.mxu0 %v5874
    %v6485 = vpop.f32.mrf.mxu0
    %v6486 = vadd.f32 %v6397, %v6485
    %v6487 = vpop.f32.mrf.mxu0
    %v6488 = vadd.f32 %v6399, %v6487
    %6489 = vmatmul.bf16.gmra.mxu0 %v5878
    %v6490 = vpop.f32.mrf.mxu0
    %v6491 = vadd.f32 %v6402, %v6490
    %v6492 = vpop.f32.mrf.mxu0
    %v6493 = vadd.f32 %v6404, %v6492
    %6494 = vdwg.mxu0
    %6495 = vst [vmem:[#allocation8] sm:$0xff] %v6416
    %6496 = vst [vmem:[#allocation8 + $0x8] sm:$0xff] %v6418
    %6497 = vst [vmem:[#allocation8 + $0x10] sm:$0xff] %v6421
    %6498 = vst [vmem:[#allocation8 + $0x18] sm:$0xff] %v6423
    %6499 = vst [vmem:[#allocation8 + $0x20] sm:$0xff] %v6426
    %6500 = vst [vmem:[#allocation8 + $0x28] sm:$0xff] %v6428
    %6501 = vst [vmem:[#allocation8 + $0x30] sm:$0xff] %v6431
    %6502 = vst [vmem:[#allocation8 + $0x38] sm:$0xff] %v6433
    %6503 = vst [vmem:[#allocation8 + $0x40] sm:$0xff] %v6436
    %6504 = vst [vmem:[#allocation8 + $0x48] sm:$0xff] %v6438
    %6505 = vst [vmem:[#allocation8 + $0x50] sm:$0xff] %v6441
    %6506 = vst [vmem:[#allocation8 + $0x58] sm:$0xff] %v6443
    %6507 = vst [vmem:[#allocation8 + $0x60] sm:$0xff] %v6446
    %6508 = vst [vmem:[#allocation8 + $0x68] sm:$0xff] %v6448
    %6509 = vst [vmem:[#allocation8 + $0x70] sm:$0xff] %v6451
    %6510 = vst [vmem:[#allocation8 + $0x78] sm:$0xff] %v6453
    %6511 = vst [vmem:[#allocation8 + $0x80] sm:$0xff] %v6456
    %6512 = vst [vmem:[#allocation8 + $0x88] sm:$0xff] %v6458
    %6513 = vst [vmem:[#allocation8 + $0x90] sm:$0xff] %v6461
    %6514 = vst [vmem:[#allocation8 + $0x98] sm:$0xff] %v6463
    %6515 = vst [vmem:[#allocation8 + $0xa0] sm:$0xff] %v6466
    %6516 = vst [vmem:[#allocation8 + $0xa8] sm:$0xff] %v6468
    %6517 = vst [vmem:[#allocation8 + $0xb0] sm:$0xff] %v6471
    %6518 = vst [vmem:[#allocation8 + $0xb8] sm:$0xff] %v6473
    %6519 = vst [vmem:[#allocation8 + $0xc0] sm:$0xff] %v6476
    %6520 = vst [vmem:[#allocation8 + $0xc8] sm:$0xff] %v6478
    %6521 = vst [vmem:[#allocation8 + $0xd0] sm:$0xff] %v6481
    %6522 = vst [vmem:[#allocation8 + $0xd8] sm:$0xff] %v6483
    %6523 = vst [vmem:[#allocation8 + $0xe0] sm:$0xff] %v6486
    %6524 = vst [vmem:[#allocation8 + $0xe8] sm:$0xff] %v6488
    %6525 = vst [vmem:[#allocation8 + $0xf0] sm:$0xff] %v6491
    %6526 = vst [vmem:[#allocation8 + $0xf8] sm:$0xff] %v6493
    // Predicated region
    $region50: #{tpu_custom_call.1} parent=1 // pred_check
      _
    $region51: #{tpu_custom_call.1} parent=1 // pred_check_branch
      %6528 = sbr.rel (0) target = $region53
    $region52: #{tpu_custom_call.1} parent=1 // pred_region
      %6530 = vsyncadd [#allocation5], 0
      %s6531 = sshll.u32 [#allocation8], 4
      %s6532 = int_to_ptr.vmem [resolvable:$true] %s6531
      %s6533 = sshll.u32 %s9, 4
      %s6534 = int_to_ptr.hbm [resolvable:$true] %s6533
      %6539 = dma.vmem_to_hbm [thread:$0]  %s6532, 4096, %s6534, [#allocation5], 128, 128, 8
    $region53: #{tpu_custom_call.1} parent=1 // pred_fallthru
      _
    // Predicated region
    $region54: #{tpu_custom_call.1} parent=1 // pred_check
      _
    $region55: #{tpu_custom_call.1} parent=1 // pred_check_branch
      %6541 = sbr.rel (0) target = $region57
    $region56: #{tpu_custom_call.1} parent=1 // pred_region
      %6543 = dma.done [#allocation5], 4096
    $region57: #{tpu_custom_call.1} parent=1 // pred_fallthru
      _
    %6544 = vsyncpa [#allocation4], 1
    %6545 = vsyncpa [#allocation7], 1
    %6546 = vsyncpa [#allocation5], 1

</llo_original>
